<compile_context>
chip_gen: v7x
topology: tpu7x:2x2x1
jax: 0.10.0
libtpu: 0.0.40
codegen_flags: <defaults>
</compile_context>

<pallas_src>
import jax
import jax.numpy as jnp
import numpy as np
from jax.experimental import pallas as pl
from jax.experimental.pallas import tpu as pltpu

# Logical sizes of the PyTorch module.
D_IN, D_H1, D_H2, D_H3, D_OUT = 1000, 500, 250, 10, 1
# Lane-aligned (zero-padded) sizes.
P_IN, P_H1, P_H2, P_H3 = 1024, 512, 256, 128

# Batch-tile cap: large enough for good DMA efficiency / per-step-overhead
# amortization, small enough that double-buffered bf16 x tiles + f32
# intermediates stay well inside v5e's 16 MiB default scoped VMEM.
TILE_CAP = 512


def _round_up(v, m):
    return ((v + m - 1) // m) * m


def _cdiv(a, b):
    return -(-a // b)


def _choose_tile_b(batch):
    """Pick a bf16-aligned batch tile minimizing padding waste.

    - cap at TILE_CAP rows,
    - keep >=2 grid steps when the batch is big enough, so both v7x
      TensorCores get work (harmless on v5e/v6e),
    - multiples of 16 (bf16 sublane packing).
    """
    n_tiles = _cdiv(batch, TILE_CAP)
    if batch >= 32:
        n_tiles = max(n_tiles, 2)
    return _round_up(_cdiv(batch, n_tiles), 16)


def mlp_kernel(x_ref, w1_ref, w2_ref, w3_ref, small_ref, o_ref):
    """One batch tile of the 4-layer MLP.

    x_ref:     (TB, 1024) bf16  (features zero-padded 1000->1024, pre-cast)
    w1_ref:    (1024, 512) bf16 (zero-padded)
    w2_ref:    (512, 256)  bf16
    w3_ref:    (256, 128)  bf16
    small_ref: (8, 512)    f32  row0=b1, row1=b2, row2=b3, row3=w4-row, row4[0]=b4
    o_ref:     (TB, 1)     f32
    """
    small = small_ref[...]
    b1 = small[0:1, :P_H1]      # (1, 512)
    b2 = small[1:2, :P_H2]      # (1, 256)
    b3 = small[2:3, :P_H3]      # (1, 128)
    w4 = small[3:4, :P_H3]      # (1, 128), zero beyond col 9
    b4 = small[4:5, 0:1]        # (1, 1)

    # Layer 1: (TB,1024) @ (1024,512) on the MXU, bf16 inputs / f32 accumulate.
    h = jnp.dot(x_ref[...], w1_ref[...], preferred_element_type=jnp.float32)
    h = jnp.maximum(h + b1, 0.0)
    # Layer 2: (TB,512) @ (512,256).
    h = jnp.dot(h.astype(jnp.bfloat16), w2_ref[...],
                preferred_element_type=jnp.float32)
    h = jnp.maximum(h + b2, 0.0)
    # Layer 3: (TB,256) @ (256,128); cols 10..127 are exactly 0 (zero-padded w3/b3).
    h = jnp.dot(h.astype(jnp.bfloat16), w3_ref[...],
                preferred_element_type=jnp.float32)
    h = jnp.maximum(h + b3, 0.0)
    # Layer 4 (10 -> 1): VPU multiply + XLU lane reduction; padded lanes contribute 0.
    o_ref[...] = jnp.sum(h * w4, axis=-1, keepdims=True) + b4


@jax.jit
def net_forward(x, packed):
    """x: [B, 1000] f32. packed: output of pack_params()."""
    w1p, w2p, w3p, small = packed
    B = x.shape[0]
    tile_b = _choose_tile_b(B)
    b_pad = tile_b * _cdiv(B, tile_b)
    # Zero-pad batch to a tile multiple and features to the lane-aligned 1024,
    # casting to bf16 in the same fused op (halves the x DMA the kernel streams).
    xp = jnp.zeros((b_pad, P_IN), jnp.bfloat16).at[:B, :D_IN].set(
        x.astype(jnp.bfloat16))

    grid_spec = pltpu.PrefetchScalarGridSpec(
        num_scalar_prefetch=0,
        grid=(b_pad // tile_b,),
        in_specs=[
            pl.BlockSpec((tile_b, P_IN), lambda i: (i, 0)),   # x tile, streamed
            pl.BlockSpec((P_IN, P_H1), lambda i: (0, 0)),     # w1, VMEM-resident
            pl.BlockSpec((P_H1, P_H2), lambda i: (0, 0)),     # w2, VMEM-resident
            pl.BlockSpec((P_H2, P_H3), lambda i: (0, 0)),     # w3, VMEM-resident
            pl.BlockSpec((8, P_H1), lambda i: (0, 0)),        # packed biases + w4/b4
        ],
        out_specs=pl.BlockSpec((tile_b, 1), lambda i: (i, 0)),
    )
    out = pl.pallas_call(
        mlp_kernel,
        out_shape=jax.ShapeDtypeStruct((b_pad, D_OUT), jnp.float32),
        grid_spec=grid_spec,
        compiler_params=pltpu.CompilerParams(
            dimension_semantics=("parallel",)),
    )(xp, w1p, w2p, w3p, small)
    return out[:B]


def init_params(key):
    """PyTorch nn.Linear default init, math layout: W [in, out], b [out]."""
    dims = [(D_IN, D_H1), (D_H1, D_H2), (D_H2, D_H3), (D_H3, D_OUT)]
    params = []
    for fan_in, fan_out in dims:
        key, kw, kb = jax.random.split(key, 3)
        bound = 1.0 / np.sqrt(fan_in)
        w = jax.random.uniform(kw, (fan_in, fan_out), jnp.float32, -bound, bound)
        b = jax.random.uniform(kb, (fan_out,), jnp.float32, -bound, bound)
        params += [w, b]
    return tuple(params)


def pack_params(params):
    """Pad to lane-aligned shapes, cast big weights to bf16, pack small operands."""
    w1, b1, w2, b2, w3, b3, w4, b4 = params
    w1p = jnp.zeros((P_IN, P_H1), jnp.bfloat16).at[:D_IN, :D_H1].set(
        w1.astype(jnp.bfloat16))
    w2p = jnp.zeros((P_H1, P_H2), jnp.bfloat16).at[:D_H1, :D_H2].set(
        w2.astype(jnp.bfloat16))
    w3p = jnp.zeros((P_H2, P_H3), jnp.bfloat16).at[:D_H2, :D_H3].set(
        w3.astype(jnp.bfloat16))
    small = jnp.zeros((8, P_H1), jnp.float32)
    small = small.at[0, :D_H1].set(b1)
    small = small.at[1, :D_H2].set(b2)
    small = small.at[2, :D_H3].set(b3)
    small = small.at[3, :D_H3].set(w4[:, 0])
    small = small.at[4, 0].set(b4[0])
    return (w1p, w2p, w3p, small)


def net_forward_ref_bf16(x, params):
    """Reference matching the kernel numerics (bf16 MXU inputs, f32 accumulate)."""
    w1, b1, w2, b2, w3, b3, w4, b4 = params

    def lin(h, w, b):
        return jnp.dot(h.astype(jnp.bfloat16), w.astype(jnp.bfloat16),
                       preferred_element_type=jnp.float32) + b

    h = jnp.maximum(lin(x, w1, b1), 0.0)
    h = jnp.maximum(lin(h, w2, b2), 0.0)
    h = jnp.maximum(lin(h, w3, b3), 0.0)
    return jnp.sum(h * w4[:, 0], axis=-1, keepdims=True) + b4


def net_forward_ref_f32(x, params):
    """Full-precision reference (the PyTorch forward semantics)."""
    w1, b1, w2, b2, w3, b3, w4, b4 = params
    hp = jax.lax.Precision.HIGHEST
    h = jnp.maximum(jnp.dot(x, w1, precision=hp) + b1, 0.0)
    h = jnp.maximum(jnp.dot(h, w2, precision=hp) + b2, 0.0)
    h = jnp.maximum(jnp.dot(h, w3, precision=hp) + b3, 0.0)
    return jnp.dot(h, w4, precision=hp) + b4


if __name__ == "__main__":
    key = jax.random.PRNGKey(0)
    key, kx = jax.random.split(key)
    # B=300 exercises the adaptive tiling (2 steps of TILE_B=160, batch pad 300->320).
    B = 300
    x = jax.random.normal(kx, (B, D_IN), dtype=jnp.float32)
    params = init_params(key)
    packed = pack_params(params)

    out = net_forward(x, packed)
    out = jax.block_until_ready(out)
    assert out.shape == (B, D_OUT)

    # Check against a reference that mirrors the kernel's bf16/f32 numerics...
    ref_bf16 = net_forward_ref_bf16(x, params)
    np.testing.assert_allclose(np.asarray(out), np.asarray(ref_bf16),
                               rtol=5e-3, atol=5e-3)
    # ...and against the full-f32 PyTorch-equivalent forward (loose tolerance,
    # since weights/activations are carried in bf16 for bandwidth).
    ref_f32 = net_forward_ref_f32(x, params)
    np.testing.assert_allclose(np.asarray(out), np.asarray(ref_f32),
                               rtol=5e-2, atol=2e-2)

    print("KERNEL_OK")
</pallas_src>

<mosaic_0001>
module attributes {stable_mosaic.version = 11 : i64} {
  func.func @mlp_kernel(%arg0: i32, %arg1: memref<160x1024xbf16, #tpu.memory_space<vmem>>, %arg2: memref<1024x512xbf16, #tpu.memory_space<vmem>>, %arg3: memref<512x256xbf16, #tpu.memory_space<vmem>>, %arg4: memref<256x128xbf16, #tpu.memory_space<vmem>>, %arg5: memref<8x512xf32, #tpu.memory_space<vmem>>, %arg6: memref<160x1xf32, #tpu.memory_space<vmem>>) attributes {dimension_semantics = [#tpu.dimension_semantics<parallel>], iteration_bounds = array<i64: 2>, scalar_prefetch = 0 : i64, scratch_operands = 0 : i64, tpu.core_type = #tpu.core_type<tc>, window_params = [{transform_indices = @transform_0, window_bounds = array<i64: 160, 1024>}, {pipeline_mode = #tpu.pipeline_mode<synchronous>, transform_indices = @transform_1, window_bounds = array<i64: 1024, 512>}, {pipeline_mode = #tpu.pipeline_mode<synchronous>, transform_indices = @transform_2, window_bounds = array<i64: 512, 256>}, {pipeline_mode = #tpu.pipeline_mode<synchronous>, transform_indices = @transform_3, window_bounds = array<i64: 256, 128>}, {pipeline_mode = #tpu.pipeline_mode<synchronous>, transform_indices = @transform_4, window_bounds = array<i64: 8, 512>}, {transform_indices = @transform_5, window_bounds = array<i64: 160, 1>}]} {
    %c0 = arith.constant 0 : index
    %c0_0 = arith.constant 0 : index
    %0 = vector.load %arg5[%c0, %c0_0] : memref<8x512xf32, #tpu.memory_space<vmem>>, vector<8x512xf32>
    %1 = vector.extract_strided_slice %0 {offsets = [0, 0], sizes = [1, 512], strides = [1, 1]} : vector<8x512xf32> to vector<1x512xf32>
    %2 = vector.extract_strided_slice %0 {offsets = [1, 0], sizes = [1, 256], strides = [1, 1]} : vector<8x512xf32> to vector<1x256xf32>
    %3 = vector.extract_strided_slice %0 {offsets = [2, 0], sizes = [1, 128], strides = [1, 1]} : vector<8x512xf32> to vector<1x128xf32>
    %4 = vector.extract_strided_slice %0 {offsets = [3, 0], sizes = [1, 128], strides = [1, 1]} : vector<8x512xf32> to vector<1x128xf32>
    %5 = vector.extract_strided_slice %0 {offsets = [4, 0], sizes = [1, 1], strides = [1, 1]} : vector<8x512xf32> to vector<1x1xf32>
    %c0_1 = arith.constant 0 : index
    %c0_2 = arith.constant 0 : index
    %6 = vector.load %arg1[%c0_1, %c0_2] : memref<160x1024xbf16, #tpu.memory_space<vmem>>, vector<160x1024xbf16>
    %c0_3 = arith.constant 0 : index
    %c0_4 = arith.constant 0 : index
    %7 = vector.load %arg2[%c0_3, %c0_4] : memref<1024x512xbf16, #tpu.memory_space<vmem>>, vector<1024x512xbf16>
    %cst = arith.constant dense<0.000000e+00> : vector<160x512xf32>
    %8 = tpu.matmul %6, %7, %cst {dimension_numbers = #tpu.dot_dimension_numbers<[1], [0], [0], [1], [0, 0, 1, 1], [], []>} : vector<160x1024xbf16>, vector<1024x512xbf16>, vector<160x512xf32> -> vector<160x512xf32>
    %9 = vector.broadcast %1 : vector<1x512xf32> to vector<160x512xf32>
    %10 = arith.addf %8, %9 : vector<160x512xf32>
    %cst_5 = arith.constant 0.000000e+00 : f32
    %11 = vector.broadcast %cst_5 : f32 to vector<160x512xf32>
    %12 = arith.maximumf %10, %11 : vector<160x512xf32>
    %13 = arith.truncf %12 : vector<160x512xf32> to vector<160x512xbf16>
    %c0_6 = arith.constant 0 : index
    %c0_7 = arith.constant 0 : index
    %14 = vector.load %arg3[%c0_6, %c0_7] : memref<512x256xbf16, #tpu.memory_space<vmem>>, vector<512x256xbf16>
    %cst_8 = arith.constant dense<0.000000e+00> : vector<160x256xf32>
    %15 = tpu.matmul %13, %14, %cst_8 {dimension_numbers = #tpu.dot_dimension_numbers<[1], [0], [0], [1], [0, 0, 1, 1], [], []>} : vector<160x512xbf16>, vector<512x256xbf16>, vector<160x256xf32> -> vector<160x256xf32>
    %16 = vector.broadcast %2 : vector<1x256xf32> to vector<160x256xf32>
    %17 = arith.addf %15, %16 : vector<160x256xf32>
    %cst_9 = arith.constant 0.000000e+00 : f32
    %18 = vector.broadcast %cst_9 : f32 to vector<160x256xf32>
    %19 = arith.maximumf %17, %18 : vector<160x256xf32>
    %20 = arith.truncf %19 : vector<160x256xf32> to vector<160x256xbf16>
    %c0_10 = arith.constant 0 : index
    %c0_11 = arith.constant 0 : index
    %21 = vector.load %arg4[%c0_10, %c0_11] : memref<256x128xbf16, #tpu.memory_space<vmem>>, vector<256x128xbf16>
    %cst_12 = arith.constant dense<0.000000e+00> : vector<160x128xf32>
    %22 = tpu.matmul %20, %21, %cst_12 {dimension_numbers = #tpu.dot_dimension_numbers<[1], [0], [0], [1], [0, 0, 1, 1], [], []>} : vector<160x256xbf16>, vector<256x128xbf16>, vector<160x128xf32> -> vector<160x128xf32>
    %23 = vector.broadcast %3 : vector<1x128xf32> to vector<160x128xf32>
    %24 = arith.addf %22, %23 : vector<160x128xf32>
    %cst_13 = arith.constant 0.000000e+00 : f32
    %25 = vector.broadcast %cst_13 : f32 to vector<160x128xf32>
    %26 = arith.maximumf %24, %25 : vector<160x128xf32>
    %27 = vector.broadcast %4 : vector<1x128xf32> to vector<160x128xf32>
    %28 = arith.mulf %26, %27 : vector<160x128xf32>
    %cst_14 = arith.constant dense<0.000000e+00> : vector<160xf32>
    %29 = vector.multi_reduction <add>, %28, %cst_14 [1] : vector<160x128xf32> to vector<160xf32>
    %30 = vector.shape_cast %29 : vector<160xf32> to vector<160x1xf32>
    %31 = vector.broadcast %5 : vector<1x1xf32> to vector<160x1xf32>
    %32 = arith.addf %30, %31 : vector<160x1xf32>
    %c0_15 = arith.constant 0 : index
    %c0_16 = arith.constant 0 : index
    %33 = vector.load %arg6[%c0_15, %c0_16] : memref<160x1xf32, #tpu.memory_space<vmem>>, vector<160x1xf32>
    tpu.vector_store %arg6[%c0_15, %c0_16], %32 {strides = array<i32>} : memref<160x1xf32, #tpu.memory_space<vmem>>, vector<160x1xf32>,
    return
  }
  func.func @transform_0(%arg0: i32) -> (i32, i32) {
    %c0_i32 = arith.constant 0 : i32
    %c0_i32_0 = arith.constant 0 : i32
    return %arg0, %c0_i32 : i32, i32
  }
  func.func @transform_1(%arg0: i32) -> (i32, i32) {
    %c0_i32 = arith.constant 0 : i32
    %c0_i32_0 = arith.constant 0 : i32
    %c0_i32_1 = arith.constant 0 : i32
    return %c0_i32, %c0_i32_0 : i32, i32
  }
  func.func @transform_2(%arg0: i32) -> (i32, i32) {
    %c0_i32 = arith.constant 0 : i32
    %c0_i32_0 = arith.constant 0 : i32
    %c0_i32_1 = arith.constant 0 : i32
    return %c0_i32, %c0_i32_0 : i32, i32
  }
  func.func @transform_3(%arg0: i32) -> (i32, i32) {
    %c0_i32 = arith.constant 0 : i32
    %c0_i32_0 = arith.constant 0 : i32
    %c0_i32_1 = arith.constant 0 : i32
    return %c0_i32, %c0_i32_0 : i32, i32
  }
  func.func @transform_4(%arg0: i32) -> (i32, i32) {
    %c0_i32 = arith.constant 0 : i32
    %c0_i32_0 = arith.constant 0 : i32
    %c0_i32_1 = arith.constant 0 : i32
    return %c0_i32, %c0_i32_0 : i32, i32
  }
  func.func @transform_5(%arg0: i32) -> (i32, i32) {
    %c0_i32 = arith.constant 0 : i32
    %c0_i32_0 = arith.constant 0 : i32
    return %arg0, %c0_i32 : i32, i32
  }
}

</mosaic_0001>

<llo_original>
// kernel: net_forward.1
$region0: #{net_forward.1}
  #allocation0 [shape = 'u32[]', space=smem, size = 0x4, offset = 0x4, fixed_abs, tag = 'smem constant byte address 0x4 - core index']
  #allocation1 [shape = 'u32[144,128]{1,0:T(1,128)}', space=vmem, size = 0x12000, scoped, tag = 'internal scratch']
  %s0 = inlined_call_operand.vmem [shape: bf16[320,1024], index: 0, kind: input, shape index: {}]
  %s1 = inlined_call_operand.vmem [shape: bf16[1024,512], index: 1, kind: input, shape index: {}]
  %s2 = inlined_call_operand.vmem [shape: bf16[512,256], index: 2, kind: input, shape index: {}]
  %s3 = inlined_call_operand.vmem [shape: bf16[256,128], index: 3, kind: input, shape index: {}]
  %s4 = inlined_call_operand.vmem [shape: f32[8,512], index: 4, kind: input, shape index: {}]
  %s5 = inlined_call_operand.vmem [shape: f32[320,1], index: 5, kind: output, shape index: {}]
  %s6 = sld [smem:[#allocation0]]
  $region53: #{net_forward.1} parent=0
    _
  %s8 = ssub.s32 1, %s6
  %s9 = scalar_select 0, %s8, %s6
  loop: start=0, step=1, limit=4
  $region2: #{net_forward.1} parent=0 // loop_pre_header
    _
  $region3: #{net_forward.1} parent=0 // loop_header
    %s11 = sphi 0, %s15
    %p12 = scmp.ge.s32.totalorder %s11, 4
    %s21 = sphi 0, %s23
    %s24 = sphi 0, %s21
    %s25 = sphi 0, %s24
    %s41 = sphi 0, %s25
    %s45 = sphi 0, %s45
    %s47 = sphi 0, %s45
    %s48 = sphi 0, %s47
    %s62 = sphi 0, %s48
    %s66 = sphi 0, %s66
    %s68 = sphi 0, %s66
    %s69 = sphi 0, %s68
    %s83 = sphi 0, %s69
    %s87 = sphi 0, %s87
    %s89 = sphi 0, %s87
    %s90 = sphi 0, %s89
    %s104 = sphi 0, %s90
    %s108 = sphi 0, %s108
    %s110 = sphi 0, %s108
    %s111 = sphi 0, %s110
    %s125 = sphi 0, %s111
    %s131 = sphi 0, %s133
    %s134 = sphi 0, %s131
    %s135 = sphi 0, %s134
    %s151 = sphi 0, %s135
  $region4: #{net_forward.1} parent=0 // loop_header_branch
    %14 = sbr.rel (%p12) target = $region8
  $region5: #{net_forward.1} parent=0 // loop_body
    %s16 = ssub.s32 %s11, 1
    %s17 = ssub.s32 %s11, 2
    %s18 = sadd.s32 %s11, 1
    %s19 = ssub.s32 %s11, %s18
    %p20 = scmp.eq.s32.totalorder %s19, 0
    %s22 = sadd.s32 %s21, 1
    %s23 = scalar_select %p20, %s21, %s22
    %p26 = pneg %p20
    %p27 = scmp.eq.s32.totalorder %s11, 1
    %p28 = por %p26, %p27
    %p29 = scmp.ne.s32.totalorder %s21, %s24
    %p30 = scmp.eq.s32.totalorder %s11, 0
    %p31 = por %p29, %p30
    %p32 = scmp.ne.s32.totalorder %s21, %s24
    %p33 = scmp.eq.s32.totalorder %s16, 1
    %p34 = por %p32, %p33
    %p35 = scmp.ne.s32.totalorder %s24, %s25
    %p36 = scmp.eq.s32.totalorder %s16, 0
    %p37 = por %p35, %p36
    %p38 = scmp.ne.s32.totalorder %s24, %s25
    %p39 = scmp.eq.s32.totalorder %s17, 1
    %p40 = por %p38, %p39
    %p42 = scmp.ne.s32.totalorder %s25, %s41
    %p43 = scmp.eq.s32.totalorder %s17, 0
    %p44 = por %p42, %p43
    %s46 = sadd.s32 %s45, 1
    %p49 = scmp.eq.s32.totalorder %s11, 1
    %p50 = scmp.ne.s32.totalorder %s45, %s47
    %p51 = scmp.eq.s32.totalorder %s11, 0
    %p52 = por %p50, %p51
    %p53 = scmp.ne.s32.totalorder %s45, %s47
    %p54 = scmp.eq.s32.totalorder %s16, 1
    %p55 = por %p53, %p54
    %p56 = scmp.ne.s32.totalorder %s47, %s48
    %p57 = scmp.eq.s32.totalorder %s16, 0
    %p58 = por %p56, %p57
    %p59 = scmp.ne.s32.totalorder %s47, %s48
    %p60 = scmp.eq.s32.totalorder %s17, 1
    %p61 = por %p59, %p60
    %p63 = scmp.ne.s32.totalorder %s48, %s62
    %p64 = scmp.eq.s32.totalorder %s17, 0
    %p65 = por %p63, %p64
    %s67 = sadd.s32 %s66, 1
    %p70 = scmp.eq.s32.totalorder %s11, 1
    %p71 = scmp.ne.s32.totalorder %s66, %s68
    %p72 = scmp.eq.s32.totalorder %s11, 0
    %p73 = por %p71, %p72
    %p74 = scmp.ne.s32.totalorder %s66, %s68
    %p75 = scmp.eq.s32.totalorder %s16, 1
    %p76 = por %p74, %p75
    %p77 = scmp.ne.s32.totalorder %s68, %s69
    %p78 = scmp.eq.s32.totalorder %s16, 0
    %p79 = por %p77, %p78
    %p80 = scmp.ne.s32.totalorder %s68, %s69
    %p81 = scmp.eq.s32.totalorder %s17, 1
    %p82 = por %p80, %p81
    %p84 = scmp.ne.s32.totalorder %s69, %s83
    %p85 = scmp.eq.s32.totalorder %s17, 0
    %p86 = por %p84, %p85
    %s88 = sadd.s32 %s87, 1
    %p91 = scmp.eq.s32.totalorder %s11, 1
    %p92 = scmp.ne.s32.totalorder %s87, %s89
    %p93 = scmp.eq.s32.totalorder %s11, 0
    %p94 = por %p92, %p93
    %p95 = scmp.ne.s32.totalorder %s87, %s89
    %p96 = scmp.eq.s32.totalorder %s16, 1
    %p97 = por %p95, %p96
    %p98 = scmp.ne.s32.totalorder %s89, %s90
    %p99 = scmp.eq.s32.totalorder %s16, 0
    %p100 = por %p98, %p99
    %p101 = scmp.ne.s32.totalorder %s89, %s90
    %p102 = scmp.eq.s32.totalorder %s17, 1
    %p103 = por %p101, %p102
    %p105 = scmp.ne.s32.totalorder %s90, %s104
    %p106 = scmp.eq.s32.totalorder %s17, 0
    %p107 = por %p105, %p106
    %s109 = sadd.s32 %s108, 1
    %p112 = scmp.eq.s32.totalorder %s11, 1
    %p113 = scmp.ne.s32.totalorder %s108, %s110
    %p114 = scmp.eq.s32.totalorder %s11, 0
    %p115 = por %p113, %p114
    %p116 = scmp.ne.s32.totalorder %s108, %s110
    %p117 = scmp.eq.s32.totalorder %s16, 1
    %p118 = por %p116, %p117
    %p119 = scmp.ne.s32.totalorder %s110, %s111
    %p120 = scmp.eq.s32.totalorder %s16, 0
    %p121 = por %p119, %p120
    %p122 = scmp.ne.s32.totalorder %s110, %s111
    %p123 = scmp.eq.s32.totalorder %s17, 1
    %p124 = por %p122, %p123
    %p126 = scmp.ne.s32.totalorder %s111, %s125
    %p127 = scmp.eq.s32.totalorder %s17, 0
    %p128 = por %p126, %p127
    %s129 = ssub.s32 %s11, %s18
    %p130 = scmp.eq.s32.totalorder %s129, 0
    %s132 = sadd.s32 %s131, 1
    %s133 = scalar_select %p130, %s131, %s132
    %p136 = pneg %p130
    %p137 = scmp.eq.s32.totalorder %s11, 1
    %p138 = por %p136, %p137
    %p139 = scmp.ne.s32.totalorder %s131, %s134
    %p140 = scmp.eq.s32.totalorder %s11, 0
    %p141 = por %p139, %p140
    %p142 = scmp.ne.s32.totalorder %s131, %s134
    %p143 = scmp.eq.s32.totalorder %s16, 1
    %p144 = por %p142, %p143
    %p145 = scmp.ne.s32.totalorder %s134, %s135
    %p146 = scmp.eq.s32.totalorder %s16, 0
    %p147 = por %p145, %p146
    %p148 = scmp.ne.s32.totalorder %s134, %s135
    %p149 = scmp.eq.s32.totalorder %s17, 1
    %p150 = por %p148, %p149
    %p152 = scmp.ne.s32.totalorder %s135, %s151
    %p153 = scmp.eq.s32.totalorder %s17, 0
    %p154 = por %p152, %p153
    %p155 = scmp.le.s32.totalorder 1, %s11
    %p156 = scmp.lt.s32.totalorder %s11, 3
    %p157 = pnand %p155, %p156
    %p158 = pneg %p157
    // Predicated region
    $region9: #{net_forward.1} parent=5 // pred_check
      _
    $region10: #{net_forward.1} parent=5 // pred_check_branch
      %160 = sbr.rel (%p157) target = $region12
    $region11: #{net_forward.1} parent=5 // pred_region
      %s161 = ssub.s32 %s11, 1
      // Predicated region
      $region13: #{net_forward.1} parent=11 // pred_check
        %p162 = pneg %p58
      $region14: #{net_forward.1} parent=11 // pred_check_branch
        %164 = sbr.rel (%p162) target = $region16
      $region15: #{net_forward.1} parent=11 // pred_region
        _
      $region16: #{net_forward.1} parent=11 // pred_fallthru
        _
      // Predicated region
      $region17: #{net_forward.1} parent=11 // pred_check
        %p165 = pneg %p79
      $region18: #{net_forward.1} parent=11 // pred_check_branch
        %167 = sbr.rel (%p165) target = $region20
      $region19: #{net_forward.1} parent=11 // pred_region
        _
      $region20: #{net_forward.1} parent=11 // pred_fallthru
        _
      // Predicated region
      $region21: #{net_forward.1} parent=11 // pred_check
        %p168 = pneg %p100
      $region22: #{net_forward.1} parent=11 // pred_check_branch
        %170 = sbr.rel (%p168) target = $region24
      $region23: #{net_forward.1} parent=11 // pred_region
        _
      $region24: #{net_forward.1} parent=11 // pred_fallthru
        _
      // Predicated region
      $region25: #{net_forward.1} parent=11 // pred_check
        %p171 = pneg %p121
      $region26: #{net_forward.1} parent=11 // pred_check_branch
        %173 = sbr.rel (%p171) target = $region28
      $region27: #{net_forward.1} parent=11 // pred_region
        _
      $region28: #{net_forward.1} parent=11 // pred_fallthru
        _
    $region12: #{net_forward.1} parent=5 // pred_fallthru
      _
    %p174 = scmp.lt.s32.totalorder %s11, 2
    // Predicated region
    $region29: #{net_forward.1} parent=5 // pred_check
      %p175 = pneg %p174
    $region30: #{net_forward.1} parent=5 // pred_check_branch
      %177 = sbr.rel (%p175) target = $region32
    $region31: #{net_forward.1} parent=5 // pred_region
      // Predicated region
      $region33: #{net_forward.1} parent=31 // pred_check
        %p178 = pneg %p31
      $region34: #{net_forward.1} parent=31 // pred_check_branch
        %180 = sbr.rel (%p178) target = $region36
      $region35: #{net_forward.1} parent=31 // pred_region
        %s181 = smul.u32 20, %s11
        %p182 = scmp.lt.s32.totalorder %s181, 39
        %s183 = scalar_select %p182, %s181, 39
        %s184 = smul.addr %s183, 8
        %s185 = smul.addr %s184, 4
        %s186 = scalar_lea.vmem %s0, %s185
        %s187 = smul.u32 20, %s11
      $region36: #{net_forward.1} parent=31 // pred_fallthru
        _
    $region32: #{net_forward.1} parent=5 // pred_fallthru
      _
    %p188 = scmp.le.s32.totalorder 1, %s11
    %p189 = scmp.lt.s32.totalorder %s11, 3
    %p190 = pnand %p188, %p189
    %p191 = pneg %p190
    // Predicated region
    $region37: #{net_forward.1} parent=5 // pred_check
      _
    $region38: #{net_forward.1} parent=5 // pred_check_branch
      %193 = sbr.rel (%p190) target = $region40
    $region39: #{net_forward.1} parent=5 // pred_region
      %s194 = ssub.s32 %s11, 1
      %s195 = smul.u32 20, %s16
      %p196 = scmp.lt.s32.totalorder %s195, 39
      %s197 = scalar_select %p196, %s195, 39
      %s198 = smul.addr %s197, 8
      %s199 = smul.addr %s198, 4
      %s200 = scalar_lea.vmem %s0, %s199
      %p201 = pneg %p37
      %p202 = pneg %p34
      %p203 = pneg %p58
      %p204 = pneg %p55
      %p205 = pneg %p79
      %p206 = pneg %p76
      %p207 = pneg %p100
      %p208 = pneg %p97
      %p209 = pneg %p121
      %p210 = pneg %p118
      %p211 = pneg %p147
      %p212 = pneg %p144
      %s213 = smul.u32 20, %s16
      %p214 = scmp.lt.s32.totalorder %s213, 39
      %s215 = scalar_select %p214, %s213, 39
      %s216 = smul.addr %s215, 8
      %s217 = scalar_lea.vmem %s5, %s216
      %s218 = smul.u32 20, %s16
      %p219 = scmp.lt.s32.totalorder %s218, 39
      %s220 = scalar_select %p219, %s218, 39
      %s221 = smul.addr %s220, 8
      %s222 = smul.addr %s221, 4
      %s223 = scalar_lea.vmem %s0, %s222
      %s224 = smul.u32 20, %s16
      %s225 = smul.u32 20, %s16
      %p226 = scmp.lt.s32.totalorder %s225, 39
      %s227 = scalar_select %p226, %s225, 39
      %s228 = smul.addr %s227, 8
      %s229 = scalar_lea.vmem %s5, %s228
      %s230 = smul.u32 20, %s16
      %v232 = vld [vmem:[%s4] sm:$0xff]
      %v233 = vld [vmem:[%s4 + $0x8] sm:$0xff]
      %v234 = vld [vmem:[%s4 + $0x10] sm:$0xff]
      %v235 = vld [vmem:[%s4 + $0x18] sm:$0xff]
      %v236 = vld [vmem:[%s223] sm:$0xff]
      %v237 = vld [vmem:[%s223 + $0x8] sm:$0xff]
      %v238 = vld [vmem:[%s223 + $0x10] sm:$0xff]
      %v239 = vld [vmem:[%s223 + $0x18] sm:$0xff]
      %v240 = vld [vmem:[%s223 + $0x20] sm:$0xff]
      %v241 = vld [vmem:[%s223 + $0x28] sm:$0xff]
      %v242 = vld [vmem:[%s223 + $0x30] sm:$0xff]
      %v243 = vld [vmem:[%s223 + $0x38] sm:$0xff]
      %v244 = vld [vmem:[%s223 + $0x40] sm:$0xff]
      %v245 = vld [vmem:[%s223 + $0x48] sm:$0xff]
      %v246 = vld [vmem:[%s223 + $0x50] sm:$0xff]
      %v247 = vld [vmem:[%s223 + $0x58] sm:$0xff]
      %v248 = vld [vmem:[%s223 + $0x60] sm:$0xff]
      %v249 = vld [vmem:[%s223 + $0x68] sm:$0xff]
      %v250 = vld [vmem:[%s223 + $0x70] sm:$0xff]
      %v251 = vld [vmem:[%s223 + $0x78] sm:$0xff]
      %v252 = vld [vmem:[%s223 + $0x80] sm:$0xff]
      %v253 = vld [vmem:[%s223 + $0x88] sm:$0xff]
      %v254 = vld [vmem:[%s223 + $0x90] sm:$0xff]
      %v255 = vld [vmem:[%s223 + $0x98] sm:$0xff]
      %v256 = vld [vmem:[%s223 + $0xa0] sm:$0xff]
      %v257 = vld [vmem:[%s223 + $0xa8] sm:$0xff]
      %v258 = vld [vmem:[%s223 + $0xb0] sm:$0xff]
      %v259 = vld [vmem:[%s223 + $0xb8] sm:$0xff]
      %v260 = vld [vmem:[%s223 + $0xc0] sm:$0xff]
      %v261 = vld [vmem:[%s223 + $0xc8] sm:$0xff]
      %v262 = vld [vmem:[%s223 + $0xd0] sm:$0xff]
      %v263 = vld [vmem:[%s223 + $0xd8] sm:$0xff]
      %v264 = vld [vmem:[%s223 + $0xe0] sm:$0xff]
      %v265 = vld [vmem:[%s223 + $0xe8] sm:$0xff]
      %v266 = vld [vmem:[%s223 + $0xf0] sm:$0xff]
      %v267 = vld [vmem:[%s223 + $0xf8] sm:$0xff]
      %v268 = vld [vmem:[%s223 + $0x100] sm:$0xff]
      %v269 = vld [vmem:[%s223 + $0x108] sm:$0xff]
      %v270 = vld [vmem:[%s223 + $0x110] sm:$0xff]
      %v271 = vld [vmem:[%s223 + $0x118] sm:$0xff]
      %v272 = vld [vmem:[%s223 + $0x120] sm:$0xff]
      %v273 = vld [vmem:[%s223 + $0x128] sm:$0xff]
      %v274 = vld [vmem:[%s223 + $0x130] sm:$0xff]
      %v275 = vld [vmem:[%s223 + $0x138] sm:$0xff]
      %v276 = vld [vmem:[%s223 + $0x140] sm:$0xff]
      %v277 = vld [vmem:[%s223 + $0x148] sm:$0xff]
      %v278 = vld [vmem:[%s223 + $0x150] sm:$0xff]
      %v279 = vld [vmem:[%s223 + $0x158] sm:$0xff]
      %v280 = vld [vmem:[%s223 + $0x160] sm:$0xff]
      %v281 = vld [vmem:[%s223 + $0x168] sm:$0xff]
      %v282 = vld [vmem:[%s223 + $0x170] sm:$0xff]
      %v283 = vld [vmem:[%s223 + $0x178] sm:$0xff]
      %v284 = vld [vmem:[%s223 + $0x180] sm:$0xff]
      %v285 = vld [vmem:[%s223 + $0x188] sm:$0xff]
      %v286 = vld [vmem:[%s223 + $0x190] sm:$0xff]
      %v287 = vld [vmem:[%s223 + $0x198] sm:$0xff]
      %v288 = vld [vmem:[%s223 + $0x1a0] sm:$0xff]
      %v289 = vld [vmem:[%s223 + $0x1a8] sm:$0xff]
      %v290 = vld [vmem:[%s223 + $0x1b0] sm:$0xff]
      %v291 = vld [vmem:[%s223 + $0x1b8] sm:$0xff]
      %v292 = vld [vmem:[%s223 + $0x1c0] sm:$0xff]
      %v293 = vld [vmem:[%s223 + $0x1c8] sm:$0xff]
      %v294 = vld [vmem:[%s223 + $0x1d0] sm:$0xff]
      %v295 = vld [vmem:[%s223 + $0x1d8] sm:$0xff]
      %v296 = vld [vmem:[%s223 + $0x1e0] sm:$0xff]
      %v297 = vld [vmem:[%s223 + $0x1e8] sm:$0xff]
      %v298 = vld [vmem:[%s223 + $0x1f0] sm:$0xff]
      %v299 = vld [vmem:[%s223 + $0x1f8] sm:$0xff]
      %v300 = vld [vmem:[%s223 + $0x200] sm:$0xff]
      %v301 = vld [vmem:[%s223 + $0x208] sm:$0xff]
      %v302 = vld [vmem:[%s223 + $0x210] sm:$0xff]
      %v303 = vld [vmem:[%s223 + $0x218] sm:$0xff]
      %v304 = vld [vmem:[%s223 + $0x220] sm:$0xff]
      %v305 = vld [vmem:[%s223 + $0x228] sm:$0xff]
      %v306 = vld [vmem:[%s223 + $0x230] sm:$0xff]
      %v307 = vld [vmem:[%s223 + $0x238] sm:$0xff]
      %v308 = vld [vmem:[%s223 + $0x240] sm:$0xff]
      %v309 = vld [vmem:[%s223 + $0x248] sm:$0xff]
      %v310 = vld [vmem:[%s223 + $0x250] sm:$0xff]
      %v311 = vld [vmem:[%s223 + $0x258] sm:$0xff]
      %v312 = vld [vmem:[%s223 + $0x260] sm:$0xff]
      %v313 = vld [vmem:[%s223 + $0x268] sm:$0xff]
      %v314 = vld [vmem:[%s223 + $0x270] sm:$0xff]
      %v315 = vld [vmem:[%s223 + $0x278] sm:$0xff]
      %v316 = vld [vmem:[%s1] sm:$0xff]
      %v317 = vld [vmem:[%s1 + $0x8] sm:$0xff]
      %v318 = vld [vmem:[%s1 + $0x10] sm:$0xff]
      %v319 = vld [vmem:[%s1 + $0x18] sm:$0xff]
      %v320 = vld [vmem:[%s1 + $0x20] sm:$0xff]
      %v321 = vld [vmem:[%s1 + $0x28] sm:$0xff]
      %v322 = vld [vmem:[%s1 + $0x30] sm:$0xff]
      %v323 = vld [vmem:[%s1 + $0x38] sm:$0xff]
      %v324 = vld [vmem:[%s1 + $0x40] sm:$0xff]
      %v325 = vld [vmem:[%s1 + $0x48] sm:$0xff]
      %v326 = vld [vmem:[%s1 + $0x50] sm:$0xff]
      %v327 = vld [vmem:[%s1 + $0x58] sm:$0xff]
      %v328 = vld [vmem:[%s1 + $0x60] sm:$0xff]
      %v329 = vld [vmem:[%s1 + $0x68] sm:$0xff]
      %v330 = vld [vmem:[%s1 + $0x70] sm:$0xff]
      %v331 = vld [vmem:[%s1 + $0x78] sm:$0xff]
      %v332 = vld [vmem:[%s1 + $0x80] sm:$0xff]
      %v333 = vld [vmem:[%s1 + $0x88] sm:$0xff]
      %v334 = vld [vmem:[%s1 + $0x90] sm:$0xff]
      %v335 = vld [vmem:[%s1 + $0x98] sm:$0xff]
      %v336 = vld [vmem:[%s1 + $0xa0] sm:$0xff]
      %v337 = vld [vmem:[%s1 + $0xa8] sm:$0xff]
      %v338 = vld [vmem:[%s1 + $0xb0] sm:$0xff]
      %v339 = vld [vmem:[%s1 + $0xb8] sm:$0xff]
      %v340 = vld [vmem:[%s1 + $0xc0] sm:$0xff]
      %v341 = vld [vmem:[%s1 + $0xc8] sm:$0xff]
      %v342 = vld [vmem:[%s1 + $0xd0] sm:$0xff]
      %v343 = vld [vmem:[%s1 + $0xd8] sm:$0xff]
      %v344 = vld [vmem:[%s1 + $0xe0] sm:$0xff]
      %v345 = vld [vmem:[%s1 + $0xe8] sm:$0xff]
      %v346 = vld [vmem:[%s1 + $0xf0] sm:$0xff]
      %v347 = vld [vmem:[%s1 + $0xf8] sm:$0xff]
      %v348 = vld [vmem:[%s1 + $0x100] sm:$0xff]
      %v349 = vld [vmem:[%s1 + $0x108] sm:$0xff]
      %v350 = vld [vmem:[%s1 + $0x110] sm:$0xff]
      %v351 = vld [vmem:[%s1 + $0x118] sm:$0xff]
      %v352 = vld [vmem:[%s1 + $0x120] sm:$0xff]
      %v353 = vld [vmem:[%s1 + $0x128] sm:$0xff]
      %v354 = vld [vmem:[%s1 + $0x130] sm:$0xff]
      %v355 = vld [vmem:[%s1 + $0x138] sm:$0xff]
      %v356 = vld [vmem:[%s1 + $0x140] sm:$0xff]
      %v357 = vld [vmem:[%s1 + $0x148] sm:$0xff]
      %v358 = vld [vmem:[%s1 + $0x150] sm:$0xff]
      %v359 = vld [vmem:[%s1 + $0x158] sm:$0xff]
      %v360 = vld [vmem:[%s1 + $0x160] sm:$0xff]
      %v361 = vld [vmem:[%s1 + $0x168] sm:$0xff]
      %v362 = vld [vmem:[%s1 + $0x170] sm:$0xff]
      %v363 = vld [vmem:[%s1 + $0x178] sm:$0xff]
      %v364 = vld [vmem:[%s1 + $0x180] sm:$0xff]
      %v365 = vld [vmem:[%s1 + $0x188] sm:$0xff]
      %v366 = vld [vmem:[%s1 + $0x190] sm:$0xff]
      %v367 = vld [vmem:[%s1 + $0x198] sm:$0xff]
      %v368 = vld [vmem:[%s1 + $0x1a0] sm:$0xff]
      %v369 = vld [vmem:[%s1 + $0x1a8] sm:$0xff]
      %v370 = vld [vmem:[%s1 + $0x1b0] sm:$0xff]
      %v371 = vld [vmem:[%s1 + $0x1b8] sm:$0xff]
      %v372 = vld [vmem:[%s1 + $0x1c0] sm:$0xff]
      %v373 = vld [vmem:[%s1 + $0x1c8] sm:$0xff]
      %v374 = vld [vmem:[%s1 + $0x1d0] sm:$0xff]
      %v375 = vld [vmem:[%s1 + $0x1d8] sm:$0xff]
      %v376 = vld [vmem:[%s1 + $0x1e0] sm:$0xff]
      %v377 = vld [vmem:[%s1 + $0x1e8] sm:$0xff]
      %v378 = vld [vmem:[%s1 + $0x1f0] sm:$0xff]
      %v379 = vld [vmem:[%s1 + $0x1f8] sm:$0xff]
      %v380 = vld [vmem:[%s1 + $0x200] sm:$0xff]
      %v381 = vld [vmem:[%s1 + $0x208] sm:$0xff]
      %v382 = vld [vmem:[%s1 + $0x210] sm:$0xff]
      %v383 = vld [vmem:[%s1 + $0x218] sm:$0xff]
      %v384 = vld [vmem:[%s1 + $0x220] sm:$0xff]
      %v385 = vld [vmem:[%s1 + $0x228] sm:$0xff]
      %v386 = vld [vmem:[%s1 + $0x230] sm:$0xff]
      %v387 = vld [vmem:[%s1 + $0x238] sm:$0xff]
      %v388 = vld [vmem:[%s1 + $0x240] sm:$0xff]
      %v389 = vld [vmem:[%s1 + $0x248] sm:$0xff]
      %v390 = vld [vmem:[%s1 + $0x250] sm:$0xff]
      %v391 = vld [vmem:[%s1 + $0x258] sm:$0xff]
      %v392 = vld [vmem:[%s1 + $0x260] sm:$0xff]
      %v393 = vld [vmem:[%s1 + $0x268] sm:$0xff]
      %v394 = vld [vmem:[%s1 + $0x270] sm:$0xff]
      %v395 = vld [vmem:[%s1 + $0x278] sm:$0xff]
      %v396 = vld [vmem:[%s1 + $0x280] sm:$0xff]
      %v397 = vld [vmem:[%s1 + $0x288] sm:$0xff]
      %v398 = vld [vmem:[%s1 + $0x290] sm:$0xff]
      %v399 = vld [vmem:[%s1 + $0x298] sm:$0xff]
      %v400 = vld [vmem:[%s1 + $0x2a0] sm:$0xff]
      %v401 = vld [vmem:[%s1 + $0x2a8] sm:$0xff]
      %v402 = vld [vmem:[%s1 + $0x2b0] sm:$0xff]
      %v403 = vld [vmem:[%s1 + $0x2b8] sm:$0xff]
      %v404 = vld [vmem:[%s1 + $0x2c0] sm:$0xff]
      %v405 = vld [vmem:[%s1 + $0x2c8] sm:$0xff]
      %v406 = vld [vmem:[%s1 + $0x2d0] sm:$0xff]
      %v407 = vld [vmem:[%s1 + $0x2d8] sm:$0xff]
      %v408 = vld [vmem:[%s1 + $0x2e0] sm:$0xff]
      %v409 = vld [vmem:[%s1 + $0x2e8] sm:$0xff]
      %v410 = vld [vmem:[%s1 + $0x2f0] sm:$0xff]
      %v411 = vld [vmem:[%s1 + $0x2f8] sm:$0xff]
      %v412 = vld [vmem:[%s1 + $0x300] sm:$0xff]
      %v413 = vld [vmem:[%s1 + $0x308] sm:$0xff]
      %v414 = vld [vmem:[%s1 + $0x310] sm:$0xff]
      %v415 = vld [vmem:[%s1 + $0x318] sm:$0xff]
      %v416 = vld [vmem:[%s1 + $0x320] sm:$0xff]
      %v417 = vld [vmem:[%s1 + $0x328] sm:$0xff]
      %v418 = vld [vmem:[%s1 + $0x330] sm:$0xff]
      %v419 = vld [vmem:[%s1 + $0x338] sm:$0xff]
      %v420 = vld [vmem:[%s1 + $0x340] sm:$0xff]
      %v421 = vld [vmem:[%s1 + $0x348] sm:$0xff]
      %v422 = vld [vmem:[%s1 + $0x350] sm:$0xff]
      %v423 = vld [vmem:[%s1 + $0x358] sm:$0xff]
      %v424 = vld [vmem:[%s1 + $0x360] sm:$0xff]
      %v425 = vld [vmem:[%s1 + $0x368] sm:$0xff]
      %v426 = vld [vmem:[%s1 + $0x370] sm:$0xff]
      %v427 = vld [vmem:[%s1 + $0x378] sm:$0xff]
      %v428 = vld [vmem:[%s1 + $0x380] sm:$0xff]
      %v429 = vld [vmem:[%s1 + $0x388] sm:$0xff]
      %v430 = vld [vmem:[%s1 + $0x390] sm:$0xff]
      %v431 = vld [vmem:[%s1 + $0x398] sm:$0xff]
      %v432 = vld [vmem:[%s1 + $0x3a0] sm:$0xff]
      %v433 = vld [vmem:[%s1 + $0x3a8] sm:$0xff]
      %v434 = vld [vmem:[%s1 + $0x3b0] sm:$0xff]
      %v435 = vld [vmem:[%s1 + $0x3b8] sm:$0xff]
      %v436 = vld [vmem:[%s1 + $0x3c0] sm:$0xff]
      %v437 = vld [vmem:[%s1 + $0x3c8] sm:$0xff]
      %v438 = vld [vmem:[%s1 + $0x3d0] sm:$0xff]
      %v439 = vld [vmem:[%s1 + $0x3d8] sm:$0xff]
      %v440 = vld [vmem:[%s1 + $0x3e0] sm:$0xff]
      %v441 = vld [vmem:[%s1 + $0x3e8] sm:$0xff]
      %v442 = vld [vmem:[%s1 + $0x3f0] sm:$0xff]
      %v443 = vld [vmem:[%s1 + $0x3f8] sm:$0xff]
      %v444 = vld [vmem:[%s1 + $0x400] sm:$0xff]
      %v445 = vld [vmem:[%s1 + $0x408] sm:$0xff]
      %v446 = vld [vmem:[%s1 + $0x410] sm:$0xff]
      %v447 = vld [vmem:[%s1 + $0x418] sm:$0xff]
      %v448 = vld [vmem:[%s1 + $0x420] sm:$0xff]
      %v449 = vld [vmem:[%s1 + $0x428] sm:$0xff]
      %v450 = vld [vmem:[%s1 + $0x430] sm:$0xff]
      %v451 = vld [vmem:[%s1 + $0x438] sm:$0xff]
      %v452 = vld [vmem:[%s1 + $0x440] sm:$0xff]
      %v453 = vld [vmem:[%s1 + $0x448] sm:$0xff]
      %v454 = vld [vmem:[%s1 + $0x450] sm:$0xff]
      %v455 = vld [vmem:[%s1 + $0x458] sm:$0xff]
      %v456 = vld [vmem:[%s1 + $0x460] sm:$0xff]
      %v457 = vld [vmem:[%s1 + $0x468] sm:$0xff]
      %v458 = vld [vmem:[%s1 + $0x470] sm:$0xff]
      %v459 = vld [vmem:[%s1 + $0x478] sm:$0xff]
      %v460 = vld [vmem:[%s1 + $0x480] sm:$0xff]
      %v461 = vld [vmem:[%s1 + $0x488] sm:$0xff]
      %v462 = vld [vmem:[%s1 + $0x490] sm:$0xff]
      %v463 = vld [vmem:[%s1 + $0x498] sm:$0xff]
      %v464 = vld [vmem:[%s1 + $0x4a0] sm:$0xff]
      %v465 = vld [vmem:[%s1 + $0x4a8] sm:$0xff]
      %v466 = vld [vmem:[%s1 + $0x4b0] sm:$0xff]
      %v467 = vld [vmem:[%s1 + $0x4b8] sm:$0xff]
      %v468 = vld [vmem:[%s1 + $0x4c0] sm:$0xff]
      %v469 = vld [vmem:[%s1 + $0x4c8] sm:$0xff]
      %v470 = vld [vmem:[%s1 + $0x4d0] sm:$0xff]
      %v471 = vld [vmem:[%s1 + $0x4d8] sm:$0xff]
      %v472 = vld [vmem:[%s1 + $0x4e0] sm:$0xff]
      %v473 = vld [vmem:[%s1 + $0x4e8] sm:$0xff]
      %v474 = vld [vmem:[%s1 + $0x4f0] sm:$0xff]
      %v475 = vld [vmem:[%s1 + $0x4f8] sm:$0xff]
      %v476 = vld [vmem:[%s1 + $0x500] sm:$0xff]
      %v477 = vld [vmem:[%s1 + $0x508] sm:$0xff]
      %v478 = vld [vmem:[%s1 + $0x510] sm:$0xff]
      %v479 = vld [vmem:[%s1 + $0x518] sm:$0xff]
      %v480 = vld [vmem:[%s1 + $0x520] sm:$0xff]
      %v481 = vld [vmem:[%s1 + $0x528] sm:$0xff]
      %v482 = vld [vmem:[%s1 + $0x530] sm:$0xff]
      %v483 = vld [vmem:[%s1 + $0x538] sm:$0xff]
      %v484 = vld [vmem:[%s1 + $0x540] sm:$0xff]
      %v485 = vld [vmem:[%s1 + $0x548] sm:$0xff]
      %v486 = vld [vmem:[%s1 + $0x550] sm:$0xff]
      %v487 = vld [vmem:[%s1 + $0x558] sm:$0xff]
      %v488 = vld [vmem:[%s1 + $0x560] sm:$0xff]
      %v489 = vld [vmem:[%s1 + $0x568] sm:$0xff]
      %v490 = vld [vmem:[%s1 + $0x570] sm:$0xff]
      %v491 = vld [vmem:[%s1 + $0x578] sm:$0xff]
      %v492 = vld [vmem:[%s1 + $0x580] sm:$0xff]
      %v493 = vld [vmem:[%s1 + $0x588] sm:$0xff]
      %v494 = vld [vmem:[%s1 + $0x590] sm:$0xff]
      %v495 = vld [vmem:[%s1 + $0x598] sm:$0xff]
      %v496 = vld [vmem:[%s1 + $0x5a0] sm:$0xff]
      %v497 = vld [vmem:[%s1 + $0x5a8] sm:$0xff]
      %v498 = vld [vmem:[%s1 + $0x5b0] sm:$0xff]
      %v499 = vld [vmem:[%s1 + $0x5b8] sm:$0xff]
      %v500 = vld [vmem:[%s1 + $0x5c0] sm:$0xff]
      %v501 = vld [vmem:[%s1 + $0x5c8] sm:$0xff]
      %v502 = vld [vmem:[%s1 + $0x5d0] sm:$0xff]
      %v503 = vld [vmem:[%s1 + $0x5d8] sm:$0xff]
      %v504 = vld [vmem:[%s1 + $0x5e0] sm:$0xff]
      %v505 = vld [vmem:[%s1 + $0x5e8] sm:$0xff]
      %v506 = vld [vmem:[%s1 + $0x5f0] sm:$0xff]
      %v507 = vld [vmem:[%s1 + $0x5f8] sm:$0xff]
      %v508 = vld [vmem:[%s1 + $0x600] sm:$0xff]
      %v509 = vld [vmem:[%s1 + $0x608] sm:$0xff]
      %v510 = vld [vmem:[%s1 + $0x610] sm:$0xff]
      %v511 = vld [vmem:[%s1 + $0x618] sm:$0xff]
      %v512 = vld [vmem:[%s1 + $0x620] sm:$0xff]
      %v513 = vld [vmem:[%s1 + $0x628] sm:$0xff]
      %v514 = vld [vmem:[%s1 + $0x630] sm:$0xff]
      %v515 = vld [vmem:[%s1 + $0x638] sm:$0xff]
      %v516 = vld [vmem:[%s1 + $0x640] sm:$0xff]
      %v517 = vld [vmem:[%s1 + $0x648] sm:$0xff]
      %v518 = vld [vmem:[%s1 + $0x650] sm:$0xff]
      %v519 = vld [vmem:[%s1 + $0x658] sm:$0xff]
      %v520 = vld [vmem:[%s1 + $0x660] sm:$0xff]
      %v521 = vld [vmem:[%s1 + $0x668] sm:$0xff]
      %v522 = vld [vmem:[%s1 + $0x670] sm:$0xff]
      %v523 = vld [vmem:[%s1 + $0x678] sm:$0xff]
      %v524 = vld [vmem:[%s1 + $0x680] sm:$0xff]
      %v525 = vld [vmem:[%s1 + $0x688] sm:$0xff]
      %v526 = vld [vmem:[%s1 + $0x690] sm:$0xff]
      %v527 = vld [vmem:[%s1 + $0x698] sm:$0xff]
      %v528 = vld [vmem:[%s1 + $0x6a0] sm:$0xff]
      %v529 = vld [vmem:[%s1 + $0x6a8] sm:$0xff]
      %v530 = vld [vmem:[%s1 + $0x6b0] sm:$0xff]
      %v531 = vld [vmem:[%s1 + $0x6b8] sm:$0xff]
      %v532 = vld [vmem:[%s1 + $0x6c0] sm:$0xff]
      %v533 = vld [vmem:[%s1 + $0x6c8] sm:$0xff]
      %v534 = vld [vmem:[%s1 + $0x6d0] sm:$0xff]
      %v535 = vld [vmem:[%s1 + $0x6d8] sm:$0xff]
      %v536 = vld [vmem:[%s1 + $0x6e0] sm:$0xff]
      %v537 = vld [vmem:[%s1 + $0x6e8] sm:$0xff]
      %v538 = vld [vmem:[%s1 + $0x6f0] sm:$0xff]
      %v539 = vld [vmem:[%s1 + $0x6f8] sm:$0xff]
      %v540 = vld [vmem:[%s1 + $0x700] sm:$0xff]
      %v541 = vld [vmem:[%s1 + $0x708] sm:$0xff]
      %v542 = vld [vmem:[%s1 + $0x710] sm:$0xff]
      %v543 = vld [vmem:[%s1 + $0x718] sm:$0xff]
      %v544 = vld [vmem:[%s1 + $0x720] sm:$0xff]
      %v545 = vld [vmem:[%s1 + $0x728] sm:$0xff]
      %v546 = vld [vmem:[%s1 + $0x730] sm:$0xff]
      %v547 = vld [vmem:[%s1 + $0x738] sm:$0xff]
      %v548 = vld [vmem:[%s1 + $0x740] sm:$0xff]
      %v549 = vld [vmem:[%s1 + $0x748] sm:$0xff]
      %v550 = vld [vmem:[%s1 + $0x750] sm:$0xff]
      %v551 = vld [vmem:[%s1 + $0x758] sm:$0xff]
      %v552 = vld [vmem:[%s1 + $0x760] sm:$0xff]
      %v553 = vld [vmem:[%s1 + $0x768] sm:$0xff]
      %v554 = vld [vmem:[%s1 + $0x770] sm:$0xff]
      %v555 = vld [vmem:[%s1 + $0x778] sm:$0xff]
      %v556 = vld [vmem:[%s1 + $0x780] sm:$0xff]
      %v557 = vld [vmem:[%s1 + $0x788] sm:$0xff]
      %v558 = vld [vmem:[%s1 + $0x790] sm:$0xff]
      %v559 = vld [vmem:[%s1 + $0x798] sm:$0xff]
      %v560 = vld [vmem:[%s1 + $0x7a0] sm:$0xff]
      %v561 = vld [vmem:[%s1 + $0x7a8] sm:$0xff]
      %v562 = vld [vmem:[%s1 + $0x7b0] sm:$0xff]
      %v563 = vld [vmem:[%s1 + $0x7b8] sm:$0xff]
      %v564 = vld [vmem:[%s1 + $0x7c0] sm:$0xff]
      %v565 = vld [vmem:[%s1 + $0x7c8] sm:$0xff]
      %v566 = vld [vmem:[%s1 + $0x7d0] sm:$0xff]
      %v567 = vld [vmem:[%s1 + $0x7d8] sm:$0xff]
      %v568 = vld [vmem:[%s1 + $0x7e0] sm:$0xff]
      %v569 = vld [vmem:[%s1 + $0x7e8] sm:$0xff]
      %v570 = vld [vmem:[%s1 + $0x7f0] sm:$0xff]
      %v571 = vld [vmem:[%s1 + $0x7f8] sm:$0xff]
      %v572 = vlaneseq
      %v573 = vshrl.u32 %v572, 7
      %v574 = vsub.s32 0, %v573
      %v575 = vrot.slane %v232, %v574
      %v576 = vlaneseq
      %v577 = vshrl.u32 %v576, 7
      %v578 = vsub.s32 0, %v577
      %v579 = vrot.slane %v233, %v578
      %v580 = vlaneseq
      %v581 = vshrl.u32 %v580, 7
      %v582 = vsub.s32 0, %v581
      %v583 = vrot.slane %v234, %v582
      %v584 = vlaneseq
      %v585 = vshrl.u32 %v584, 7
      %v586 = vsub.s32 0, %v585
      %v587 = vrot.slane %v235, %v586
      %v668 = vunpack.c.l.b16 %v236
      %v669 = vunpack.c.h.b16 %v236
      %v670 = vunpack.c.l.b16 %v237
      %v671 = vunpack.c.h.b16 %v237
      %v672 = vunpack.c.l.b16 %v238
      %v673 = vunpack.c.h.b16 %v238
      %v674 = vunpack.c.l.b16 %v239
      %v675 = vunpack.c.h.b16 %v239
      %v676 = vunpack.c.l.b16 %v240
      %v677 = vunpack.c.h.b16 %v240
      %v678 = vunpack.c.l.b16 %v241
      %v679 = vunpack.c.h.b16 %v241
      %v680 = vunpack.c.l.b16 %v242
      %v681 = vunpack.c.h.b16 %v242
      %v682 = vunpack.c.l.b16 %v243
      %v683 = vunpack.c.h.b16 %v243
      %v684 = vunpack.c.l.b16 %v244
      %v685 = vunpack.c.h.b16 %v244
      %v686 = vunpack.c.l.b16 %v245
      %v687 = vunpack.c.h.b16 %v245
      %v688 = vunpack.c.l.b16 %v246
      %v689 = vunpack.c.h.b16 %v246
      %v690 = vunpack.c.l.b16 %v247
      %v691 = vunpack.c.h.b16 %v247
      %v692 = vunpack.c.l.b16 %v248
      %v693 = vunpack.c.h.b16 %v248
      %v694 = vunpack.c.l.b16 %v249
      %v695 = vunpack.c.h.b16 %v249
      %v696 = vunpack.c.l.b16 %v250
      %v697 = vunpack.c.h.b16 %v250
      %v698 = vunpack.c.l.b16 %v251
      %v699 = vunpack.c.h.b16 %v251
      %v700 = vunpack.c.l.b16 %v252
      %v701 = vunpack.c.h.b16 %v252
      %v702 = vunpack.c.l.b16 %v253
      %v703 = vunpack.c.h.b16 %v253
      %v704 = vunpack.c.l.b16 %v254
      %v705 = vunpack.c.h.b16 %v254
      %v706 = vunpack.c.l.b16 %v255
      %v707 = vunpack.c.h.b16 %v255
      %v708 = vunpack.c.l.b16 %v256
      %v709 = vunpack.c.h.b16 %v256
      %v710 = vunpack.c.l.b16 %v257
      %v711 = vunpack.c.h.b16 %v257
      %v712 = vunpack.c.l.b16 %v258
      %v713 = vunpack.c.h.b16 %v258
      %v714 = vunpack.c.l.b16 %v259
      %v715 = vunpack.c.h.b16 %v259
      %v716 = vunpack.c.l.b16 %v260
      %v717 = vunpack.c.h.b16 %v260
      %v718 = vunpack.c.l.b16 %v261
      %v719 = vunpack.c.h.b16 %v261
      %v720 = vunpack.c.l.b16 %v262
      %v721 = vunpack.c.h.b16 %v262
      %v722 = vunpack.c.l.b16 %v263
      %v723 = vunpack.c.h.b16 %v263
      %v724 = vunpack.c.l.b16 %v264
      %v725 = vunpack.c.h.b16 %v264
      %v726 = vunpack.c.l.b16 %v265
      %v727 = vunpack.c.h.b16 %v265
      %v728 = vunpack.c.l.b16 %v266
      %v729 = vunpack.c.h.b16 %v266
      %v730 = vunpack.c.l.b16 %v267
      %v731 = vunpack.c.h.b16 %v267
      %v732 = vunpack.c.l.b16 %v268
      %v733 = vunpack.c.h.b16 %v268
      %v734 = vunpack.c.l.b16 %v269
      %v735 = vunpack.c.h.b16 %v269
      %v736 = vunpack.c.l.b16 %v270
      %v737 = vunpack.c.h.b16 %v270
      %v738 = vunpack.c.l.b16 %v271
      %v739 = vunpack.c.h.b16 %v271
      %v740 = vunpack.c.l.b16 %v272
      %v741 = vunpack.c.h.b16 %v272
      %v742 = vunpack.c.l.b16 %v273
      %v743 = vunpack.c.h.b16 %v273
      %v744 = vunpack.c.l.b16 %v274
      %v745 = vunpack.c.h.b16 %v274
      %v746 = vunpack.c.l.b16 %v275
      %v747 = vunpack.c.h.b16 %v275
      %v748 = vunpack.c.l.b16 %v276
      %v749 = vunpack.c.h.b16 %v276
      %v750 = vunpack.c.l.b16 %v277
      %v751 = vunpack.c.h.b16 %v277
      %v752 = vunpack.c.l.b16 %v278
      %v753 = vunpack.c.h.b16 %v278
      %v754 = vunpack.c.l.b16 %v279
      %v755 = vunpack.c.h.b16 %v279
      %v756 = vunpack.c.l.b16 %v280
      %v757 = vunpack.c.h.b16 %v280
      %v758 = vunpack.c.l.b16 %v281
      %v759 = vunpack.c.h.b16 %v281
      %v760 = vunpack.c.l.b16 %v282
      %v761 = vunpack.c.h.b16 %v282
      %v762 = vunpack.c.l.b16 %v283
      %v763 = vunpack.c.h.b16 %v283
      %v764 = vunpack.c.l.b16 %v284
      %v765 = vunpack.c.h.b16 %v284
      %v766 = vunpack.c.l.b16 %v285
      %v767 = vunpack.c.h.b16 %v285
      %v768 = vunpack.c.l.b16 %v286
      %v769 = vunpack.c.h.b16 %v286
      %v770 = vunpack.c.l.b16 %v287
      %v771 = vunpack.c.h.b16 %v287
      %v772 = vunpack.c.l.b16 %v288
      %v773 = vunpack.c.h.b16 %v288
      %v774 = vunpack.c.l.b16 %v289
      %v775 = vunpack.c.h.b16 %v289
      %v776 = vunpack.c.l.b16 %v290
      %v777 = vunpack.c.h.b16 %v290
      %v778 = vunpack.c.l.b16 %v291
      %v779 = vunpack.c.h.b16 %v291
      %v780 = vunpack.c.l.b16 %v292
      %v781 = vunpack.c.h.b16 %v292
      %v782 = vunpack.c.l.b16 %v293
      %v783 = vunpack.c.h.b16 %v293
      %v784 = vunpack.c.l.b16 %v294
      %v785 = vunpack.c.h.b16 %v294
      %v786 = vunpack.c.l.b16 %v295
      %v787 = vunpack.c.h.b16 %v295
      %v788 = vunpack.c.l.b16 %v296
      %v789 = vunpack.c.h.b16 %v296
      %v790 = vunpack.c.l.b16 %v297
      %v791 = vunpack.c.h.b16 %v297
      %v792 = vunpack.c.l.b16 %v298
      %v793 = vunpack.c.h.b16 %v298
      %v794 = vunpack.c.l.b16 %v299
      %v795 = vunpack.c.h.b16 %v299
      %v796 = vunpack.c.l.b16 %v300
      %v797 = vunpack.c.h.b16 %v300
      %v798 = vunpack.c.l.b16 %v301
      %v799 = vunpack.c.h.b16 %v301
      %v800 = vunpack.c.l.b16 %v302
      %v801 = vunpack.c.h.b16 %v302
      %v802 = vunpack.c.l.b16 %v303
      %v803 = vunpack.c.h.b16 %v303
      %v804 = vunpack.c.l.b16 %v304
      %v805 = vunpack.c.h.b16 %v304
      %v806 = vunpack.c.l.b16 %v305
      %v807 = vunpack.c.h.b16 %v305
      %v808 = vunpack.c.l.b16 %v306
      %v809 = vunpack.c.h.b16 %v306
      %v810 = vunpack.c.l.b16 %v307
      %v811 = vunpack.c.h.b16 %v307
      %v812 = vunpack.c.l.b16 %v308
      %v813 = vunpack.c.h.b16 %v308
      %v814 = vunpack.c.l.b16 %v309
      %v815 = vunpack.c.h.b16 %v309
      %v816 = vunpack.c.l.b16 %v310
      %v817 = vunpack.c.h.b16 %v310
      %v818 = vunpack.c.l.b16 %v311
      %v819 = vunpack.c.h.b16 %v311
      %v820 = vunpack.c.l.b16 %v312
      %v821 = vunpack.c.h.b16 %v312
      %v822 = vunpack.c.l.b16 %v313
      %v823 = vunpack.c.h.b16 %v313
      %v824 = vunpack.c.l.b16 %v314
      %v825 = vunpack.c.h.b16 %v314
      %v826 = vunpack.c.l.b16 %v315
      %v827 = vunpack.c.h.b16 %v315
      %v828 = vpack.c.b16 %v676, %v668
      %v829 = vpack.c.b16 %v677, %v669
      %v830 = vpack.c.b16 %v678, %v670
      %v831 = vpack.c.b16 %v679, %v671
      %v832 = vpack.c.b16 %v680, %v672
      %v833 = vpack.c.b16 %v681, %v673
      %v834 = vpack.c.b16 %v682, %v674
      %v835 = vpack.c.b16 %v683, %v675
      %v836 = vpack.c.b16 %v692, %v684
      %v837 = vpack.c.b16 %v693, %v685
      %v838 = vpack.c.b16 %v694, %v686
      %v839 = vpack.c.b16 %v695, %v687
      %v840 = vpack.c.b16 %v696, %v688
      %v841 = vpack.c.b16 %v697, %v689
      %v842 = vpack.c.b16 %v698, %v690
      %v843 = vpack.c.b16 %v699, %v691
      %v844 = vpack.c.b16 %v708, %v700
      %v845 = vpack.c.b16 %v709, %v701
      %v846 = vpack.c.b16 %v710, %v702
      %v847 = vpack.c.b16 %v711, %v703
      %v848 = vpack.c.b16 %v712, %v704
      %v849 = vpack.c.b16 %v713, %v705
      %v850 = vpack.c.b16 %v714, %v706
      %v851 = vpack.c.b16 %v715, %v707
      %v852 = vpack.c.b16 %v724, %v716
      %v853 = vpack.c.b16 %v725, %v717
      %v854 = vpack.c.b16 %v726, %v718
      %v855 = vpack.c.b16 %v727, %v719
      %v856 = vpack.c.b16 %v728, %v720
      %v857 = vpack.c.b16 %v729, %v721
      %v858 = vpack.c.b16 %v730, %v722
      %v859 = vpack.c.b16 %v731, %v723
      %v860 = vpack.c.b16 %v740, %v732
      %v861 = vpack.c.b16 %v741, %v733
      %v862 = vpack.c.b16 %v742, %v734
      %v863 = vpack.c.b16 %v743, %v735
      %v864 = vpack.c.b16 %v744, %v736
      %v865 = vpack.c.b16 %v745, %v737
      %v866 = vpack.c.b16 %v746, %v738
      %v867 = vpack.c.b16 %v747, %v739
      %v868 = vpack.c.b16 %v756, %v748
      %v869 = vpack.c.b16 %v757, %v749
      %v870 = vpack.c.b16 %v758, %v750
      %v871 = vpack.c.b16 %v759, %v751
      %v872 = vpack.c.b16 %v760, %v752
      %v873 = vpack.c.b16 %v761, %v753
      %v874 = vpack.c.b16 %v762, %v754
      %v875 = vpack.c.b16 %v763, %v755
      %v876 = vpack.c.b16 %v772, %v764
      %v877 = vpack.c.b16 %v773, %v765
      %v878 = vpack.c.b16 %v774, %v766
      %v879 = vpack.c.b16 %v775, %v767
      %v880 = vpack.c.b16 %v776, %v768
      %v881 = vpack.c.b16 %v777, %v769
      %v882 = vpack.c.b16 %v778, %v770
      %v883 = vpack.c.b16 %v779, %v771
      %v884 = vpack.c.b16 %v788, %v780
      %v885 = vpack.c.b16 %v789, %v781
      %v886 = vpack.c.b16 %v790, %v782
      %v887 = vpack.c.b16 %v791, %v783
      %v888 = vpack.c.b16 %v792, %v784
      %v889 = vpack.c.b16 %v793, %v785
      %v890 = vpack.c.b16 %v794, %v786
      %v891 = vpack.c.b16 %v795, %v787
      %v892 = vpack.c.b16 %v804, %v796
      %v893 = vpack.c.b16 %v805, %v797
      %v894 = vpack.c.b16 %v806, %v798
      %v895 = vpack.c.b16 %v807, %v799
      %v896 = vpack.c.b16 %v808, %v800
      %v897 = vpack.c.b16 %v809, %v801
      %v898 = vpack.c.b16 %v810, %v802
      %v899 = vpack.c.b16 %v811, %v803
      %v900 = vpack.c.b16 %v820, %v812
      %v901 = vpack.c.b16 %v821, %v813
      %v902 = vpack.c.b16 %v822, %v814
      %v903 = vpack.c.b16 %v823, %v815
      %v904 = vpack.c.b16 %v824, %v816
      %v905 = vpack.c.b16 %v825, %v817
      %v906 = vpack.c.b16 %v826, %v818
      %v907 = vpack.c.b16 %v827, %v819
      %v1244 = vunpack.c.l.b16 %v316
      %v1245 = vunpack.c.h.b16 %v316
      %v1246 = vunpack.c.l.b16 %v317
      %v1247 = vunpack.c.h.b16 %v317
      %v1248 = vunpack.c.l.b16 %v318
      %v1249 = vunpack.c.h.b16 %v318
      %v1250 = vunpack.c.l.b16 %v319
      %v1251 = vunpack.c.h.b16 %v319
      %v1252 = vunpack.c.l.b16 %v320
      %v1253 = vunpack.c.h.b16 %v320
      %v1254 = vunpack.c.l.b16 %v321
      %v1255 = vunpack.c.h.b16 %v321
      %v1256 = vunpack.c.l.b16 %v322
      %v1257 = vunpack.c.h.b16 %v322
      %v1258 = vunpack.c.l.b16 %v323
      %v1259 = vunpack.c.h.b16 %v323
      %v1260 = vunpack.c.l.b16 %v324
      %v1261 = vunpack.c.h.b16 %v324
      %v1262 = vunpack.c.l.b16 %v325
      %v1263 = vunpack.c.h.b16 %v325
      %v1264 = vunpack.c.l.b16 %v326
      %v1265 = vunpack.c.h.b16 %v326
      %v1266 = vunpack.c.l.b16 %v327
      %v1267 = vunpack.c.h.b16 %v327
      %v1268 = vunpack.c.l.b16 %v328
      %v1269 = vunpack.c.h.b16 %v328
      %v1270 = vunpack.c.l.b16 %v329
      %v1271 = vunpack.c.h.b16 %v329
      %v1272 = vunpack.c.l.b16 %v330
      %v1273 = vunpack.c.h.b16 %v330
      %v1274 = vunpack.c.l.b16 %v331
      %v1275 = vunpack.c.h.b16 %v331
      %v1276 = vunpack.c.l.b16 %v332
      %v1277 = vunpack.c.h.b16 %v332
      %v1278 = vunpack.c.l.b16 %v333
      %v1279 = vunpack.c.h.b16 %v333
      %v1280 = vunpack.c.l.b16 %v334
      %v1281 = vunpack.c.h.b16 %v334
      %v1282 = vunpack.c.l.b16 %v335
      %v1283 = vunpack.c.h.b16 %v335
      %v1284 = vunpack.c.l.b16 %v336
      %v1285 = vunpack.c.h.b16 %v336
      %v1286 = vunpack.c.l.b16 %v337
      %v1287 = vunpack.c.h.b16 %v337
      %v1288 = vunpack.c.l.b16 %v338
      %v1289 = vunpack.c.h.b16 %v338
      %v1290 = vunpack.c.l.b16 %v339
      %v1291 = vunpack.c.h.b16 %v339
      %v1292 = vunpack.c.l.b16 %v340
      %v1293 = vunpack.c.h.b16 %v340
      %v1294 = vunpack.c.l.b16 %v341
      %v1295 = vunpack.c.h.b16 %v341
      %v1296 = vunpack.c.l.b16 %v342
      %v1297 = vunpack.c.h.b16 %v342
      %v1298 = vunpack.c.l.b16 %v343
      %v1299 = vunpack.c.h.b16 %v343
      %v1300 = vunpack.c.l.b16 %v344
      %v1301 = vunpack.c.h.b16 %v344
      %v1302 = vunpack.c.l.b16 %v345
      %v1303 = vunpack.c.h.b16 %v345
      %v1304 = vunpack.c.l.b16 %v346
      %v1305 = vunpack.c.h.b16 %v346
      %v1306 = vunpack.c.l.b16 %v347
      %v1307 = vunpack.c.h.b16 %v347
      %v1308 = vunpack.c.l.b16 %v348
      %v1309 = vunpack.c.h.b16 %v348
      %v1310 = vunpack.c.l.b16 %v349
      %v1311 = vunpack.c.h.b16 %v349
      %v1312 = vunpack.c.l.b16 %v350
      %v1313 = vunpack.c.h.b16 %v350
      %v1314 = vunpack.c.l.b16 %v351
      %v1315 = vunpack.c.h.b16 %v351
      %v1316 = vunpack.c.l.b16 %v352
      %v1317 = vunpack.c.h.b16 %v352
      %v1318 = vunpack.c.l.b16 %v353
      %v1319 = vunpack.c.h.b16 %v353
      %v1320 = vunpack.c.l.b16 %v354
      %v1321 = vunpack.c.h.b16 %v354
      %v1322 = vunpack.c.l.b16 %v355
      %v1323 = vunpack.c.h.b16 %v355
      %v1324 = vunpack.c.l.b16 %v356
      %v1325 = vunpack.c.h.b16 %v356
      %v1326 = vunpack.c.l.b16 %v357
      %v1327 = vunpack.c.h.b16 %v357
      %v1328 = vunpack.c.l.b16 %v358
      %v1329 = vunpack.c.h.b16 %v358
      %v1330 = vunpack.c.l.b16 %v359
      %v1331 = vunpack.c.h.b16 %v359
      %v1332 = vunpack.c.l.b16 %v360
      %v1333 = vunpack.c.h.b16 %v360
      %v1334 = vunpack.c.l.b16 %v361
      %v1335 = vunpack.c.h.b16 %v361
      %v1336 = vunpack.c.l.b16 %v362
      %v1337 = vunpack.c.h.b16 %v362
      %v1338 = vunpack.c.l.b16 %v363
      %v1339 = vunpack.c.h.b16 %v363
      %v1340 = vunpack.c.l.b16 %v364
      %v1341 = vunpack.c.h.b16 %v364
      %v1342 = vunpack.c.l.b16 %v365
      %v1343 = vunpack.c.h.b16 %v365
      %v1344 = vunpack.c.l.b16 %v366
      %v1345 = vunpack.c.h.b16 %v366
      %v1346 = vunpack.c.l.b16 %v367
      %v1347 = vunpack.c.h.b16 %v367
      %v1348 = vunpack.c.l.b16 %v368
      %v1349 = vunpack.c.h.b16 %v368
      %v1350 = vunpack.c.l.b16 %v369
      %v1351 = vunpack.c.h.b16 %v369
      %v1352 = vunpack.c.l.b16 %v370
      %v1353 = vunpack.c.h.b16 %v370
      %v1354 = vunpack.c.l.b16 %v371
      %v1355 = vunpack.c.h.b16 %v371
      %v1356 = vunpack.c.l.b16 %v372
      %v1357 = vunpack.c.h.b16 %v372
      %v1358 = vunpack.c.l.b16 %v373
      %v1359 = vunpack.c.h.b16 %v373
      %v1360 = vunpack.c.l.b16 %v374
      %v1361 = vunpack.c.h.b16 %v374
      %v1362 = vunpack.c.l.b16 %v375
      %v1363 = vunpack.c.h.b16 %v375
      %v1364 = vunpack.c.l.b16 %v376
      %v1365 = vunpack.c.h.b16 %v376
      %v1366 = vunpack.c.l.b16 %v377
      %v1367 = vunpack.c.h.b16 %v377
      %v1368 = vunpack.c.l.b16 %v378
      %v1369 = vunpack.c.h.b16 %v378
      %v1370 = vunpack.c.l.b16 %v379
      %v1371 = vunpack.c.h.b16 %v379
      %v1372 = vunpack.c.l.b16 %v380
      %v1373 = vunpack.c.h.b16 %v380
      %v1374 = vunpack.c.l.b16 %v381
      %v1375 = vunpack.c.h.b16 %v381
      %v1376 = vunpack.c.l.b16 %v382
      %v1377 = vunpack.c.h.b16 %v382
      %v1378 = vunpack.c.l.b16 %v383
      %v1379 = vunpack.c.h.b16 %v383
      %v1380 = vunpack.c.l.b16 %v384
      %v1381 = vunpack.c.h.b16 %v384
      %v1382 = vunpack.c.l.b16 %v385
      %v1383 = vunpack.c.h.b16 %v385
      %v1384 = vunpack.c.l.b16 %v386
      %v1385 = vunpack.c.h.b16 %v386
      %v1386 = vunpack.c.l.b16 %v387
      %v1387 = vunpack.c.h.b16 %v387
      %v1388 = vunpack.c.l.b16 %v388
      %v1389 = vunpack.c.h.b16 %v388
      %v1390 = vunpack.c.l.b16 %v389
      %v1391 = vunpack.c.h.b16 %v389
      %v1392 = vunpack.c.l.b16 %v390
      %v1393 = vunpack.c.h.b16 %v390
      %v1394 = vunpack.c.l.b16 %v391
      %v1395 = vunpack.c.h.b16 %v391
      %v1396 = vunpack.c.l.b16 %v392
      %v1397 = vunpack.c.h.b16 %v392
      %v1398 = vunpack.c.l.b16 %v393
      %v1399 = vunpack.c.h.b16 %v393
      %v1400 = vunpack.c.l.b16 %v394
      %v1401 = vunpack.c.h.b16 %v394
      %v1402 = vunpack.c.l.b16 %v395
      %v1403 = vunpack.c.h.b16 %v395
      %v1404 = vunpack.c.l.b16 %v396
      %v1405 = vunpack.c.h.b16 %v396
      %v1406 = vunpack.c.l.b16 %v397
      %v1407 = vunpack.c.h.b16 %v397
      %v1408 = vunpack.c.l.b16 %v398
      %v1409 = vunpack.c.h.b16 %v398
      %v1410 = vunpack.c.l.b16 %v399
      %v1411 = vunpack.c.h.b16 %v399
      %v1412 = vunpack.c.l.b16 %v400
      %v1413 = vunpack.c.h.b16 %v400
      %v1414 = vunpack.c.l.b16 %v401
      %v1415 = vunpack.c.h.b16 %v401
      %v1416 = vunpack.c.l.b16 %v402
      %v1417 = vunpack.c.h.b16 %v402
      %v1418 = vunpack.c.l.b16 %v403
      %v1419 = vunpack.c.h.b16 %v403
      %v1420 = vunpack.c.l.b16 %v404
      %v1421 = vunpack.c.h.b16 %v404
      %v1422 = vunpack.c.l.b16 %v405
      %v1423 = vunpack.c.h.b16 %v405
      %v1424 = vunpack.c.l.b16 %v406
      %v1425 = vunpack.c.h.b16 %v406
      %v1426 = vunpack.c.l.b16 %v407
      %v1427 = vunpack.c.h.b16 %v407
      %v1428 = vunpack.c.l.b16 %v408
      %v1429 = vunpack.c.h.b16 %v408
      %v1430 = vunpack.c.l.b16 %v409
      %v1431 = vunpack.c.h.b16 %v409
      %v1432 = vunpack.c.l.b16 %v410
      %v1433 = vunpack.c.h.b16 %v410
      %v1434 = vunpack.c.l.b16 %v411
      %v1435 = vunpack.c.h.b16 %v411
      %v1436 = vunpack.c.l.b16 %v412
      %v1437 = vunpack.c.h.b16 %v412
      %v1438 = vunpack.c.l.b16 %v413
      %v1439 = vunpack.c.h.b16 %v413
      %v1440 = vunpack.c.l.b16 %v414
      %v1441 = vunpack.c.h.b16 %v414
      %v1442 = vunpack.c.l.b16 %v415
      %v1443 = vunpack.c.h.b16 %v415
      %v1444 = vunpack.c.l.b16 %v416
      %v1445 = vunpack.c.h.b16 %v416
      %v1446 = vunpack.c.l.b16 %v417
      %v1447 = vunpack.c.h.b16 %v417
      %v1448 = vunpack.c.l.b16 %v418
      %v1449 = vunpack.c.h.b16 %v418
      %v1450 = vunpack.c.l.b16 %v419
      %v1451 = vunpack.c.h.b16 %v419
      %v1452 = vunpack.c.l.b16 %v420
      %v1453 = vunpack.c.h.b16 %v420
      %v1454 = vunpack.c.l.b16 %v421
      %v1455 = vunpack.c.h.b16 %v421
      %v1456 = vunpack.c.l.b16 %v422
      %v1457 = vunpack.c.h.b16 %v422
      %v1458 = vunpack.c.l.b16 %v423
      %v1459 = vunpack.c.h.b16 %v423
      %v1460 = vunpack.c.l.b16 %v424
      %v1461 = vunpack.c.h.b16 %v424
      %v1462 = vunpack.c.l.b16 %v425
      %v1463 = vunpack.c.h.b16 %v425
      %v1464 = vunpack.c.l.b16 %v426
      %v1465 = vunpack.c.h.b16 %v426
      %v1466 = vunpack.c.l.b16 %v427
      %v1467 = vunpack.c.h.b16 %v427
      %v1468 = vunpack.c.l.b16 %v428
      %v1469 = vunpack.c.h.b16 %v428
      %v1470 = vunpack.c.l.b16 %v429
      %v1471 = vunpack.c.h.b16 %v429
      %v1472 = vunpack.c.l.b16 %v430
      %v1473 = vunpack.c.h.b16 %v430
      %v1474 = vunpack.c.l.b16 %v431
      %v1475 = vunpack.c.h.b16 %v431
      %v1476 = vunpack.c.l.b16 %v432
      %v1477 = vunpack.c.h.b16 %v432
      %v1478 = vunpack.c.l.b16 %v433
      %v1479 = vunpack.c.h.b16 %v433
      %v1480 = vunpack.c.l.b16 %v434
      %v1481 = vunpack.c.h.b16 %v434
      %v1482 = vunpack.c.l.b16 %v435
      %v1483 = vunpack.c.h.b16 %v435
      %v1484 = vunpack.c.l.b16 %v436
      %v1485 = vunpack.c.h.b16 %v436
      %v1486 = vunpack.c.l.b16 %v437
      %v1487 = vunpack.c.h.b16 %v437
      %v1488 = vunpack.c.l.b16 %v438
      %v1489 = vunpack.c.h.b16 %v438
      %v1490 = vunpack.c.l.b16 %v439
      %v1491 = vunpack.c.h.b16 %v439
      %v1492 = vunpack.c.l.b16 %v440
      %v1493 = vunpack.c.h.b16 %v440
      %v1494 = vunpack.c.l.b16 %v441
      %v1495 = vunpack.c.h.b16 %v441
      %v1496 = vunpack.c.l.b16 %v442
      %v1497 = vunpack.c.h.b16 %v442
      %v1498 = vunpack.c.l.b16 %v443
      %v1499 = vunpack.c.h.b16 %v443
      %v1500 = vunpack.c.l.b16 %v444
      %v1501 = vunpack.c.h.b16 %v444
      %v1502 = vunpack.c.l.b16 %v445
      %v1503 = vunpack.c.h.b16 %v445
      %v1504 = vunpack.c.l.b16 %v446
      %v1505 = vunpack.c.h.b16 %v446
      %v1506 = vunpack.c.l.b16 %v447
      %v1507 = vunpack.c.h.b16 %v447
      %v1508 = vunpack.c.l.b16 %v448
      %v1509 = vunpack.c.h.b16 %v448
      %v1510 = vunpack.c.l.b16 %v449
      %v1511 = vunpack.c.h.b16 %v449
      %v1512 = vunpack.c.l.b16 %v450
      %v1513 = vunpack.c.h.b16 %v450
      %v1514 = vunpack.c.l.b16 %v451
      %v1515 = vunpack.c.h.b16 %v451
      %v1516 = vunpack.c.l.b16 %v452
      %v1517 = vunpack.c.h.b16 %v452
      %v1518 = vunpack.c.l.b16 %v453
      %v1519 = vunpack.c.h.b16 %v453
      %v1520 = vunpack.c.l.b16 %v454
      %v1521 = vunpack.c.h.b16 %v454
      %v1522 = vunpack.c.l.b16 %v455
      %v1523 = vunpack.c.h.b16 %v455
      %v1524 = vunpack.c.l.b16 %v456
      %v1525 = vunpack.c.h.b16 %v456
      %v1526 = vunpack.c.l.b16 %v457
      %v1527 = vunpack.c.h.b16 %v457
      %v1528 = vunpack.c.l.b16 %v458
      %v1529 = vunpack.c.h.b16 %v458
      %v1530 = vunpack.c.l.b16 %v459
      %v1531 = vunpack.c.h.b16 %v459
      %v1532 = vunpack.c.l.b16 %v460
      %v1533 = vunpack.c.h.b16 %v460
      %v1534 = vunpack.c.l.b16 %v461
      %v1535 = vunpack.c.h.b16 %v461
      %v1536 = vunpack.c.l.b16 %v462
      %v1537 = vunpack.c.h.b16 %v462
      %v1538 = vunpack.c.l.b16 %v463
      %v1539 = vunpack.c.h.b16 %v463
      %v1540 = vunpack.c.l.b16 %v464
      %v1541 = vunpack.c.h.b16 %v464
      %v1542 = vunpack.c.l.b16 %v465
      %v1543 = vunpack.c.h.b16 %v465
      %v1544 = vunpack.c.l.b16 %v466
      %v1545 = vunpack.c.h.b16 %v466
      %v1546 = vunpack.c.l.b16 %v467
      %v1547 = vunpack.c.h.b16 %v467
      %v1548 = vunpack.c.l.b16 %v468
      %v1549 = vunpack.c.h.b16 %v468
      %v1550 = vunpack.c.l.b16 %v469
      %v1551 = vunpack.c.h.b16 %v469
      %v1552 = vunpack.c.l.b16 %v470
      %v1553 = vunpack.c.h.b16 %v470
      %v1554 = vunpack.c.l.b16 %v471
      %v1555 = vunpack.c.h.b16 %v471
      %v1556 = vunpack.c.l.b16 %v472
      %v1557 = vunpack.c.h.b16 %v472
      %v1558 = vunpack.c.l.b16 %v473
      %v1559 = vunpack.c.h.b16 %v473
      %v1560 = vunpack.c.l.b16 %v474
      %v1561 = vunpack.c.h.b16 %v474
      %v1562 = vunpack.c.l.b16 %v475
      %v1563 = vunpack.c.h.b16 %v475
      %v1564 = vunpack.c.l.b16 %v476
      %v1565 = vunpack.c.h.b16 %v476
      %v1566 = vunpack.c.l.b16 %v477
      %v1567 = vunpack.c.h.b16 %v477
      %v1568 = vunpack.c.l.b16 %v478
      %v1569 = vunpack.c.h.b16 %v478
      %v1570 = vunpack.c.l.b16 %v479
      %v1571 = vunpack.c.h.b16 %v479
      %v1572 = vunpack.c.l.b16 %v480
      %v1573 = vunpack.c.h.b16 %v480
      %v1574 = vunpack.c.l.b16 %v481
      %v1575 = vunpack.c.h.b16 %v481
      %v1576 = vunpack.c.l.b16 %v482
      %v1577 = vunpack.c.h.b16 %v482
      %v1578 = vunpack.c.l.b16 %v483
      %v1579 = vunpack.c.h.b16 %v483
      %v1580 = vunpack.c.l.b16 %v484
      %v1581 = vunpack.c.h.b16 %v484
      %v1582 = vunpack.c.l.b16 %v485
      %v1583 = vunpack.c.h.b16 %v485
      %v1584 = vunpack.c.l.b16 %v486
      %v1585 = vunpack.c.h.b16 %v486
      %v1586 = vunpack.c.l.b16 %v487
      %v1587 = vunpack.c.h.b16 %v487
      %v1588 = vunpack.c.l.b16 %v488
      %v1589 = vunpack.c.h.b16 %v488
      %v1590 = vunpack.c.l.b16 %v489
      %v1591 = vunpack.c.h.b16 %v489
      %v1592 = vunpack.c.l.b16 %v490
      %v1593 = vunpack.c.h.b16 %v490
      %v1594 = vunpack.c.l.b16 %v491
      %v1595 = vunpack.c.h.b16 %v491
      %v1596 = vunpack.c.l.b16 %v492
      %v1597 = vunpack.c.h.b16 %v492
      %v1598 = vunpack.c.l.b16 %v493
      %v1599 = vunpack.c.h.b16 %v493
      %v1600 = vunpack.c.l.b16 %v494
      %v1601 = vunpack.c.h.b16 %v494
      %v1602 = vunpack.c.l.b16 %v495
      %v1603 = vunpack.c.h.b16 %v495
      %v1604 = vunpack.c.l.b16 %v496
      %v1605 = vunpack.c.h.b16 %v496
      %v1606 = vunpack.c.l.b16 %v497
      %v1607 = vunpack.c.h.b16 %v497
      %v1608 = vunpack.c.l.b16 %v498
      %v1609 = vunpack.c.h.b16 %v498
      %v1610 = vunpack.c.l.b16 %v499
      %v1611 = vunpack.c.h.b16 %v499
      %v1612 = vunpack.c.l.b16 %v500
      %v1613 = vunpack.c.h.b16 %v500
      %v1614 = vunpack.c.l.b16 %v501
      %v1615 = vunpack.c.h.b16 %v501
      %v1616 = vunpack.c.l.b16 %v502
      %v1617 = vunpack.c.h.b16 %v502
      %v1618 = vunpack.c.l.b16 %v503
      %v1619 = vunpack.c.h.b16 %v503
      %v1620 = vunpack.c.l.b16 %v504
      %v1621 = vunpack.c.h.b16 %v504
      %v1622 = vunpack.c.l.b16 %v505
      %v1623 = vunpack.c.h.b16 %v505
      %v1624 = vunpack.c.l.b16 %v506
      %v1625 = vunpack.c.h.b16 %v506
      %v1626 = vunpack.c.l.b16 %v507
      %v1627 = vunpack.c.h.b16 %v507
      %v1628 = vunpack.c.l.b16 %v508
      %v1629 = vunpack.c.h.b16 %v508
      %v1630 = vunpack.c.l.b16 %v509
      %v1631 = vunpack.c.h.b16 %v509
      %v1632 = vunpack.c.l.b16 %v510
      %v1633 = vunpack.c.h.b16 %v510
      %v1634 = vunpack.c.l.b16 %v511
      %v1635 = vunpack.c.h.b16 %v511
      %v1636 = vunpack.c.l.b16 %v512
      %v1637 = vunpack.c.h.b16 %v512
      %v1638 = vunpack.c.l.b16 %v513
      %v1639 = vunpack.c.h.b16 %v513
      %v1640 = vunpack.c.l.b16 %v514
      %v1641 = vunpack.c.h.b16 %v514
      %v1642 = vunpack.c.l.b16 %v515
      %v1643 = vunpack.c.h.b16 %v515
      %v1644 = vunpack.c.l.b16 %v516
      %v1645 = vunpack.c.h.b16 %v516
      %v1646 = vunpack.c.l.b16 %v517
      %v1647 = vunpack.c.h.b16 %v517
      %v1648 = vunpack.c.l.b16 %v518
      %v1649 = vunpack.c.h.b16 %v518
      %v1650 = vunpack.c.l.b16 %v519
      %v1651 = vunpack.c.h.b16 %v519
      %v1652 = vunpack.c.l.b16 %v520
      %v1653 = vunpack.c.h.b16 %v520
      %v1654 = vunpack.c.l.b16 %v521
      %v1655 = vunpack.c.h.b16 %v521
      %v1656 = vunpack.c.l.b16 %v522
      %v1657 = vunpack.c.h.b16 %v522
      %v1658 = vunpack.c.l.b16 %v523
      %v1659 = vunpack.c.h.b16 %v523
      %v1660 = vunpack.c.l.b16 %v524
      %v1661 = vunpack.c.h.b16 %v524
      %v1662 = vunpack.c.l.b16 %v525
      %v1663 = vunpack.c.h.b16 %v525
      %v1664 = vunpack.c.l.b16 %v526
      %v1665 = vunpack.c.h.b16 %v526
      %v1666 = vunpack.c.l.b16 %v527
      %v1667 = vunpack.c.h.b16 %v527
      %v1668 = vunpack.c.l.b16 %v528
      %v1669 = vunpack.c.h.b16 %v528
      %v1670 = vunpack.c.l.b16 %v529
      %v1671 = vunpack.c.h.b16 %v529
      %v1672 = vunpack.c.l.b16 %v530
      %v1673 = vunpack.c.h.b16 %v530
      %v1674 = vunpack.c.l.b16 %v531
      %v1675 = vunpack.c.h.b16 %v531
      %v1676 = vunpack.c.l.b16 %v532
      %v1677 = vunpack.c.h.b16 %v532
      %v1678 = vunpack.c.l.b16 %v533
      %v1679 = vunpack.c.h.b16 %v533
      %v1680 = vunpack.c.l.b16 %v534
      %v1681 = vunpack.c.h.b16 %v534
      %v1682 = vunpack.c.l.b16 %v535
      %v1683 = vunpack.c.h.b16 %v535
      %v1684 = vunpack.c.l.b16 %v536
      %v1685 = vunpack.c.h.b16 %v536
      %v1686 = vunpack.c.l.b16 %v537
      %v1687 = vunpack.c.h.b16 %v537
      %v1688 = vunpack.c.l.b16 %v538
      %v1689 = vunpack.c.h.b16 %v538
      %v1690 = vunpack.c.l.b16 %v539
      %v1691 = vunpack.c.h.b16 %v539
      %v1692 = vunpack.c.l.b16 %v540
      %v1693 = vunpack.c.h.b16 %v540
      %v1694 = vunpack.c.l.b16 %v541
      %v1695 = vunpack.c.h.b16 %v541
      %v1696 = vunpack.c.l.b16 %v542
      %v1697 = vunpack.c.h.b16 %v542
      %v1698 = vunpack.c.l.b16 %v543
      %v1699 = vunpack.c.h.b16 %v543
      %v1700 = vunpack.c.l.b16 %v544
      %v1701 = vunpack.c.h.b16 %v544
      %v1702 = vunpack.c.l.b16 %v545
      %v1703 = vunpack.c.h.b16 %v545
      %v1704 = vunpack.c.l.b16 %v546
      %v1705 = vunpack.c.h.b16 %v546
      %v1706 = vunpack.c.l.b16 %v547
      %v1707 = vunpack.c.h.b16 %v547
      %v1708 = vunpack.c.l.b16 %v548
      %v1709 = vunpack.c.h.b16 %v548
      %v1710 = vunpack.c.l.b16 %v549
      %v1711 = vunpack.c.h.b16 %v549
      %v1712 = vunpack.c.l.b16 %v550
      %v1713 = vunpack.c.h.b16 %v550
      %v1714 = vunpack.c.l.b16 %v551
      %v1715 = vunpack.c.h.b16 %v551
      %v1716 = vunpack.c.l.b16 %v552
      %v1717 = vunpack.c.h.b16 %v552
      %v1718 = vunpack.c.l.b16 %v553
      %v1719 = vunpack.c.h.b16 %v553
      %v1720 = vunpack.c.l.b16 %v554
      %v1721 = vunpack.c.h.b16 %v554
      %v1722 = vunpack.c.l.b16 %v555
      %v1723 = vunpack.c.h.b16 %v555
      %v1724 = vunpack.c.l.b16 %v556
      %v1725 = vunpack.c.h.b16 %v556
      %v1726 = vunpack.c.l.b16 %v557
      %v1727 = vunpack.c.h.b16 %v557
      %v1728 = vunpack.c.l.b16 %v558
      %v1729 = vunpack.c.h.b16 %v558
      %v1730 = vunpack.c.l.b16 %v559
      %v1731 = vunpack.c.h.b16 %v559
      %v1732 = vunpack.c.l.b16 %v560
      %v1733 = vunpack.c.h.b16 %v560
      %v1734 = vunpack.c.l.b16 %v561
      %v1735 = vunpack.c.h.b16 %v561
      %v1736 = vunpack.c.l.b16 %v562
      %v1737 = vunpack.c.h.b16 %v562
      %v1738 = vunpack.c.l.b16 %v563
      %v1739 = vunpack.c.h.b16 %v563
      %v1740 = vunpack.c.l.b16 %v564
      %v1741 = vunpack.c.h.b16 %v564
      %v1742 = vunpack.c.l.b16 %v565
      %v1743 = vunpack.c.h.b16 %v565
      %v1744 = vunpack.c.l.b16 %v566
      %v1745 = vunpack.c.h.b16 %v566
      %v1746 = vunpack.c.l.b16 %v567
      %v1747 = vunpack.c.h.b16 %v567
      %v1748 = vunpack.c.l.b16 %v568
      %v1749 = vunpack.c.h.b16 %v568
      %v1750 = vunpack.c.l.b16 %v569
      %v1751 = vunpack.c.h.b16 %v569
      %v1752 = vunpack.c.l.b16 %v570
      %v1753 = vunpack.c.h.b16 %v570
      %v1754 = vunpack.c.l.b16 %v571
      %v1755 = vunpack.c.h.b16 %v571
      %v1756 = vpack.c.b16 %v1248, %v1244
      %v1757 = vpack.c.b16 %v1249, %v1245
      %v1758 = vpack.c.b16 %v1250, %v1246
      %v1759 = vpack.c.b16 %v1251, %v1247
      %v1760 = vpack.c.b16 %v1256, %v1252
      %v1761 = vpack.c.b16 %v1257, %v1253
      %v1762 = vpack.c.b16 %v1258, %v1254
      %v1763 = vpack.c.b16 %v1259, %v1255
      %v1764 = vpack.c.b16 %v1264, %v1260
      %v1765 = vpack.c.b16 %v1265, %v1261
      %v1766 = vpack.c.b16 %v1266, %v1262
      %v1767 = vpack.c.b16 %v1267, %v1263
      %v1768 = vpack.c.b16 %v1272, %v1268
      %v1769 = vpack.c.b16 %v1273, %v1269
      %v1770 = vpack.c.b16 %v1274, %v1270
      %v1771 = vpack.c.b16 %v1275, %v1271
      %v1772 = vpack.c.b16 %v1280, %v1276
      %v1773 = vpack.c.b16 %v1281, %v1277
      %v1774 = vpack.c.b16 %v1282, %v1278
      %v1775 = vpack.c.b16 %v1283, %v1279
      %v1776 = vpack.c.b16 %v1288, %v1284
      %v1777 = vpack.c.b16 %v1289, %v1285
      %v1778 = vpack.c.b16 %v1290, %v1286
      %v1779 = vpack.c.b16 %v1291, %v1287
      %v1780 = vpack.c.b16 %v1296, %v1292
      %v1781 = vpack.c.b16 %v1297, %v1293
      %v1782 = vpack.c.b16 %v1298, %v1294
      %v1783 = vpack.c.b16 %v1299, %v1295
      %v1784 = vpack.c.b16 %v1304, %v1300
      %v1785 = vpack.c.b16 %v1305, %v1301
      %v1786 = vpack.c.b16 %v1306, %v1302
      %v1787 = vpack.c.b16 %v1307, %v1303
      %v1788 = vpack.c.b16 %v1312, %v1308
      %v1789 = vpack.c.b16 %v1313, %v1309
      %v1790 = vpack.c.b16 %v1314, %v1310
      %v1791 = vpack.c.b16 %v1315, %v1311
      %v1792 = vpack.c.b16 %v1320, %v1316
      %v1793 = vpack.c.b16 %v1321, %v1317
      %v1794 = vpack.c.b16 %v1322, %v1318
      %v1795 = vpack.c.b16 %v1323, %v1319
      %v1796 = vpack.c.b16 %v1328, %v1324
      %v1797 = vpack.c.b16 %v1329, %v1325
      %v1798 = vpack.c.b16 %v1330, %v1326
      %v1799 = vpack.c.b16 %v1331, %v1327
      %v1800 = vpack.c.b16 %v1336, %v1332
      %v1801 = vpack.c.b16 %v1337, %v1333
      %v1802 = vpack.c.b16 %v1338, %v1334
      %v1803 = vpack.c.b16 %v1339, %v1335
      %v1804 = vpack.c.b16 %v1344, %v1340
      %v1805 = vpack.c.b16 %v1345, %v1341
      %v1806 = vpack.c.b16 %v1346, %v1342
      %v1807 = vpack.c.b16 %v1347, %v1343
      %v1808 = vpack.c.b16 %v1352, %v1348
      %v1809 = vpack.c.b16 %v1353, %v1349
      %v1810 = vpack.c.b16 %v1354, %v1350
      %v1811 = vpack.c.b16 %v1355, %v1351
      %v1812 = vpack.c.b16 %v1360, %v1356
      %v1813 = vpack.c.b16 %v1361, %v1357
      %v1814 = vpack.c.b16 %v1362, %v1358
      %v1815 = vpack.c.b16 %v1363, %v1359
      %v1816 = vpack.c.b16 %v1368, %v1364
      %v1817 = vpack.c.b16 %v1369, %v1365
      %v1818 = vpack.c.b16 %v1370, %v1366
      %v1819 = vpack.c.b16 %v1371, %v1367
      %v1820 = vpack.c.b16 %v1376, %v1372
      %v1821 = vpack.c.b16 %v1377, %v1373
      %v1822 = vpack.c.b16 %v1378, %v1374
      %v1823 = vpack.c.b16 %v1379, %v1375
      %v1824 = vpack.c.b16 %v1384, %v1380
      %v1825 = vpack.c.b16 %v1385, %v1381
      %v1826 = vpack.c.b16 %v1386, %v1382
      %v1827 = vpack.c.b16 %v1387, %v1383
      %v1828 = vpack.c.b16 %v1392, %v1388
      %v1829 = vpack.c.b16 %v1393, %v1389
      %v1830 = vpack.c.b16 %v1394, %v1390
      %v1831 = vpack.c.b16 %v1395, %v1391
      %v1832 = vpack.c.b16 %v1400, %v1396
      %v1833 = vpack.c.b16 %v1401, %v1397
      %v1834 = vpack.c.b16 %v1402, %v1398
      %v1835 = vpack.c.b16 %v1403, %v1399
      %v1836 = vpack.c.b16 %v1408, %v1404
      %v1837 = vpack.c.b16 %v1409, %v1405
      %v1838 = vpack.c.b16 %v1410, %v1406
      %v1839 = vpack.c.b16 %v1411, %v1407
      %v1840 = vpack.c.b16 %v1416, %v1412
      %v1841 = vpack.c.b16 %v1417, %v1413
      %v1842 = vpack.c.b16 %v1418, %v1414
      %v1843 = vpack.c.b16 %v1419, %v1415
      %v1844 = vpack.c.b16 %v1424, %v1420
      %v1845 = vpack.c.b16 %v1425, %v1421
      %v1846 = vpack.c.b16 %v1426, %v1422
      %v1847 = vpack.c.b16 %v1427, %v1423
      %v1848 = vpack.c.b16 %v1432, %v1428
      %v1849 = vpack.c.b16 %v1433, %v1429
      %v1850 = vpack.c.b16 %v1434, %v1430
      %v1851 = vpack.c.b16 %v1435, %v1431
      %v1852 = vpack.c.b16 %v1440, %v1436
      %v1853 = vpack.c.b16 %v1441, %v1437
      %v1854 = vpack.c.b16 %v1442, %v1438
      %v1855 = vpack.c.b16 %v1443, %v1439
      %v1856 = vpack.c.b16 %v1448, %v1444
      %v1857 = vpack.c.b16 %v1449, %v1445
      %v1858 = vpack.c.b16 %v1450, %v1446
      %v1859 = vpack.c.b16 %v1451, %v1447
      %v1860 = vpack.c.b16 %v1456, %v1452
      %v1861 = vpack.c.b16 %v1457, %v1453
      %v1862 = vpack.c.b16 %v1458, %v1454
      %v1863 = vpack.c.b16 %v1459, %v1455
      %v1864 = vpack.c.b16 %v1464, %v1460
      %v1865 = vpack.c.b16 %v1465, %v1461
      %v1866 = vpack.c.b16 %v1466, %v1462
      %v1867 = vpack.c.b16 %v1467, %v1463
      %v1868 = vpack.c.b16 %v1472, %v1468
      %v1869 = vpack.c.b16 %v1473, %v1469
      %v1870 = vpack.c.b16 %v1474, %v1470
      %v1871 = vpack.c.b16 %v1475, %v1471
      %v1872 = vpack.c.b16 %v1480, %v1476
      %v1873 = vpack.c.b16 %v1481, %v1477
      %v1874 = vpack.c.b16 %v1482, %v1478
      %v1875 = vpack.c.b16 %v1483, %v1479
      %v1876 = vpack.c.b16 %v1488, %v1484
      %v1877 = vpack.c.b16 %v1489, %v1485
      %v1878 = vpack.c.b16 %v1490, %v1486
      %v1879 = vpack.c.b16 %v1491, %v1487
      %v1880 = vpack.c.b16 %v1496, %v1492
      %v1881 = vpack.c.b16 %v1497, %v1493
      %v1882 = vpack.c.b16 %v1498, %v1494
      %v1883 = vpack.c.b16 %v1499, %v1495
      %v1884 = vpack.c.b16 %v1504, %v1500
      %v1885 = vpack.c.b16 %v1505, %v1501
      %v1886 = vpack.c.b16 %v1506, %v1502
      %v1887 = vpack.c.b16 %v1507, %v1503
      %v1888 = vpack.c.b16 %v1512, %v1508
      %v1889 = vpack.c.b16 %v1513, %v1509
      %v1890 = vpack.c.b16 %v1514, %v1510
      %v1891 = vpack.c.b16 %v1515, %v1511
      %v1892 = vpack.c.b16 %v1520, %v1516
      %v1893 = vpack.c.b16 %v1521, %v1517
      %v1894 = vpack.c.b16 %v1522, %v1518
      %v1895 = vpack.c.b16 %v1523, %v1519
      %v1896 = vpack.c.b16 %v1528, %v1524
      %v1897 = vpack.c.b16 %v1529, %v1525
      %v1898 = vpack.c.b16 %v1530, %v1526
      %v1899 = vpack.c.b16 %v1531, %v1527
      %v1900 = vpack.c.b16 %v1536, %v1532
      %v1901 = vpack.c.b16 %v1537, %v1533
      %v1902 = vpack.c.b16 %v1538, %v1534
      %v1903 = vpack.c.b16 %v1539, %v1535
      %v1904 = vpack.c.b16 %v1544, %v1540
      %v1905 = vpack.c.b16 %v1545, %v1541
      %v1906 = vpack.c.b16 %v1546, %v1542
      %v1907 = vpack.c.b16 %v1547, %v1543
      %v1908 = vpack.c.b16 %v1552, %v1548
      %v1909 = vpack.c.b16 %v1553, %v1549
      %v1910 = vpack.c.b16 %v1554, %v1550
      %v1911 = vpack.c.b16 %v1555, %v1551
      %v1912 = vpack.c.b16 %v1560, %v1556
      %v1913 = vpack.c.b16 %v1561, %v1557
      %v1914 = vpack.c.b16 %v1562, %v1558
      %v1915 = vpack.c.b16 %v1563, %v1559
      %v1916 = vpack.c.b16 %v1568, %v1564
      %v1917 = vpack.c.b16 %v1569, %v1565
      %v1918 = vpack.c.b16 %v1570, %v1566
      %v1919 = vpack.c.b16 %v1571, %v1567
      %v1920 = vpack.c.b16 %v1576, %v1572
      %v1921 = vpack.c.b16 %v1577, %v1573
      %v1922 = vpack.c.b16 %v1578, %v1574
      %v1923 = vpack.c.b16 %v1579, %v1575
      %v1924 = vpack.c.b16 %v1584, %v1580
      %v1925 = vpack.c.b16 %v1585, %v1581
      %v1926 = vpack.c.b16 %v1586, %v1582
      %v1927 = vpack.c.b16 %v1587, %v1583
      %v1928 = vpack.c.b16 %v1592, %v1588
      %v1929 = vpack.c.b16 %v1593, %v1589
      %v1930 = vpack.c.b16 %v1594, %v1590
      %v1931 = vpack.c.b16 %v1595, %v1591
      %v1932 = vpack.c.b16 %v1600, %v1596
      %v1933 = vpack.c.b16 %v1601, %v1597
      %v1934 = vpack.c.b16 %v1602, %v1598
      %v1935 = vpack.c.b16 %v1603, %v1599
      %v1936 = vpack.c.b16 %v1608, %v1604
      %v1937 = vpack.c.b16 %v1609, %v1605
      %v1938 = vpack.c.b16 %v1610, %v1606
      %v1939 = vpack.c.b16 %v1611, %v1607
      %v1940 = vpack.c.b16 %v1616, %v1612
      %v1941 = vpack.c.b16 %v1617, %v1613
      %v1942 = vpack.c.b16 %v1618, %v1614
      %v1943 = vpack.c.b16 %v1619, %v1615
      %v1944 = vpack.c.b16 %v1624, %v1620
      %v1945 = vpack.c.b16 %v1625, %v1621
      %v1946 = vpack.c.b16 %v1626, %v1622
      %v1947 = vpack.c.b16 %v1627, %v1623
      %v1948 = vpack.c.b16 %v1632, %v1628
      %v1949 = vpack.c.b16 %v1633, %v1629
      %v1950 = vpack.c.b16 %v1634, %v1630
      %v1951 = vpack.c.b16 %v1635, %v1631
      %v1952 = vpack.c.b16 %v1640, %v1636
      %v1953 = vpack.c.b16 %v1641, %v1637
      %v1954 = vpack.c.b16 %v1642, %v1638
      %v1955 = vpack.c.b16 %v1643, %v1639
      %v1956 = vpack.c.b16 %v1648, %v1644
      %v1957 = vpack.c.b16 %v1649, %v1645
      %v1958 = vpack.c.b16 %v1650, %v1646
      %v1959 = vpack.c.b16 %v1651, %v1647
      %v1960 = vpack.c.b16 %v1656, %v1652
      %v1961 = vpack.c.b16 %v1657, %v1653
      %v1962 = vpack.c.b16 %v1658, %v1654
      %v1963 = vpack.c.b16 %v1659, %v1655
      %v1964 = vpack.c.b16 %v1664, %v1660
      %v1965 = vpack.c.b16 %v1665, %v1661
      %v1966 = vpack.c.b16 %v1666, %v1662
      %v1967 = vpack.c.b16 %v1667, %v1663
      %v1968 = vpack.c.b16 %v1672, %v1668
      %v1969 = vpack.c.b16 %v1673, %v1669
      %v1970 = vpack.c.b16 %v1674, %v1670
      %v1971 = vpack.c.b16 %v1675, %v1671
      %v1972 = vpack.c.b16 %v1680, %v1676
      %v1973 = vpack.c.b16 %v1681, %v1677
      %v1974 = vpack.c.b16 %v1682, %v1678
      %v1975 = vpack.c.b16 %v1683, %v1679
      %v1976 = vpack.c.b16 %v1688, %v1684
      %v1977 = vpack.c.b16 %v1689, %v1685
      %v1978 = vpack.c.b16 %v1690, %v1686
      %v1979 = vpack.c.b16 %v1691, %v1687
      %v1980 = vpack.c.b16 %v1696, %v1692
      %v1981 = vpack.c.b16 %v1697, %v1693
      %v1982 = vpack.c.b16 %v1698, %v1694
      %v1983 = vpack.c.b16 %v1699, %v1695
      %v1984 = vpack.c.b16 %v1704, %v1700
      %v1985 = vpack.c.b16 %v1705, %v1701
      %v1986 = vpack.c.b16 %v1706, %v1702
      %v1987 = vpack.c.b16 %v1707, %v1703
      %v1988 = vpack.c.b16 %v1712, %v1708
      %v1989 = vpack.c.b16 %v1713, %v1709
      %v1990 = vpack.c.b16 %v1714, %v1710
      %v1991 = vpack.c.b16 %v1715, %v1711
      %v1992 = vpack.c.b16 %v1720, %v1716
      %v1993 = vpack.c.b16 %v1721, %v1717
      %v1994 = vpack.c.b16 %v1722, %v1718
      %v1995 = vpack.c.b16 %v1723, %v1719
      %v1996 = vpack.c.b16 %v1728, %v1724
      %v1997 = vpack.c.b16 %v1729, %v1725
      %v1998 = vpack.c.b16 %v1730, %v1726
      %v1999 = vpack.c.b16 %v1731, %v1727
      %v2000 = vpack.c.b16 %v1736, %v1732
      %v2001 = vpack.c.b16 %v1737, %v1733
      %v2002 = vpack.c.b16 %v1738, %v1734
      %v2003 = vpack.c.b16 %v1739, %v1735
      %v2004 = vpack.c.b16 %v1744, %v1740
      %v2005 = vpack.c.b16 %v1745, %v1741
      %v2006 = vpack.c.b16 %v1746, %v1742
      %v2007 = vpack.c.b16 %v1747, %v1743
      %v2008 = vpack.c.b16 %v1752, %v1748
      %v2009 = vpack.c.b16 %v1753, %v1749
      %v2010 = vpack.c.b16 %v1754, %v1750
      %v2011 = vpack.c.b16 %v1755, %v1751
      %2268 = vmatprep.subr.bf16.mxu0 %v1757
      %2269 = vmatpush1.bf16.msra.mxu0 %v1756
      %2270 = vmatprep.subr.bf16.mxu0 %v1761
      %2271 = vmatpush1.bf16.msra.mxu0 %v1760
      %2272 = vmatprep.subr.bf16.mxu0 %v1765
      %2273 = vmatpush1.bf16.msra.mxu0 %v1764
      %2274 = vmatprep.subr.bf16.mxu0 %v1769
      %2275 = vmatpush1.bf16.msra.mxu0 %v1768
      %2276 = vmatprep.subr.bf16.mxu0 %v1773
      %2277 = vmatpush1.bf16.msra.mxu0 %v1772
      %2278 = vmatprep.subr.bf16.mxu0 %v1777
      %2279 = vmatpush1.bf16.msra.mxu0 %v1776
      %2280 = vmatprep.subr.bf16.mxu0 %v1781
      %2281 = vmatpush1.bf16.msra.mxu0 %v1780
      %2282 = vmatprep.subr.bf16.mxu0 %v1785
      %2283 = vmatpush1.bf16.msra.mxu0 %v1784
      %2284 = vmatprep.subr.bf16.mxu0 %v1789
      %2285 = vmatpush1.bf16.msra.mxu0 %v1788
      %2286 = vmatprep.subr.bf16.mxu0 %v1793
      %2287 = vmatpush1.bf16.msra.mxu0 %v1792
      %2288 = vmatprep.subr.bf16.mxu0 %v1797
      %2289 = vmatpush1.bf16.msra.mxu0 %v1796
      %2290 = vmatprep.subr.bf16.mxu0 %v1801
      %2291 = vmatpush1.bf16.msra.mxu0 %v1800
      %2292 = vmatprep.subr.bf16.mxu0 %v1805
      %2293 = vmatpush1.bf16.msra.mxu0 %v1804
      %2294 = vmatprep.subr.bf16.mxu0 %v1809
      %2295 = vmatpush1.bf16.msra.mxu0 %v1808
      %2296 = vmatprep.subr.bf16.mxu0 %v1813
      %2297 = vmatpush1.bf16.msra.mxu0 %v1812
      %2298 = vmatprep.subr.bf16.mxu0 %v1817
      %2299 = vmatpush1.bf16.msra.mxu0 %v1816
      %2300 = vmatprep.mubr.bf16.mxu0 %v829
      %2301 = vmatmul.mubr.bf16.gmra.mrb[0].mxu0 %v828
      %v2302 = vpop.f32.mrb[0].mxu0
      %v2303 = vadd.f32 %v575, %v2302
      %v2304 = vpop.f32.mrb[0].mxu0
      %v2305 = vadd.f32 %v579, %v2304
      %v2306 = vpop.f32.mrb[0].mxu0
      %v2307 = vadd.f32 %v575, %v2306
      %v2308 = vpop.f32.mrb[0].mxu0
      %v2309 = vadd.f32 %v579, %v2308
      %2310 = vmatprep.mubr.bf16.mxu0 %v837
      %2311 = vmatmul.mubr.bf16.gmra.mrb[0].mxu0 %v836
      %v2312 = vpop.f32.mrb[0].mxu0
      %v2313 = vadd.f32 %v575, %v2312
      %v2314 = vpop.f32.mrb[0].mxu0
      %v2315 = vadd.f32 %v579, %v2314
      %v2316 = vpop.f32.mrb[0].mxu0
      %v2317 = vadd.f32 %v575, %v2316
      %v2318 = vpop.f32.mrb[0].mxu0
      %v2319 = vadd.f32 %v579, %v2318
      %2320 = vmatprep.mubr.bf16.mxu0 %v845
      %2321 = vmatmul.mubr.bf16.gmra.mrb[0].mxu0 %v844
      %v2322 = vpop.f32.mrb[0].mxu0
      %v2323 = vadd.f32 %v575, %v2322
      %v2324 = vpop.f32.mrb[0].mxu0
      %v2325 = vadd.f32 %v579, %v2324
      %v2326 = vpop.f32.mrb[0].mxu0
      %v2327 = vadd.f32 %v575, %v2326
      %v2328 = vpop.f32.mrb[0].mxu0
      %v2329 = vadd.f32 %v579, %v2328
      %2330 = vmatprep.mubr.bf16.mxu0 %v853
      %2331 = vmatmul.mubr.bf16.gmra.mrb[0].mxu0 %v852
      %v2332 = vpop.f32.mrb[0].mxu0
      %v2333 = vadd.f32 %v575, %v2332
      %v2334 = vpop.f32.mrb[0].mxu0
      %v2335 = vadd.f32 %v579, %v2334
      %v2336 = vpop.f32.mrb[0].mxu0
      %v2337 = vadd.f32 %v575, %v2336
      %v2338 = vpop.f32.mrb[0].mxu0
      %v2339 = vadd.f32 %v579, %v2338
      %2340 = vmatprep.mubr.bf16.mxu0 %v861
      %2341 = vmatmul.mubr.bf16.gmra.mrb[0].mxu0 %v860
      %v2342 = vpop.f32.mrb[0].mxu0
      %v2343 = vadd.f32 %v575, %v2342
      %v2344 = vpop.f32.mrb[0].mxu0
      %v2345 = vadd.f32 %v579, %v2344
      %v2346 = vpop.f32.mrb[0].mxu0
      %v2347 = vadd.f32 %v575, %v2346
      %v2348 = vpop.f32.mrb[0].mxu0
      %v2349 = vadd.f32 %v579, %v2348
      %2350 = vmatprep.mubr.bf16.mxu0 %v869
      %2351 = vmatmul.mubr.bf16.gmra.mrb[0].mxu0 %v868
      %v2352 = vpop.f32.mrb[0].mxu0
      %v2353 = vadd.f32 %v575, %v2352
      %v2354 = vpop.f32.mrb[0].mxu0
      %v2355 = vadd.f32 %v579, %v2354
      %v2356 = vpop.f32.mrb[0].mxu0
      %v2357 = vadd.f32 %v575, %v2356
      %v2358 = vpop.f32.mrb[0].mxu0
      %v2359 = vadd.f32 %v579, %v2358
      %2360 = vmatprep.mubr.bf16.mxu0 %v877
      %2361 = vmatmul.mubr.bf16.gmra.mrb[0].mxu0 %v876
      %v2362 = vpop.f32.mrb[0].mxu0
      %v2363 = vadd.f32 %v575, %v2362
      %v2364 = vpop.f32.mrb[0].mxu0
      %v2365 = vadd.f32 %v579, %v2364
      %v2366 = vpop.f32.mrb[0].mxu0
      %v2367 = vadd.f32 %v575, %v2366
      %v2368 = vpop.f32.mrb[0].mxu0
      %v2369 = vadd.f32 %v579, %v2368
      %2370 = vmatprep.mubr.bf16.mxu0 %v885
      %2371 = vmatmul.mubr.bf16.gmra.mrb[0].mxu0 %v884
      %v2372 = vpop.f32.mrb[0].mxu0
      %v2373 = vadd.f32 %v575, %v2372
      %v2374 = vpop.f32.mrb[0].mxu0
      %v2375 = vadd.f32 %v579, %v2374
      %v2376 = vpop.f32.mrb[0].mxu0
      %v2377 = vadd.f32 %v575, %v2376
      %v2378 = vpop.f32.mrb[0].mxu0
      %v2379 = vadd.f32 %v579, %v2378
      %2380 = vmatprep.mubr.bf16.mxu0 %v893
      %2381 = vmatmul.mubr.bf16.gmra.mrb[0].mxu0 %v892
      %v2382 = vpop.f32.mrb[0].mxu0
      %v2383 = vadd.f32 %v575, %v2382
      %v2384 = vpop.f32.mrb[0].mxu0
      %v2385 = vadd.f32 %v579, %v2384
      %v2386 = vpop.f32.mrb[0].mxu0
      %v2387 = vadd.f32 %v575, %v2386
      %v2388 = vpop.f32.mrb[0].mxu0
      %v2389 = vadd.f32 %v579, %v2388
      %2390 = vmatprep.mubr.bf16.mxu0 %v901
      %2391 = vmatmul.mubr.bf16.gmra.mrb[0].mxu0 %v900
      %v2392 = vpop.f32.mrb[0].mxu0
      %v2393 = vadd.f32 %v575, %v2392
      %v2394 = vpop.f32.mrb[0].mxu0
      %v2395 = vadd.f32 %v579, %v2394
      %v2396 = vpop.f32.mrb[0].mxu0
      %v2397 = vadd.f32 %v575, %v2396
      %v2398 = vpop.f32.mrb[0].mxu0
      %v2399 = vadd.f32 %v579, %v2398
      %2400 = vdwg.mxu0
      %2401 = vmatprep.subr.bf16.mxu0 %v1821
      %2402 = vmatpush1.bf16.msra.mxu0 %v1820
      %2403 = vmatprep.subr.bf16.mxu0 %v1825
      %2404 = vmatpush1.bf16.msra.mxu0 %v1824
      %2405 = vmatprep.subr.bf16.mxu0 %v1829
      %2406 = vmatpush1.bf16.msra.mxu0 %v1828
      %2407 = vmatprep.subr.bf16.mxu0 %v1833
      %2408 = vmatpush1.bf16.msra.mxu0 %v1832
      %2409 = vmatprep.subr.bf16.mxu0 %v1837
      %2410 = vmatpush1.bf16.msra.mxu0 %v1836
      %2411 = vmatprep.subr.bf16.mxu0 %v1841
      %2412 = vmatpush1.bf16.msra.mxu0 %v1840
      %2413 = vmatprep.subr.bf16.mxu0 %v1845
      %2414 = vmatpush1.bf16.msra.mxu0 %v1844
      %2415 = vmatprep.subr.bf16.mxu0 %v1849
      %2416 = vmatpush1.bf16.msra.mxu0 %v1848
      %2417 = vmatprep.subr.bf16.mxu0 %v1853
      %2418 = vmatpush1.bf16.msra.mxu0 %v1852
      %2419 = vmatprep.subr.bf16.mxu0 %v1857
      %2420 = vmatpush1.bf16.msra.mxu0 %v1856
      %2421 = vmatprep.subr.bf16.mxu0 %v1861
      %2422 = vmatpush1.bf16.msra.mxu0 %v1860
      %2423 = vmatprep.subr.bf16.mxu0 %v1865
      %2424 = vmatpush1.bf16.msra.mxu0 %v1864
      %2425 = vmatprep.subr.bf16.mxu0 %v1869
      %2426 = vmatpush1.bf16.msra.mxu0 %v1868
      %2427 = vmatprep.subr.bf16.mxu0 %v1873
      %2428 = vmatpush1.bf16.msra.mxu0 %v1872
      %2429 = vmatprep.subr.bf16.mxu0 %v1877
      %2430 = vmatpush1.bf16.msra.mxu0 %v1876
      %2431 = vmatprep.subr.bf16.mxu0 %v1881
      %2432 = vmatpush1.bf16.msra.mxu0 %v1880
      %2433 = vmatprep.mubr.bf16.mxu0 %v831
      %2434 = vmatmul.mubr.bf16.gmra.mrb[0].mxu0 %v830
      %v2435 = vpop.f32.mrb[0].mxu0
      %v2436 = vadd.f32 %v2303, %v2435
      %v2437 = vpop.f32.mrb[0].mxu0
      %v2438 = vadd.f32 %v2305, %v2437
      %v2439 = vpop.f32.mrb[0].mxu0
      %v2440 = vadd.f32 %v2307, %v2439
      %v2441 = vpop.f32.mrb[0].mxu0
      %v2442 = vadd.f32 %v2309, %v2441
      %2443 = vmatprep.mubr.bf16.mxu0 %v839
      %2444 = vmatmul.mubr.bf16.gmra.mrb[0].mxu0 %v838
      %v2445 = vpop.f32.mrb[0].mxu0
      %v2446 = vadd.f32 %v2313, %v2445
      %v2447 = vpop.f32.mrb[0].mxu0
      %v2448 = vadd.f32 %v2315, %v2447
      %v2449 = vpop.f32.mrb[0].mxu0
      %v2450 = vadd.f32 %v2317, %v2449
      %v2451 = vpop.f32.mrb[0].mxu0
      %v2452 = vadd.f32 %v2319, %v2451
      %2453 = vmatprep.mubr.bf16.mxu0 %v847
      %2454 = vmatmul.mubr.bf16.gmra.mrb[0].mxu0 %v846
      %v2455 = vpop.f32.mrb[0].mxu0
      %v2456 = vadd.f32 %v2323, %v2455
      %v2457 = vpop.f32.mrb[0].mxu0
      %v2458 = vadd.f32 %v2325, %v2457
      %v2459 = vpop.f32.mrb[0].mxu0
      %v2460 = vadd.f32 %v2327, %v2459
      %v2461 = vpop.f32.mrb[0].mxu0
      %v2462 = vadd.f32 %v2329, %v2461
      %2463 = vmatprep.mubr.bf16.mxu0 %v855
      %2464 = vmatmul.mubr.bf16.gmra.mrb[0].mxu0 %v854
      %v2465 = vpop.f32.mrb[0].mxu0
      %v2466 = vadd.f32 %v2333, %v2465
      %v2467 = vpop.f32.mrb[0].mxu0
      %v2468 = vadd.f32 %v2335, %v2467
      %v2469 = vpop.f32.mrb[0].mxu0
      %v2470 = vadd.f32 %v2337, %v2469
      %v2471 = vpop.f32.mrb[0].mxu0
      %v2472 = vadd.f32 %v2339, %v2471
      %2473 = vmatprep.mubr.bf16.mxu0 %v863
      %2474 = vmatmul.mubr.bf16.gmra.mrb[0].mxu0 %v862
      %v2475 = vpop.f32.mrb[0].mxu0
      %v2476 = vadd.f32 %v2343, %v2475
      %v2477 = vpop.f32.mrb[0].mxu0
      %v2478 = vadd.f32 %v2345, %v2477
      %v2479 = vpop.f32.mrb[0].mxu0
      %v2480 = vadd.f32 %v2347, %v2479
      %v2481 = vpop.f32.mrb[0].mxu0
      %v2482 = vadd.f32 %v2349, %v2481
      %2483 = vmatprep.mubr.bf16.mxu0 %v871
      %2484 = vmatmul.mubr.bf16.gmra.mrb[0].mxu0 %v870
      %v2485 = vpop.f32.mrb[0].mxu0
      %v2486 = vadd.f32 %v2353, %v2485
      %v2487 = vpop.f32.mrb[0].mxu0
      %v2488 = vadd.f32 %v2355, %v2487
      %v2489 = vpop.f32.mrb[0].mxu0
      %v2490 = vadd.f32 %v2357, %v2489
      %v2491 = vpop.f32.mrb[0].mxu0
      %v2492 = vadd.f32 %v2359, %v2491
      %2493 = vmatprep.mubr.bf16.mxu0 %v879
      %2494 = vmatmul.mubr.bf16.gmra.mrb[0].mxu0 %v878
      %v2495 = vpop.f32.mrb[0].mxu0
      %v2496 = vadd.f32 %v2363, %v2495
      %v2497 = vpop.f32.mrb[0].mxu0
      %v2498 = vadd.f32 %v2365, %v2497
      %v2499 = vpop.f32.mrb[0].mxu0
      %v2500 = vadd.f32 %v2367, %v2499
      %v2501 = vpop.f32.mrb[0].mxu0
      %v2502 = vadd.f32 %v2369, %v2501
      %2503 = vmatprep.mubr.bf16.mxu0 %v887
      %2504 = vmatmul.mubr.bf16.gmra.mrb[0].mxu0 %v886
      %v2505 = vpop.f32.mrb[0].mxu0
      %v2506 = vadd.f32 %v2373, %v2505
      %v2507 = vpop.f32.mrb[0].mxu0
      %v2508 = vadd.f32 %v2375, %v2507
      %v2509 = vpop.f32.mrb[0].mxu0
      %v2510 = vadd.f32 %v2377, %v2509
      %v2511 = vpop.f32.mrb[0].mxu0
      %v2512 = vadd.f32 %v2379, %v2511
      %2513 = vmatprep.mubr.bf16.mxu0 %v895
      %2514 = vmatmul.mubr.bf16.gmra.mrb[0].mxu0 %v894
      %v2515 = vpop.f32.mrb[0].mxu0
      %v2516 = vadd.f32 %v2383, %v2515
      %v2517 = vpop.f32.mrb[0].mxu0
      %v2518 = vadd.f32 %v2385, %v2517
      %v2519 = vpop.f32.mrb[0].mxu0
      %v2520 = vadd.f32 %v2387, %v2519
      %v2521 = vpop.f32.mrb[0].mxu0
      %v2522 = vadd.f32 %v2389, %v2521
      %2523 = vmatprep.mubr.bf16.mxu0 %v903
      %2524 = vmatmul.mubr.bf16.gmra.mrb[0].mxu0 %v902
      %v2525 = vpop.f32.mrb[0].mxu0
      %v2526 = vadd.f32 %v2393, %v2525
      %v2527 = vpop.f32.mrb[0].mxu0
      %v2528 = vadd.f32 %v2395, %v2527
      %v2529 = vpop.f32.mrb[0].mxu0
      %v2530 = vadd.f32 %v2397, %v2529
      %v2531 = vpop.f32.mrb[0].mxu0
      %v2532 = vadd.f32 %v2399, %v2531
      %2533 = vdwg.mxu0
      %2534 = vmatprep.subr.bf16.mxu0 %v1885
      %2535 = vmatpush1.bf16.msra.mxu0 %v1884
      %2536 = vmatprep.subr.bf16.mxu0 %v1889
      %2537 = vmatpush1.bf16.msra.mxu0 %v1888
      %2538 = vmatprep.subr.bf16.mxu0 %v1893
      %2539 = vmatpush1.bf16.msra.mxu0 %v1892
      %2540 = vmatprep.subr.bf16.mxu0 %v1897
      %2541 = vmatpush1.bf16.msra.mxu0 %v1896
      %2542 = vmatprep.subr.bf16.mxu0 %v1901
      %2543 = vmatpush1.bf16.msra.mxu0 %v1900
      %2544 = vmatprep.subr.bf16.mxu0 %v1905
      %2545 = vmatpush1.bf16.msra.mxu0 %v1904
      %2546 = vmatprep.subr.bf16.mxu0 %v1909
      %2547 = vmatpush1.bf16.msra.mxu0 %v1908
      %2548 = vmatprep.subr.bf16.mxu0 %v1913
      %2549 = vmatpush1.bf16.msra.mxu0 %v1912
      %2550 = vmatprep.subr.bf16.mxu0 %v1917
      %2551 = vmatpush1.bf16.msra.mxu0 %v1916
      %2552 = vmatprep.subr.bf16.mxu0 %v1921
      %2553 = vmatpush1.bf16.msra.mxu0 %v1920
      %2554 = vmatprep.subr.bf16.mxu0 %v1925
      %2555 = vmatpush1.bf16.msra.mxu0 %v1924
      %2556 = vmatprep.subr.bf16.mxu0 %v1929
      %2557 = vmatpush1.bf16.msra.mxu0 %v1928
      %2558 = vmatprep.subr.bf16.mxu0 %v1933
      %2559 = vmatpush1.bf16.msra.mxu0 %v1932
      %2560 = vmatprep.subr.bf16.mxu0 %v1937
      %2561 = vmatpush1.bf16.msra.mxu0 %v1936
      %2562 = vmatprep.subr.bf16.mxu0 %v1941
      %2563 = vmatpush1.bf16.msra.mxu0 %v1940
      %2564 = vmatprep.subr.bf16.mxu0 %v1945
      %2565 = vmatpush1.bf16.msra.mxu0 %v1944
      %2566 = vmatprep.mubr.bf16.mxu0 %v833
      %2567 = vmatmul.mubr.bf16.gmra.mrb[0].mxu0 %v832
      %v2568 = vpop.f32.mrb[0].mxu0
      %v2569 = vadd.f32 %v2436, %v2568
      %v2570 = vpop.f32.mrb[0].mxu0
      %v2571 = vadd.f32 %v2438, %v2570
      %v2572 = vpop.f32.mrb[0].mxu0
      %v2573 = vadd.f32 %v2440, %v2572
      %v2574 = vpop.f32.mrb[0].mxu0
      %v2575 = vadd.f32 %v2442, %v2574
      %2576 = vmatprep.mubr.bf16.mxu0 %v841
      %2577 = vmatmul.mubr.bf16.gmra.mrb[0].mxu0 %v840
      %v2578 = vpop.f32.mrb[0].mxu0
      %v2579 = vadd.f32 %v2446, %v2578
      %v2580 = vpop.f32.mrb[0].mxu0
      %v2581 = vadd.f32 %v2448, %v2580
      %v2582 = vpop.f32.mrb[0].mxu0
      %v2583 = vadd.f32 %v2450, %v2582
      %v2584 = vpop.f32.mrb[0].mxu0
      %v2585 = vadd.f32 %v2452, %v2584
      %2586 = vmatprep.mubr.bf16.mxu0 %v849
      %2587 = vmatmul.mubr.bf16.gmra.mrb[0].mxu0 %v848
      %v2588 = vpop.f32.mrb[0].mxu0
      %v2589 = vadd.f32 %v2456, %v2588
      %v2590 = vpop.f32.mrb[0].mxu0
      %v2591 = vadd.f32 %v2458, %v2590
      %v2592 = vpop.f32.mrb[0].mxu0
      %v2593 = vadd.f32 %v2460, %v2592
      %v2594 = vpop.f32.mrb[0].mxu0
      %v2595 = vadd.f32 %v2462, %v2594
      %2596 = vmatprep.mubr.bf16.mxu0 %v857
      %2597 = vmatmul.mubr.bf16.gmra.mrb[0].mxu0 %v856
      %v2598 = vpop.f32.mrb[0].mxu0
      %v2599 = vadd.f32 %v2466, %v2598
      %v2600 = vpop.f32.mrb[0].mxu0
      %v2601 = vadd.f32 %v2468, %v2600
      %v2602 = vpop.f32.mrb[0].mxu0
      %v2603 = vadd.f32 %v2470, %v2602
      %v2604 = vpop.f32.mrb[0].mxu0
      %v2605 = vadd.f32 %v2472, %v2604
      %2606 = vmatprep.mubr.bf16.mxu0 %v865
      %2607 = vmatmul.mubr.bf16.gmra.mrb[0].mxu0 %v864
      %v2608 = vpop.f32.mrb[0].mxu0
      %v2609 = vadd.f32 %v2476, %v2608
      %v2610 = vpop.f32.mrb[0].mxu0
      %v2611 = vadd.f32 %v2478, %v2610
      %v2612 = vpop.f32.mrb[0].mxu0
      %v2613 = vadd.f32 %v2480, %v2612
      %v2614 = vpop.f32.mrb[0].mxu0
      %v2615 = vadd.f32 %v2482, %v2614
      %2616 = vmatprep.mubr.bf16.mxu0 %v873
      %2617 = vmatmul.mubr.bf16.gmra.mrb[0].mxu0 %v872
      %v2618 = vpop.f32.mrb[0].mxu0
      %v2619 = vadd.f32 %v2486, %v2618
      %v2620 = vpop.f32.mrb[0].mxu0
      %v2621 = vadd.f32 %v2488, %v2620
      %v2622 = vpop.f32.mrb[0].mxu0
      %v2623 = vadd.f32 %v2490, %v2622
      %v2624 = vpop.f32.mrb[0].mxu0
      %v2625 = vadd.f32 %v2492, %v2624
      %2626 = vmatprep.mubr.bf16.mxu0 %v881
      %2627 = vmatmul.mubr.bf16.gmra.mrb[0].mxu0 %v880
      %v2628 = vpop.f32.mrb[0].mxu0
      %v2629 = vadd.f32 %v2496, %v2628
      %v2630 = vpop.f32.mrb[0].mxu0
      %v2631 = vadd.f32 %v2498, %v2630
      %v2632 = vpop.f32.mrb[0].mxu0
      %v2633 = vadd.f32 %v2500, %v2632
      %v2634 = vpop.f32.mrb[0].mxu0
      %v2635 = vadd.f32 %v2502, %v2634
      %2636 = vmatprep.mubr.bf16.mxu0 %v889
      %2637 = vmatmul.mubr.bf16.gmra.mrb[0].mxu0 %v888
      %v2638 = vpop.f32.mrb[0].mxu0
      %v2639 = vadd.f32 %v2506, %v2638
      %v2640 = vpop.f32.mrb[0].mxu0
      %v2641 = vadd.f32 %v2508, %v2640
      %v2642 = vpop.f32.mrb[0].mxu0
      %v2643 = vadd.f32 %v2510, %v2642
      %v2644 = vpop.f32.mrb[0].mxu0
      %v2645 = vadd.f32 %v2512, %v2644
      %2646 = vmatprep.mubr.bf16.mxu0 %v897
      %2647 = vmatmul.mubr.bf16.gmra.mrb[0].mxu0 %v896
      %v2648 = vpop.f32.mrb[0].mxu0
      %v2649 = vadd.f32 %v2516, %v2648
      %v2650 = vpop.f32.mrb[0].mxu0
      %v2651 = vadd.f32 %v2518, %v2650
      %v2652 = vpop.f32.mrb[0].mxu0
      %v2653 = vadd.f32 %v2520, %v2652
      %v2654 = vpop.f32.mrb[0].mxu0
      %v2655 = vadd.f32 %v2522, %v2654
      %2656 = vmatprep.mubr.bf16.mxu0 %v905
      %2657 = vmatmul.mubr.bf16.gmra.mrb[0].mxu0 %v904
      %v2658 = vpop.f32.mrb[0].mxu0
      %v2659 = vadd.f32 %v2526, %v2658
      %v2660 = vpop.f32.mrb[0].mxu0
      %v2661 = vadd.f32 %v2528, %v2660
      %v2662 = vpop.f32.mrb[0].mxu0
      %v2663 = vadd.f32 %v2530, %v2662
      %v2664 = vpop.f32.mrb[0].mxu0
      %v2665 = vadd.f32 %v2532, %v2664
      %2666 = vdwg.mxu0
      %2667 = vmatprep.subr.bf16.mxu0 %v1949
      %2668 = vmatpush1.bf16.msra.mxu0 %v1948
      %2669 = vmatprep.subr.bf16.mxu0 %v1953
      %2670 = vmatpush1.bf16.msra.mxu0 %v1952
      %2671 = vmatprep.subr.bf16.mxu0 %v1957
      %2672 = vmatpush1.bf16.msra.mxu0 %v1956
      %2673 = vmatprep.subr.bf16.mxu0 %v1961
      %2674 = vmatpush1.bf16.msra.mxu0 %v1960
      %2675 = vmatprep.subr.bf16.mxu0 %v1965
      %2676 = vmatpush1.bf16.msra.mxu0 %v1964
      %2677 = vmatprep.subr.bf16.mxu0 %v1969
      %2678 = vmatpush1.bf16.msra.mxu0 %v1968
      %2679 = vmatprep.subr.bf16.mxu0 %v1973
      %2680 = vmatpush1.bf16.msra.mxu0 %v1972
      %2681 = vmatprep.subr.bf16.mxu0 %v1977
      %2682 = vmatpush1.bf16.msra.mxu0 %v1976
      %2683 = vmatprep.subr.bf16.mxu0 %v1981
      %2684 = vmatpush1.bf16.msra.mxu0 %v1980
      %2685 = vmatprep.subr.bf16.mxu0 %v1985
      %2686 = vmatpush1.bf16.msra.mxu0 %v1984
      %2687 = vmatprep.subr.bf16.mxu0 %v1989
      %2688 = vmatpush1.bf16.msra.mxu0 %v1988
      %2689 = vmatprep.subr.bf16.mxu0 %v1993
      %2690 = vmatpush1.bf16.msra.mxu0 %v1992
      %2691 = vmatprep.subr.bf16.mxu0 %v1997
      %2692 = vmatpush1.bf16.msra.mxu0 %v1996
      %2693 = vmatprep.subr.bf16.mxu0 %v2001
      %2694 = vmatpush1.bf16.msra.mxu0 %v2000
      %2695 = vmatprep.subr.bf16.mxu0 %v2005
      %2696 = vmatpush1.bf16.msra.mxu0 %v2004
      %2697 = vmatprep.subr.bf16.mxu0 %v2009
      %2698 = vmatpush1.bf16.msra.mxu0 %v2008
      %2699 = vmatprep.mubr.bf16.mxu0 %v835
      %2700 = vmatmul.mubr.bf16.gmra.mrb[0].mxu0 %v834
      %v2701 = vpop.f32.mrb[0].mxu0
      %v2702 = vadd.f32 %v2569, %v2701
      %v2703 = vpop.f32.mrb[0].mxu0
      %v2704 = vadd.f32 %v2571, %v2703
      %v2705 = vpop.f32.mrb[0].mxu0
      %v2706 = vadd.f32 %v2573, %v2705
      %v2707 = vpop.f32.mrb[0].mxu0
      %v2708 = vadd.f32 %v2575, %v2707
      %2709 = vmatprep.mubr.bf16.mxu0 %v843
      %2710 = vmatmul.mubr.bf16.gmra.mrb[0].mxu0 %v842
      %v2711 = vpop.f32.mrb[0].mxu0
      %v2712 = vadd.f32 %v2579, %v2711
      %v2713 = vpop.f32.mrb[0].mxu0
      %v2714 = vadd.f32 %v2581, %v2713
      %v2715 = vpop.f32.mrb[0].mxu0
      %v2716 = vadd.f32 %v2583, %v2715
      %v2717 = vpop.f32.mrb[0].mxu0
      %v2718 = vadd.f32 %v2585, %v2717
      %2719 = vmatprep.mubr.bf16.mxu0 %v851
      %2720 = vmatmul.mubr.bf16.gmra.mrb[0].mxu0 %v850
      %v2721 = vpop.f32.mrb[0].mxu0
      %v2722 = vadd.f32 %v2589, %v2721
      %v2723 = vpop.f32.mrb[0].mxu0
      %v2724 = vadd.f32 %v2591, %v2723
      %v2725 = vpop.f32.mrb[0].mxu0
      %v2726 = vadd.f32 %v2593, %v2725
      %v2727 = vpop.f32.mrb[0].mxu0
      %v2728 = vadd.f32 %v2595, %v2727
      %2729 = vmatprep.mubr.bf16.mxu0 %v859
      %2730 = vmatmul.mubr.bf16.gmra.mrb[0].mxu0 %v858
      %v2731 = vpop.f32.mrb[0].mxu0
      %v2732 = vadd.f32 %v2599, %v2731
      %v2733 = vpop.f32.mrb[0].mxu0
      %v2734 = vadd.f32 %v2601, %v2733
      %v2735 = vpop.f32.mrb[0].mxu0
      %v2736 = vadd.f32 %v2603, %v2735
      %v2737 = vpop.f32.mrb[0].mxu0
      %v2738 = vadd.f32 %v2605, %v2737
      %2739 = vmatprep.mubr.bf16.mxu0 %v867
      %2740 = vmatmul.mubr.bf16.gmra.mrb[0].mxu0 %v866
      %v2741 = vpop.f32.mrb[0].mxu0
      %v2742 = vadd.f32 %v2609, %v2741
      %v2743 = vpop.f32.mrb[0].mxu0
      %v2744 = vadd.f32 %v2611, %v2743
      %v2745 = vpop.f32.mrb[0].mxu0
      %v2746 = vadd.f32 %v2613, %v2745
      %v2747 = vpop.f32.mrb[0].mxu0
      %v2748 = vadd.f32 %v2615, %v2747
      %2749 = vmatprep.mubr.bf16.mxu0 %v875
      %2750 = vmatmul.mubr.bf16.gmra.mrb[0].mxu0 %v874
      %v2751 = vpop.f32.mrb[0].mxu0
      %v2752 = vadd.f32 %v2619, %v2751
      %v2753 = vpop.f32.mrb[0].mxu0
      %v2754 = vadd.f32 %v2621, %v2753
      %v2755 = vpop.f32.mrb[0].mxu0
      %v2756 = vadd.f32 %v2623, %v2755
      %v2757 = vpop.f32.mrb[0].mxu0
      %v2758 = vadd.f32 %v2625, %v2757
      %2759 = vmatprep.mubr.bf16.mxu0 %v883
      %2760 = vmatmul.mubr.bf16.gmra.mrb[0].mxu0 %v882
      %v2761 = vpop.f32.mrb[0].mxu0
      %v2762 = vadd.f32 %v2629, %v2761
      %v2763 = vpop.f32.mrb[0].mxu0
      %v2764 = vadd.f32 %v2631, %v2763
      %v2765 = vpop.f32.mrb[0].mxu0
      %v2766 = vadd.f32 %v2633, %v2765
      %v2767 = vpop.f32.mrb[0].mxu0
      %v2768 = vadd.f32 %v2635, %v2767
      %2769 = vmatprep.mubr.bf16.mxu0 %v891
      %2770 = vmatmul.mubr.bf16.gmra.mrb[0].mxu0 %v890
      %v2771 = vpop.f32.mrb[0].mxu0
      %v2772 = vadd.f32 %v2639, %v2771
      %v2773 = vpop.f32.mrb[0].mxu0
      %v2774 = vadd.f32 %v2641, %v2773
      %v2775 = vpop.f32.mrb[0].mxu0
      %v2776 = vadd.f32 %v2643, %v2775
      %v2777 = vpop.f32.mrb[0].mxu0
      %v2778 = vadd.f32 %v2645, %v2777
      %2779 = vmatprep.mubr.bf16.mxu0 %v899
      %2780 = vmatmul.mubr.bf16.gmra.mrb[0].mxu0 %v898
      %v2781 = vpop.f32.mrb[0].mxu0
      %v2782 = vadd.f32 %v2649, %v2781
      %v2783 = vpop.f32.mrb[0].mxu0
      %v2784 = vadd.f32 %v2651, %v2783
      %v2785 = vpop.f32.mrb[0].mxu0
      %v2786 = vadd.f32 %v2653, %v2785
      %v2787 = vpop.f32.mrb[0].mxu0
      %v2788 = vadd.f32 %v2655, %v2787
      %2789 = vmatprep.mubr.bf16.mxu0 %v907
      %2790 = vmatmul.mubr.bf16.gmra.mrb[0].mxu0 %v906
      %v2791 = vpop.f32.mrb[0].mxu0
      %v2792 = vadd.f32 %v2659, %v2791
      %v2793 = vpop.f32.mrb[0].mxu0
      %v2794 = vadd.f32 %v2661, %v2793
      %v2795 = vpop.f32.mrb[0].mxu0
      %v2796 = vadd.f32 %v2663, %v2795
      %v2797 = vpop.f32.mrb[0].mxu0
      %v2798 = vadd.f32 %v2665, %v2797
      %2799 = vdwg.mxu0
      %2800 = vmatprep.subr.bf16.mxu0 %v1759
      %2801 = vmatpush1.bf16.msra.mxu0 %v1758
      %2802 = vmatprep.subr.bf16.mxu0 %v1763
      %2803 = vmatpush1.bf16.msra.mxu0 %v1762
      %2804 = vmatprep.subr.bf16.mxu0 %v1767
      %2805 = vmatpush1.bf16.msra.mxu0 %v1766
      %2806 = vmatprep.subr.bf16.mxu0 %v1771
      %2807 = vmatpush1.bf16.msra.mxu0 %v1770
      %2808 = vmatprep.subr.bf16.mxu0 %v1775
      %2809 = vmatpush1.bf16.msra.mxu0 %v1774
      %2810 = vmatprep.subr.bf16.mxu0 %v1779
      %2811 = vmatpush1.bf16.msra.mxu0 %v1778
      %2812 = vmatprep.subr.bf16.mxu0 %v1783
      %2813 = vmatpush1.bf16.msra.mxu0 %v1782
      %2814 = vmatprep.subr.bf16.mxu0 %v1787
      %2815 = vmatpush1.bf16.msra.mxu0 %v1786
      %2816 = vmatprep.subr.bf16.mxu0 %v1791
      %2817 = vmatpush1.bf16.msra.mxu0 %v1790
      %2818 = vmatprep.subr.bf16.mxu0 %v1795
      %2819 = vmatpush1.bf16.msra.mxu0 %v1794
      %2820 = vmatprep.subr.bf16.mxu0 %v1799
      %2821 = vmatpush1.bf16.msra.mxu0 %v1798
      %2822 = vmatprep.subr.bf16.mxu0 %v1803
      %2823 = vmatpush1.bf16.msra.mxu0 %v1802
      %2824 = vmatprep.subr.bf16.mxu0 %v1807
      %2825 = vmatpush1.bf16.msra.mxu0 %v1806
      %2826 = vmatprep.subr.bf16.mxu0 %v1811
      %2827 = vmatpush1.bf16.msra.mxu0 %v1810
      %2828 = vmatprep.subr.bf16.mxu0 %v1815
      %2829 = vmatpush1.bf16.msra.mxu0 %v1814
      %2830 = vmatprep.subr.bf16.mxu0 %v1819
      %2831 = vmatpush1.bf16.msra.mxu0 %v1818
      %2832 = vmatprep.mubr.bf16.mxu0 %v829
      %2833 = vmatmul.mubr.bf16.gmra.mrb[0].mxu0 %v828
      %v2834 = vpop.f32.mrb[0].mxu0
      %v2835 = vadd.f32 %v583, %v2834
      %v2836 = vpop.f32.mrb[0].mxu0
      %v2837 = vadd.f32 %v587, %v2836
      %v2838 = vpop.f32.mrb[0].mxu0
      %v2839 = vadd.f32 %v583, %v2838
      %v2840 = vpop.f32.mrb[0].mxu0
      %v2841 = vadd.f32 %v587, %v2840
      %2842 = vmatprep.mubr.bf16.mxu0 %v837
      %2843 = vmatmul.mubr.bf16.gmra.mrb[0].mxu0 %v836
      %v2844 = vpop.f32.mrb[0].mxu0
      %v2845 = vadd.f32 %v583, %v2844
      %v2846 = vpop.f32.mrb[0].mxu0
      %v2847 = vadd.f32 %v587, %v2846
      %v2848 = vpop.f32.mrb[0].mxu0
      %v2849 = vadd.f32 %v583, %v2848
      %v2850 = vpop.f32.mrb[0].mxu0
      %v2851 = vadd.f32 %v587, %v2850
      %2852 = vmatprep.mubr.bf16.mxu0 %v845
      %2853 = vmatmul.mubr.bf16.gmra.mrb[0].mxu0 %v844
      %v2854 = vpop.f32.mrb[0].mxu0
      %v2855 = vadd.f32 %v583, %v2854
      %v2856 = vpop.f32.mrb[0].mxu0
      %v2857 = vadd.f32 %v587, %v2856
      %v2858 = vpop.f32.mrb[0].mxu0
      %v2859 = vadd.f32 %v583, %v2858
      %v2860 = vpop.f32.mrb[0].mxu0
      %v2861 = vadd.f32 %v587, %v2860
      %2862 = vmatprep.mubr.bf16.mxu0 %v853
      %2863 = vmatmul.mubr.bf16.gmra.mrb[0].mxu0 %v852
      %v2864 = vpop.f32.mrb[0].mxu0
      %v2865 = vadd.f32 %v583, %v2864
      %v2866 = vpop.f32.mrb[0].mxu0
      %v2867 = vadd.f32 %v587, %v2866
      %v2868 = vpop.f32.mrb[0].mxu0
      %v2869 = vadd.f32 %v583, %v2868
      %v2870 = vpop.f32.mrb[0].mxu0
      %v2871 = vadd.f32 %v587, %v2870
      %2872 = vmatprep.mubr.bf16.mxu0 %v861
      %2873 = vmatmul.mubr.bf16.gmra.mrb[0].mxu0 %v860
      %v2874 = vpop.f32.mrb[0].mxu0
      %v2875 = vadd.f32 %v583, %v2874
      %v2876 = vpop.f32.mrb[0].mxu0
      %v2877 = vadd.f32 %v587, %v2876
      %v2878 = vpop.f32.mrb[0].mxu0
      %v2879 = vadd.f32 %v583, %v2878
      %v2880 = vpop.f32.mrb[0].mxu0
      %v2881 = vadd.f32 %v587, %v2880
      %2882 = vmatprep.mubr.bf16.mxu0 %v869
      %2883 = vmatmul.mubr.bf16.gmra.mrb[0].mxu0 %v868
      %v2884 = vpop.f32.mrb[0].mxu0
      %v2885 = vadd.f32 %v583, %v2884
      %v2886 = vpop.f32.mrb[0].mxu0
      %v2887 = vadd.f32 %v587, %v2886
      %v2888 = vpop.f32.mrb[0].mxu0
      %v2889 = vadd.f32 %v583, %v2888
      %v2890 = vpop.f32.mrb[0].mxu0
      %v2891 = vadd.f32 %v587, %v2890
      %2892 = vmatprep.mubr.bf16.mxu0 %v877
      %2893 = vmatmul.mubr.bf16.gmra.mrb[0].mxu0 %v876
      %v2894 = vpop.f32.mrb[0].mxu0
      %v2895 = vadd.f32 %v583, %v2894
      %v2896 = vpop.f32.mrb[0].mxu0
      %v2897 = vadd.f32 %v587, %v2896
      %v2898 = vpop.f32.mrb[0].mxu0
      %v2899 = vadd.f32 %v583, %v2898
      %v2900 = vpop.f32.mrb[0].mxu0
      %v2901 = vadd.f32 %v587, %v2900
      %2902 = vmatprep.mubr.bf16.mxu0 %v885
      %2903 = vmatmul.mubr.bf16.gmra.mrb[0].mxu0 %v884
      %v2904 = vpop.f32.mrb[0].mxu0
      %v2905 = vadd.f32 %v583, %v2904
      %v2906 = vpop.f32.mrb[0].mxu0
      %v2907 = vadd.f32 %v587, %v2906
      %v2908 = vpop.f32.mrb[0].mxu0
      %v2909 = vadd.f32 %v583, %v2908
      %v2910 = vpop.f32.mrb[0].mxu0
      %v2911 = vadd.f32 %v587, %v2910
      %2912 = vmatprep.mubr.bf16.mxu0 %v893
      %2913 = vmatmul.mubr.bf16.gmra.mrb[0].mxu0 %v892
      %v2914 = vpop.f32.mrb[0].mxu0
      %v2915 = vadd.f32 %v583, %v2914
      %v2916 = vpop.f32.mrb[0].mxu0
      %v2917 = vadd.f32 %v587, %v2916
      %v2918 = vpop.f32.mrb[0].mxu0
      %v2919 = vadd.f32 %v583, %v2918
      %v2920 = vpop.f32.mrb[0].mxu0
      %v2921 = vadd.f32 %v587, %v2920
      %2922 = vmatprep.mubr.bf16.mxu0 %v901
      %2923 = vmatmul.mubr.bf16.gmra.mrb[0].mxu0 %v900
      %v2924 = vpop.f32.mrb[0].mxu0
      %v2925 = vadd.f32 %v583, %v2924
      %v2926 = vpop.f32.mrb[0].mxu0
      %v2927 = vadd.f32 %v587, %v2926
      %v2928 = vpop.f32.mrb[0].mxu0
      %v2929 = vadd.f32 %v583, %v2928
      %v2930 = vpop.f32.mrb[0].mxu0
      %v2931 = vadd.f32 %v587, %v2930
      %2932 = vdwg.mxu0
      %2933 = vmatprep.subr.bf16.mxu0 %v1823
      %2934 = vmatpush1.bf16.msra.mxu0 %v1822
      %2935 = vmatprep.subr.bf16.mxu0 %v1827
      %2936 = vmatpush1.bf16.msra.mxu0 %v1826
      %2937 = vmatprep.subr.bf16.mxu0 %v1831
      %2938 = vmatpush1.bf16.msra.mxu0 %v1830
      %2939 = vmatprep.subr.bf16.mxu0 %v1835
      %2940 = vmatpush1.bf16.msra.mxu0 %v1834
      %2941 = vmatprep.subr.bf16.mxu0 %v1839
      %2942 = vmatpush1.bf16.msra.mxu0 %v1838
      %2943 = vmatprep.subr.bf16.mxu0 %v1843
      %2944 = vmatpush1.bf16.msra.mxu0 %v1842
      %2945 = vmatprep.subr.bf16.mxu0 %v1847
      %2946 = vmatpush1.bf16.msra.mxu0 %v1846
      %2947 = vmatprep.subr.bf16.mxu0 %v1851
      %2948 = vmatpush1.bf16.msra.mxu0 %v1850
      %2949 = vmatprep.subr.bf16.mxu0 %v1855
      %2950 = vmatpush1.bf16.msra.mxu0 %v1854
      %2951 = vmatprep.subr.bf16.mxu0 %v1859
      %2952 = vmatpush1.bf16.msra.mxu0 %v1858
      %2953 = vmatprep.subr.bf16.mxu0 %v1863
      %2954 = vmatpush1.bf16.msra.mxu0 %v1862
      %2955 = vmatprep.subr.bf16.mxu0 %v1867
      %2956 = vmatpush1.bf16.msra.mxu0 %v1866
      %2957 = vmatprep.subr.bf16.mxu0 %v1871
      %2958 = vmatpush1.bf16.msra.mxu0 %v1870
      %2959 = vmatprep.subr.bf16.mxu0 %v1875
      %2960 = vmatpush1.bf16.msra.mxu0 %v1874
      %2961 = vmatprep.subr.bf16.mxu0 %v1879
      %2962 = vmatpush1.bf16.msra.mxu0 %v1878
      %2963 = vmatprep.subr.bf16.mxu0 %v1883
      %2964 = vmatpush1.bf16.msra.mxu0 %v1882
      %2965 = vmatprep.mubr.bf16.mxu0 %v831
      %2966 = vmatmul.mubr.bf16.gmra.mrb[0].mxu0 %v830
      %v2967 = vpop.f32.mrb[0].mxu0
      %v2968 = vadd.f32 %v2835, %v2967
      %v2969 = vpop.f32.mrb[0].mxu0
      %v2970 = vadd.f32 %v2837, %v2969
      %v2971 = vpop.f32.mrb[0].mxu0
      %v2972 = vadd.f32 %v2839, %v2971
      %v2973 = vpop.f32.mrb[0].mxu0
      %v2974 = vadd.f32 %v2841, %v2973
      %2975 = vmatprep.mubr.bf16.mxu0 %v839
      %2976 = vmatmul.mubr.bf16.gmra.mrb[0].mxu0 %v838
      %v2977 = vpop.f32.mrb[0].mxu0
      %v2978 = vadd.f32 %v2845, %v2977
      %v2979 = vpop.f32.mrb[0].mxu0
      %v2980 = vadd.f32 %v2847, %v2979
      %v2981 = vpop.f32.mrb[0].mxu0
      %v2982 = vadd.f32 %v2849, %v2981
      %v2983 = vpop.f32.mrb[0].mxu0
      %v2984 = vadd.f32 %v2851, %v2983
      %2985 = vmatprep.mubr.bf16.mxu0 %v847
      %2986 = vmatmul.mubr.bf16.gmra.mrb[0].mxu0 %v846
      %v2987 = vpop.f32.mrb[0].mxu0
      %v2988 = vadd.f32 %v2855, %v2987
      %v2989 = vpop.f32.mrb[0].mxu0
      %v2990 = vadd.f32 %v2857, %v2989
      %v2991 = vpop.f32.mrb[0].mxu0
      %v2992 = vadd.f32 %v2859, %v2991
      %v2993 = vpop.f32.mrb[0].mxu0
      %v2994 = vadd.f32 %v2861, %v2993
      %2995 = vmatprep.mubr.bf16.mxu0 %v855
      %2996 = vmatmul.mubr.bf16.gmra.mrb[0].mxu0 %v854
      %v2997 = vpop.f32.mrb[0].mxu0
      %v2998 = vadd.f32 %v2865, %v2997
      %v2999 = vpop.f32.mrb[0].mxu0
      %v3000 = vadd.f32 %v2867, %v2999
      %v3001 = vpop.f32.mrb[0].mxu0
      %v3002 = vadd.f32 %v2869, %v3001
      %v3003 = vpop.f32.mrb[0].mxu0
      %v3004 = vadd.f32 %v2871, %v3003
      %3005 = vmatprep.mubr.bf16.mxu0 %v863
      %3006 = vmatmul.mubr.bf16.gmra.mrb[0].mxu0 %v862
      %v3007 = vpop.f32.mrb[0].mxu0
      %v3008 = vadd.f32 %v2875, %v3007
      %v3009 = vpop.f32.mrb[0].mxu0
      %v3010 = vadd.f32 %v2877, %v3009
      %v3011 = vpop.f32.mrb[0].mxu0
      %v3012 = vadd.f32 %v2879, %v3011
      %v3013 = vpop.f32.mrb[0].mxu0
      %v3014 = vadd.f32 %v2881, %v3013
      %3015 = vmatprep.mubr.bf16.mxu0 %v871
      %3016 = vmatmul.mubr.bf16.gmra.mrb[0].mxu0 %v870
      %v3017 = vpop.f32.mrb[0].mxu0
      %v3018 = vadd.f32 %v2885, %v3017
      %v3019 = vpop.f32.mrb[0].mxu0
      %v3020 = vadd.f32 %v2887, %v3019
      %v3021 = vpop.f32.mrb[0].mxu0
      %v3022 = vadd.f32 %v2889, %v3021
      %v3023 = vpop.f32.mrb[0].mxu0
      %v3024 = vadd.f32 %v2891, %v3023
      %3025 = vmatprep.mubr.bf16.mxu0 %v879
      %3026 = vmatmul.mubr.bf16.gmra.mrb[0].mxu0 %v878
      %v3027 = vpop.f32.mrb[0].mxu0
      %v3028 = vadd.f32 %v2895, %v3027
      %v3029 = vpop.f32.mrb[0].mxu0
      %v3030 = vadd.f32 %v2897, %v3029
      %v3031 = vpop.f32.mrb[0].mxu0
      %v3032 = vadd.f32 %v2899, %v3031
      %v3033 = vpop.f32.mrb[0].mxu0
      %v3034 = vadd.f32 %v2901, %v3033
      %3035 = vmatprep.mubr.bf16.mxu0 %v887
      %3036 = vmatmul.mubr.bf16.gmra.mrb[0].mxu0 %v886
      %v3037 = vpop.f32.mrb[0].mxu0
      %v3038 = vadd.f32 %v2905, %v3037
      %v3039 = vpop.f32.mrb[0].mxu0
      %v3040 = vadd.f32 %v2907, %v3039
      %v3041 = vpop.f32.mrb[0].mxu0
      %v3042 = vadd.f32 %v2909, %v3041
      %v3043 = vpop.f32.mrb[0].mxu0
      %v3044 = vadd.f32 %v2911, %v3043
      %3045 = vmatprep.mubr.bf16.mxu0 %v895
      %3046 = vmatmul.mubr.bf16.gmra.mrb[0].mxu0 %v894
      %v3047 = vpop.f32.mrb[0].mxu0
      %v3048 = vadd.f32 %v2915, %v3047
      %v3049 = vpop.f32.mrb[0].mxu0
      %v3050 = vadd.f32 %v2917, %v3049
      %v3051 = vpop.f32.mrb[0].mxu0
      %v3052 = vadd.f32 %v2919, %v3051
      %v3053 = vpop.f32.mrb[0].mxu0
      %v3054 = vadd.f32 %v2921, %v3053
      %3055 = vmatprep.mubr.bf16.mxu0 %v903
      %3056 = vmatmul.mubr.bf16.gmra.mrb[0].mxu0 %v902
      %v3057 = vpop.f32.mrb[0].mxu0
      %v3058 = vadd.f32 %v2925, %v3057
      %v3059 = vpop.f32.mrb[0].mxu0
      %v3060 = vadd.f32 %v2927, %v3059
      %v3061 = vpop.f32.mrb[0].mxu0
      %v3062 = vadd.f32 %v2929, %v3061
      %v3063 = vpop.f32.mrb[0].mxu0
      %v3064 = vadd.f32 %v2931, %v3063
      %3065 = vdwg.mxu0
      %3066 = vmatprep.subr.bf16.mxu0 %v1887
      %3067 = vmatpush1.bf16.msra.mxu0 %v1886
      %3068 = vmatprep.subr.bf16.mxu0 %v1891
      %3069 = vmatpush1.bf16.msra.mxu0 %v1890
      %3070 = vmatprep.subr.bf16.mxu0 %v1895
      %3071 = vmatpush1.bf16.msra.mxu0 %v1894
      %3072 = vmatprep.subr.bf16.mxu0 %v1899
      %3073 = vmatpush1.bf16.msra.mxu0 %v1898
      %3074 = vmatprep.subr.bf16.mxu0 %v1903
      %3075 = vmatpush1.bf16.msra.mxu0 %v1902
      %3076 = vmatprep.subr.bf16.mxu0 %v1907
      %3077 = vmatpush1.bf16.msra.mxu0 %v1906
      %3078 = vmatprep.subr.bf16.mxu0 %v1911
      %3079 = vmatpush1.bf16.msra.mxu0 %v1910
      %3080 = vmatprep.subr.bf16.mxu0 %v1915
      %3081 = vmatpush1.bf16.msra.mxu0 %v1914
      %3082 = vmatprep.subr.bf16.mxu0 %v1919
      %3083 = vmatpush1.bf16.msra.mxu0 %v1918
      %3084 = vmatprep.subr.bf16.mxu0 %v1923
      %3085 = vmatpush1.bf16.msra.mxu0 %v1922
      %3086 = vmatprep.subr.bf16.mxu0 %v1927
      %3087 = vmatpush1.bf16.msra.mxu0 %v1926
      %3088 = vmatprep.subr.bf16.mxu0 %v1931
      %3089 = vmatpush1.bf16.msra.mxu0 %v1930
      %3090 = vmatprep.subr.bf16.mxu0 %v1935
      %3091 = vmatpush1.bf16.msra.mxu0 %v1934
      %3092 = vmatprep.subr.bf16.mxu0 %v1939
      %3093 = vmatpush1.bf16.msra.mxu0 %v1938
      %3094 = vmatprep.subr.bf16.mxu0 %v1943
      %3095 = vmatpush1.bf16.msra.mxu0 %v1942
      %3096 = vmatprep.subr.bf16.mxu0 %v1947
      %3097 = vmatpush1.bf16.msra.mxu0 %v1946
      %3098 = vmatprep.mubr.bf16.mxu0 %v833
      %3099 = vmatmul.mubr.bf16.gmra.mrb[0].mxu0 %v832
      %v3100 = vpop.f32.mrb[0].mxu0
      %v3101 = vadd.f32 %v2968, %v3100
      %v3102 = vpop.f32.mrb[0].mxu0
      %v3103 = vadd.f32 %v2970, %v3102
      %v3104 = vpop.f32.mrb[0].mxu0
      %v3105 = vadd.f32 %v2972, %v3104
      %v3106 = vpop.f32.mrb[0].mxu0
      %v3107 = vadd.f32 %v2974, %v3106
      %3108 = vmatprep.mubr.bf16.mxu0 %v841
      %3109 = vmatmul.mubr.bf16.gmra.mrb[0].mxu0 %v840
      %v3110 = vpop.f32.mrb[0].mxu0
      %v3111 = vadd.f32 %v2978, %v3110
      %v3112 = vpop.f32.mrb[0].mxu0
      %v3113 = vadd.f32 %v2980, %v3112
      %v3114 = vpop.f32.mrb[0].mxu0
      %v3115 = vadd.f32 %v2982, %v3114
      %v3116 = vpop.f32.mrb[0].mxu0
      %v3117 = vadd.f32 %v2984, %v3116
      %3118 = vmatprep.mubr.bf16.mxu0 %v849
      %3119 = vmatmul.mubr.bf16.gmra.mrb[0].mxu0 %v848
      %v3120 = vpop.f32.mrb[0].mxu0
      %v3121 = vadd.f32 %v2988, %v3120
      %v3122 = vpop.f32.mrb[0].mxu0
      %v3123 = vadd.f32 %v2990, %v3122
      %v3124 = vpop.f32.mrb[0].mxu0
      %v3125 = vadd.f32 %v2992, %v3124
      %v3126 = vpop.f32.mrb[0].mxu0
      %v3127 = vadd.f32 %v2994, %v3126
      %3128 = vmatprep.mubr.bf16.mxu0 %v857
      %3129 = vmatmul.mubr.bf16.gmra.mrb[0].mxu0 %v856
      %v3130 = vpop.f32.mrb[0].mxu0
      %v3131 = vadd.f32 %v2998, %v3130
      %v3132 = vpop.f32.mrb[0].mxu0
      %v3133 = vadd.f32 %v3000, %v3132
      %v3134 = vpop.f32.mrb[0].mxu0
      %v3135 = vadd.f32 %v3002, %v3134
      %v3136 = vpop.f32.mrb[0].mxu0
      %v3137 = vadd.f32 %v3004, %v3136
      %3138 = vmatprep.mubr.bf16.mxu0 %v865
      %3139 = vmatmul.mubr.bf16.gmra.mrb[0].mxu0 %v864
      %v3140 = vpop.f32.mrb[0].mxu0
      %v3141 = vadd.f32 %v3008, %v3140
      %v3142 = vpop.f32.mrb[0].mxu0
      %v3143 = vadd.f32 %v3010, %v3142
      %v3144 = vpop.f32.mrb[0].mxu0
      %v3145 = vadd.f32 %v3012, %v3144
      %v3146 = vpop.f32.mrb[0].mxu0
      %v3147 = vadd.f32 %v3014, %v3146
      %3148 = vmatprep.mubr.bf16.mxu0 %v873
      %3149 = vmatmul.mubr.bf16.gmra.mrb[0].mxu0 %v872
      %v3150 = vpop.f32.mrb[0].mxu0
      %v3151 = vadd.f32 %v3018, %v3150
      %v3152 = vpop.f32.mrb[0].mxu0
      %v3153 = vadd.f32 %v3020, %v3152
      %v3154 = vpop.f32.mrb[0].mxu0
      %v3155 = vadd.f32 %v3022, %v3154
      %v3156 = vpop.f32.mrb[0].mxu0
      %v3157 = vadd.f32 %v3024, %v3156
      %3158 = vmatprep.mubr.bf16.mxu0 %v881
      %3159 = vmatmul.mubr.bf16.gmra.mrb[0].mxu0 %v880
      %v3160 = vpop.f32.mrb[0].mxu0
      %v3161 = vadd.f32 %v3028, %v3160
      %v3162 = vpop.f32.mrb[0].mxu0
      %v3163 = vadd.f32 %v3030, %v3162
      %v3164 = vpop.f32.mrb[0].mxu0
      %v3165 = vadd.f32 %v3032, %v3164
      %v3166 = vpop.f32.mrb[0].mxu0
      %v3167 = vadd.f32 %v3034, %v3166
      %3168 = vmatprep.mubr.bf16.mxu0 %v889
      %3169 = vmatmul.mubr.bf16.gmra.mrb[0].mxu0 %v888
      %v3170 = vpop.f32.mrb[0].mxu0
      %v3171 = vadd.f32 %v3038, %v3170
      %v3172 = vpop.f32.mrb[0].mxu0
      %v3173 = vadd.f32 %v3040, %v3172
      %v3174 = vpop.f32.mrb[0].mxu0
      %v3175 = vadd.f32 %v3042, %v3174
      %v3176 = vpop.f32.mrb[0].mxu0
      %v3177 = vadd.f32 %v3044, %v3176
      %3178 = vmatprep.mubr.bf16.mxu0 %v897
      %3179 = vmatmul.mubr.bf16.gmra.mrb[0].mxu0 %v896
      %v3180 = vpop.f32.mrb[0].mxu0
      %v3181 = vadd.f32 %v3048, %v3180
      %v3182 = vpop.f32.mrb[0].mxu0
      %v3183 = vadd.f32 %v3050, %v3182
      %v3184 = vpop.f32.mrb[0].mxu0
      %v3185 = vadd.f32 %v3052, %v3184
      %v3186 = vpop.f32.mrb[0].mxu0
      %v3187 = vadd.f32 %v3054, %v3186
      %3188 = vmatprep.mubr.bf16.mxu0 %v905
      %3189 = vmatmul.mubr.bf16.gmra.mrb[0].mxu0 %v904
      %v3190 = vpop.f32.mrb[0].mxu0
      %v3191 = vadd.f32 %v3058, %v3190
      %v3192 = vpop.f32.mrb[0].mxu0
      %v3193 = vadd.f32 %v3060, %v3192
      %v3194 = vpop.f32.mrb[0].mxu0
      %v3195 = vadd.f32 %v3062, %v3194
      %v3196 = vpop.f32.mrb[0].mxu0
      %v3197 = vadd.f32 %v3064, %v3196
      %3198 = vdwg.mxu0
      %3199 = vmatprep.subr.bf16.mxu0 %v1951
      %3200 = vmatpush1.bf16.msra.mxu0 %v1950
      %3201 = vmatprep.subr.bf16.mxu0 %v1955
      %3202 = vmatpush1.bf16.msra.mxu0 %v1954
      %3203 = vmatprep.subr.bf16.mxu0 %v1959
      %3204 = vmatpush1.bf16.msra.mxu0 %v1958
      %3205 = vmatprep.subr.bf16.mxu0 %v1963
      %3206 = vmatpush1.bf16.msra.mxu0 %v1962
      %3207 = vmatprep.subr.bf16.mxu0 %v1967
      %3208 = vmatpush1.bf16.msra.mxu0 %v1966
      %3209 = vmatprep.subr.bf16.mxu0 %v1971
      %3210 = vmatpush1.bf16.msra.mxu0 %v1970
      %3211 = vmatprep.subr.bf16.mxu0 %v1975
      %3212 = vmatpush1.bf16.msra.mxu0 %v1974
      %3213 = vmatprep.subr.bf16.mxu0 %v1979
      %3214 = vmatpush1.bf16.msra.mxu0 %v1978
      %3215 = vmatprep.subr.bf16.mxu0 %v1983
      %3216 = vmatpush1.bf16.msra.mxu0 %v1982
      %3217 = vmatprep.subr.bf16.mxu0 %v1987
      %3218 = vmatpush1.bf16.msra.mxu0 %v1986
      %3219 = vmatprep.subr.bf16.mxu0 %v1991
      %3220 = vmatpush1.bf16.msra.mxu0 %v1990
      %3221 = vmatprep.subr.bf16.mxu0 %v1995
      %3222 = vmatpush1.bf16.msra.mxu0 %v1994
      %3223 = vmatprep.subr.bf16.mxu0 %v1999
      %3224 = vmatpush1.bf16.msra.mxu0 %v1998
      %3225 = vmatprep.subr.bf16.mxu0 %v2003
      %3226 = vmatpush1.bf16.msra.mxu0 %v2002
      %3227 = vmatprep.subr.bf16.mxu0 %v2007
      %3228 = vmatpush1.bf16.msra.mxu0 %v2006
      %3229 = vmatprep.subr.bf16.mxu0 %v2011
      %3230 = vmatpush1.bf16.msra.mxu0 %v2010
      %3231 = vmatprep.mubr.bf16.mxu0 %v835
      %3232 = vmatmul.mubr.bf16.gmra.mrb[0].mxu0 %v834
      %v3233 = vpop.f32.mrb[0].mxu0
      %v3234 = vadd.f32 %v3101, %v3233
      %v3235 = vpop.f32.mrb[0].mxu0
      %v3236 = vadd.f32 %v3103, %v3235
      %v3237 = vpop.f32.mrb[0].mxu0
      %v3238 = vadd.f32 %v3105, %v3237
      %v3239 = vpop.f32.mrb[0].mxu0
      %v3240 = vadd.f32 %v3107, %v3239
      %3241 = vmatprep.mubr.bf16.mxu0 %v843
      %3242 = vmatmul.mubr.bf16.gmra.mrb[0].mxu0 %v842
      %v3243 = vpop.f32.mrb[0].mxu0
      %v3244 = vadd.f32 %v3111, %v3243
      %v3245 = vpop.f32.mrb[0].mxu0
      %v3246 = vadd.f32 %v3113, %v3245
      %v3247 = vpop.f32.mrb[0].mxu0
      %v3248 = vadd.f32 %v3115, %v3247
      %v3249 = vpop.f32.mrb[0].mxu0
      %v3250 = vadd.f32 %v3117, %v3249
      %3251 = vmatprep.mubr.bf16.mxu0 %v851
      %3252 = vmatmul.mubr.bf16.gmra.mrb[0].mxu0 %v850
      %v3253 = vpop.f32.mrb[0].mxu0
      %v3254 = vadd.f32 %v3121, %v3253
      %v3255 = vpop.f32.mrb[0].mxu0
      %v3256 = vadd.f32 %v3123, %v3255
      %v3257 = vpop.f32.mrb[0].mxu0
      %v3258 = vadd.f32 %v3125, %v3257
      %v3259 = vpop.f32.mrb[0].mxu0
      %v3260 = vadd.f32 %v3127, %v3259
      %3261 = vmatprep.mubr.bf16.mxu0 %v859
      %3262 = vmatmul.mubr.bf16.gmra.mrb[0].mxu0 %v858
      %v3263 = vpop.f32.mrb[0].mxu0
      %v3264 = vadd.f32 %v3131, %v3263
      %v3265 = vpop.f32.mrb[0].mxu0
      %v3266 = vadd.f32 %v3133, %v3265
      %v3267 = vpop.f32.mrb[0].mxu0
      %v3268 = vadd.f32 %v3135, %v3267
      %v3269 = vpop.f32.mrb[0].mxu0
      %v3270 = vadd.f32 %v3137, %v3269
      %3271 = vmatprep.mubr.bf16.mxu0 %v867
      %3272 = vmatmul.mubr.bf16.gmra.mrb[0].mxu0 %v866
      %v3273 = vpop.f32.mrb[0].mxu0
      %v3274 = vadd.f32 %v3141, %v3273
      %v3275 = vpop.f32.mrb[0].mxu0
      %v3276 = vadd.f32 %v3143, %v3275
      %v3277 = vpop.f32.mrb[0].mxu0
      %v3278 = vadd.f32 %v3145, %v3277
      %v3279 = vpop.f32.mrb[0].mxu0
      %v3280 = vadd.f32 %v3147, %v3279
      %3281 = vmatprep.mubr.bf16.mxu0 %v875
      %3282 = vmatmul.mubr.bf16.gmra.mrb[0].mxu0 %v874
      %v3283 = vpop.f32.mrb[0].mxu0
      %v3284 = vadd.f32 %v3151, %v3283
      %v3285 = vpop.f32.mrb[0].mxu0
      %v3286 = vadd.f32 %v3153, %v3285
      %v3287 = vpop.f32.mrb[0].mxu0
      %v3288 = vadd.f32 %v3155, %v3287
      %v3289 = vpop.f32.mrb[0].mxu0
      %v3290 = vadd.f32 %v3157, %v3289
      %3291 = vmatprep.mubr.bf16.mxu0 %v883
      %3292 = vmatmul.mubr.bf16.gmra.mrb[0].mxu0 %v882
      %v3293 = vpop.f32.mrb[0].mxu0
      %v3294 = vadd.f32 %v3161, %v3293
      %v3295 = vpop.f32.mrb[0].mxu0
      %v3296 = vadd.f32 %v3163, %v3295
      %v3297 = vpop.f32.mrb[0].mxu0
      %v3298 = vadd.f32 %v3165, %v3297
      %v3299 = vpop.f32.mrb[0].mxu0
      %v3300 = vadd.f32 %v3167, %v3299
      %3301 = vmatprep.mubr.bf16.mxu0 %v891
      %3302 = vmatmul.mubr.bf16.gmra.mrb[0].mxu0 %v890
      %v3303 = vpop.f32.mrb[0].mxu0
      %v3304 = vadd.f32 %v3171, %v3303
      %v3305 = vpop.f32.mrb[0].mxu0
      %v3306 = vadd.f32 %v3173, %v3305
      %v3307 = vpop.f32.mrb[0].mxu0
      %v3308 = vadd.f32 %v3175, %v3307
      %v3309 = vpop.f32.mrb[0].mxu0
      %v3310 = vadd.f32 %v3177, %v3309
      %3311 = vmatprep.mubr.bf16.mxu0 %v899
      %3312 = vmatmul.mubr.bf16.gmra.mrb[0].mxu0 %v898
      %v3313 = vpop.f32.mrb[0].mxu0
      %v3314 = vadd.f32 %v3181, %v3313
      %v3315 = vpop.f32.mrb[0].mxu0
      %v3316 = vadd.f32 %v3183, %v3315
      %v3317 = vpop.f32.mrb[0].mxu0
      %v3318 = vadd.f32 %v3185, %v3317
      %v3319 = vpop.f32.mrb[0].mxu0
      %v3320 = vadd.f32 %v3187, %v3319
      %3321 = vmatprep.mubr.bf16.mxu0 %v907
      %3322 = vmatmul.mubr.bf16.gmra.mrb[0].mxu0 %v906
      %v3323 = vpop.f32.mrb[0].mxu0
      %v3324 = vadd.f32 %v3191, %v3323
      %v3325 = vpop.f32.mrb[0].mxu0
      %v3326 = vadd.f32 %v3193, %v3325
      %v3327 = vpop.f32.mrb[0].mxu0
      %v3328 = vadd.f32 %v3195, %v3327
      %v3329 = vpop.f32.mrb[0].mxu0
      %v3330 = vadd.f32 %v3197, %v3329
      %3331 = vdwg.mxu0
      %v3332 = vmax.f32 %v2702, 0.0
      %v3333 = vmax.f32 %v2704, 0.0
      %v3334 = vmax.f32 %v3234, 0.0
      %v3335 = vmax.f32 %v3236, 0.0
      %v3336 = vmax.f32 %v2706, 0.0
      %v3337 = vmax.f32 %v2708, 0.0
      %v3338 = vmax.f32 %v3238, 0.0
      %v3339 = vmax.f32 %v3240, 0.0
      %v3340 = vmax.f32 %v2712, 0.0
      %v3341 = vmax.f32 %v2714, 0.0
      %v3342 = vmax.f32 %v3244, 0.0
      %v3343 = vmax.f32 %v3246, 0.0
      %v3344 = vmax.f32 %v2716, 0.0
      %v3345 = vmax.f32 %v2718, 0.0
      %v3346 = vmax.f32 %v3248, 0.0
      %v3347 = vmax.f32 %v3250, 0.0
      %v3348 = vmax.f32 %v2722, 0.0
      %v3349 = vmax.f32 %v2724, 0.0
      %v3350 = vmax.f32 %v3254, 0.0
      %v3351 = vmax.f32 %v3256, 0.0
      %v3352 = vmax.f32 %v2726, 0.0
      %v3353 = vmax.f32 %v2728, 0.0
      %v3354 = vmax.f32 %v3258, 0.0
      %v3355 = vmax.f32 %v3260, 0.0
      %v3356 = vmax.f32 %v2732, 0.0
      %v3357 = vmax.f32 %v2734, 0.0
      %v3358 = vmax.f32 %v3264, 0.0
      %v3359 = vmax.f32 %v3266, 0.0
      %v3360 = vmax.f32 %v2736, 0.0
      %v3361 = vmax.f32 %v2738, 0.0
      %v3362 = vmax.f32 %v3268, 0.0
      %v3363 = vmax.f32 %v3270, 0.0
      %v3364 = vmax.f32 %v2742, 0.0
      %v3365 = vmax.f32 %v2744, 0.0
      %v3366 = vmax.f32 %v3274, 0.0
      %v3367 = vmax.f32 %v3276, 0.0
      %v3368 = vmax.f32 %v2746, 0.0
      %v3369 = vmax.f32 %v2748, 0.0
      %v3370 = vmax.f32 %v3278, 0.0
      %v3371 = vmax.f32 %v3280, 0.0
      %v3372 = vmax.f32 %v2752, 0.0
      %v3373 = vmax.f32 %v2754, 0.0
      %v3374 = vmax.f32 %v3284, 0.0
      %v3375 = vmax.f32 %v3286, 0.0
      %v3376 = vmax.f32 %v2756, 0.0
      %v3377 = vmax.f32 %v2758, 0.0
      %v3378 = vmax.f32 %v3288, 0.0
      %v3379 = vmax.f32 %v3290, 0.0
      %v3380 = vmax.f32 %v2762, 0.0
      %v3381 = vmax.f32 %v2764, 0.0
      %v3382 = vmax.f32 %v3294, 0.0
      %v3383 = vmax.f32 %v3296, 0.0
      %v3384 = vmax.f32 %v2766, 0.0
      %v3385 = vmax.f32 %v2768, 0.0
      %v3386 = vmax.f32 %v3298, 0.0
      %v3387 = vmax.f32 %v3300, 0.0
      %v3388 = vmax.f32 %v2772, 0.0
      %v3389 = vmax.f32 %v2774, 0.0
      %v3390 = vmax.f32 %v3304, 0.0
      %v3391 = vmax.f32 %v3306, 0.0
      %v3392 = vmax.f32 %v2776, 0.0
      %v3393 = vmax.f32 %v2778, 0.0
      %v3394 = vmax.f32 %v3308, 0.0
      %v3395 = vmax.f32 %v3310, 0.0
      %v3396 = vmax.f32 %v2782, 0.0
      %v3397 = vmax.f32 %v2784, 0.0
      %v3398 = vmax.f32 %v3314, 0.0
      %v3399 = vmax.f32 %v3316, 0.0
      %v3400 = vmax.f32 %v2786, 0.0
      %v3401 = vmax.f32 %v2788, 0.0
      %v3402 = vmax.f32 %v3318, 0.0
      %v3403 = vmax.f32 %v3320, 0.0
      %v3404 = vmax.f32 %v2792, 0.0
      %v3405 = vmax.f32 %v2794, 0.0
      %v3406 = vmax.f32 %v3324, 0.0
      %v3407 = vmax.f32 %v3326, 0.0
      %v3408 = vmax.f32 %v2796, 0.0
      %v3409 = vmax.f32 %v2798, 0.0
      %v3410 = vmax.f32 %v3328, 0.0
      %v3411 = vmax.f32 %v3330, 0.0
      %v3412 = vpack.c.bf16 %v3336, %v3332
      %v3413 = vpack.c.bf16 %v3337, %v3333
      %v3414 = vpack.c.bf16 %v3338, %v3334
      %v3415 = vpack.c.bf16 %v3339, %v3335
      %v3416 = vpack.c.bf16 %v3344, %v3340
      %v3417 = vpack.c.bf16 %v3345, %v3341
      %v3418 = vpack.c.bf16 %v3346, %v3342
      %v3419 = vpack.c.bf16 %v3347, %v3343
      %v3420 = vpack.c.bf16 %v3352, %v3348
      %v3421 = vpack.c.bf16 %v3353, %v3349
      %v3422 = vpack.c.bf16 %v3354, %v3350
      %v3423 = vpack.c.bf16 %v3355, %v3351
      %v3424 = vpack.c.bf16 %v3360, %v3356
      %v3425 = vpack.c.bf16 %v3361, %v3357
      %v3426 = vpack.c.bf16 %v3362, %v3358
      %v3427 = vpack.c.bf16 %v3363, %v3359
      %v3428 = vpack.c.bf16 %v3368, %v3364
      %v3429 = vpack.c.bf16 %v3369, %v3365
      %v3430 = vpack.c.bf16 %v3370, %v3366
      %v3431 = vpack.c.bf16 %v3371, %v3367
      %v3432 = vpack.c.bf16 %v3376, %v3372
      %v3433 = vpack.c.bf16 %v3377, %v3373
      %v3434 = vpack.c.bf16 %v3378, %v3374
      %v3435 = vpack.c.bf16 %v3379, %v3375
      %v3436 = vpack.c.bf16 %v3384, %v3380
      %v3437 = vpack.c.bf16 %v3385, %v3381
      %v3438 = vpack.c.bf16 %v3386, %v3382
      %v3439 = vpack.c.bf16 %v3387, %v3383
      %v3440 = vpack.c.bf16 %v3392, %v3388
      %v3441 = vpack.c.bf16 %v3393, %v3389
      %v3442 = vpack.c.bf16 %v3394, %v3390
      %v3443 = vpack.c.bf16 %v3395, %v3391
      %v3444 = vpack.c.bf16 %v3400, %v3396
      %v3445 = vpack.c.bf16 %v3401, %v3397
      %v3446 = vpack.c.bf16 %v3402, %v3398
      %v3447 = vpack.c.bf16 %v3403, %v3399
      %v3448 = vpack.c.bf16 %v3408, %v3404
      %v3449 = vpack.c.bf16 %v3409, %v3405
      %v3450 = vpack.c.bf16 %v3410, %v3406
      %v3451 = vpack.c.bf16 %v3411, %v3407
      %v3452 = vld [vmem:[%s2] sm:$0xff]
      %v3453 = vld [vmem:[%s2 + $0x8] sm:$0xff]
      %v3454 = vld [vmem:[%s2 + $0x10] sm:$0xff]
      %v3455 = vld [vmem:[%s2 + $0x18] sm:$0xff]
      %v3456 = vld [vmem:[%s2 + $0x20] sm:$0xff]
      %v3457 = vld [vmem:[%s2 + $0x28] sm:$0xff]
      %v3458 = vld [vmem:[%s2 + $0x30] sm:$0xff]
      %v3459 = vld [vmem:[%s2 + $0x38] sm:$0xff]
      %v3460 = vld [vmem:[%s2 + $0x40] sm:$0xff]
      %v3461 = vld [vmem:[%s2 + $0x48] sm:$0xff]
      %v3462 = vld [vmem:[%s2 + $0x50] sm:$0xff]
      %v3463 = vld [vmem:[%s2 + $0x58] sm:$0xff]
      %v3464 = vld [vmem:[%s2 + $0x60] sm:$0xff]
      %v3465 = vld [vmem:[%s2 + $0x68] sm:$0xff]
      %v3466 = vld [vmem:[%s2 + $0x70] sm:$0xff]
      %v3467 = vld [vmem:[%s2 + $0x78] sm:$0xff]
      %v3468 = vld [vmem:[%s2 + $0x80] sm:$0xff]
      %v3469 = vld [vmem:[%s2 + $0x88] sm:$0xff]
      %v3470 = vld [vmem:[%s2 + $0x90] sm:$0xff]
      %v3471 = vld [vmem:[%s2 + $0x98] sm:$0xff]
      %v3472 = vld [vmem:[%s2 + $0xa0] sm:$0xff]
      %v3473 = vld [vmem:[%s2 + $0xa8] sm:$0xff]
      %v3474 = vld [vmem:[%s2 + $0xb0] sm:$0xff]
      %v3475 = vld [vmem:[%s2 + $0xb8] sm:$0xff]
      %v3476 = vld [vmem:[%s2 + $0xc0] sm:$0xff]
      %v3477 = vld [vmem:[%s2 + $0xc8] sm:$0xff]
      %v3478 = vld [vmem:[%s2 + $0xd0] sm:$0xff]
      %v3479 = vld [vmem:[%s2 + $0xd8] sm:$0xff]
      %v3480 = vld [vmem:[%s2 + $0xe0] sm:$0xff]
      %v3481 = vld [vmem:[%s2 + $0xe8] sm:$0xff]
      %v3482 = vld [vmem:[%s2 + $0xf0] sm:$0xff]
      %v3483 = vld [vmem:[%s2 + $0xf8] sm:$0xff]
      %v3484 = vld [vmem:[%s2 + $0x100] sm:$0xff]
      %v3485 = vld [vmem:[%s2 + $0x108] sm:$0xff]
      %v3486 = vld [vmem:[%s2 + $0x110] sm:$0xff]
      %v3487 = vld [vmem:[%s2 + $0x118] sm:$0xff]
      %v3488 = vld [vmem:[%s2 + $0x120] sm:$0xff]
      %v3489 = vld [vmem:[%s2 + $0x128] sm:$0xff]
      %v3490 = vld [vmem:[%s2 + $0x130] sm:$0xff]
      %v3491 = vld [vmem:[%s2 + $0x138] sm:$0xff]
      %v3492 = vld [vmem:[%s2 + $0x140] sm:$0xff]
      %v3493 = vld [vmem:[%s2 + $0x148] sm:$0xff]
      %v3494 = vld [vmem:[%s2 + $0x150] sm:$0xff]
      %v3495 = vld [vmem:[%s2 + $0x158] sm:$0xff]
      %v3496 = vld [vmem:[%s2 + $0x160] sm:$0xff]
      %v3497 = vld [vmem:[%s2 + $0x168] sm:$0xff]
      %v3498 = vld [vmem:[%s2 + $0x170] sm:$0xff]
      %v3499 = vld [vmem:[%s2 + $0x178] sm:$0xff]
      %v3500 = vld [vmem:[%s2 + $0x180] sm:$0xff]
      %v3501 = vld [vmem:[%s2 + $0x188] sm:$0xff]
      %v3502 = vld [vmem:[%s2 + $0x190] sm:$0xff]
      %v3503 = vld [vmem:[%s2 + $0x198] sm:$0xff]
      %v3504 = vld [vmem:[%s2 + $0x1a0] sm:$0xff]
      %v3505 = vld [vmem:[%s2 + $0x1a8] sm:$0xff]
      %v3506 = vld [vmem:[%s2 + $0x1b0] sm:$0xff]
      %v3507 = vld [vmem:[%s2 + $0x1b8] sm:$0xff]
      %v3508 = vld [vmem:[%s2 + $0x1c0] sm:$0xff]
      %v3509 = vld [vmem:[%s2 + $0x1c8] sm:$0xff]
      %v3510 = vld [vmem:[%s2 + $0x1d0] sm:$0xff]
      %v3511 = vld [vmem:[%s2 + $0x1d8] sm:$0xff]
      %v3512 = vld [vmem:[%s2 + $0x1e0] sm:$0xff]
      %v3513 = vld [vmem:[%s2 + $0x1e8] sm:$0xff]
      %v3514 = vld [vmem:[%s2 + $0x1f0] sm:$0xff]
      %v3515 = vld [vmem:[%s2 + $0x1f8] sm:$0xff]
      %v3516 = vlaneseq
      %v3517 = vshrl.u32 %v3516, 7
      %v3518 = vsub.s32 1, %v3517
      %v3519 = vrot.slane %v232, %v3518
      %v3520 = vlaneseq
      %v3521 = vshrl.u32 %v3520, 7
      %v3522 = vsub.s32 1, %v3521
      %v3523 = vrot.slane %v233, %v3522
      %v3588 = vunpack.c.l.b16 %v3452
      %v3589 = vunpack.c.h.b16 %v3452
      %v3590 = vunpack.c.l.b16 %v3453
      %v3591 = vunpack.c.h.b16 %v3453
      %v3592 = vunpack.c.l.b16 %v3454
      %v3593 = vunpack.c.h.b16 %v3454
      %v3594 = vunpack.c.l.b16 %v3455
      %v3595 = vunpack.c.h.b16 %v3455
      %v3596 = vunpack.c.l.b16 %v3456
      %v3597 = vunpack.c.h.b16 %v3456
      %v3598 = vunpack.c.l.b16 %v3457
      %v3599 = vunpack.c.h.b16 %v3457
      %v3600 = vunpack.c.l.b16 %v3458
      %v3601 = vunpack.c.h.b16 %v3458
      %v3602 = vunpack.c.l.b16 %v3459
      %v3603 = vunpack.c.h.b16 %v3459
      %v3604 = vunpack.c.l.b16 %v3460
      %v3605 = vunpack.c.h.b16 %v3460
      %v3606 = vunpack.c.l.b16 %v3461
      %v3607 = vunpack.c.h.b16 %v3461
      %v3608 = vunpack.c.l.b16 %v3462
      %v3609 = vunpack.c.h.b16 %v3462
      %v3610 = vunpack.c.l.b16 %v3463
      %v3611 = vunpack.c.h.b16 %v3463
      %v3612 = vunpack.c.l.b16 %v3464
      %v3613 = vunpack.c.h.b16 %v3464
      %v3614 = vunpack.c.l.b16 %v3465
      %v3615 = vunpack.c.h.b16 %v3465
      %v3616 = vunpack.c.l.b16 %v3466
      %v3617 = vunpack.c.h.b16 %v3466
      %v3618 = vunpack.c.l.b16 %v3467
      %v3619 = vunpack.c.h.b16 %v3467
      %v3620 = vunpack.c.l.b16 %v3468
      %v3621 = vunpack.c.h.b16 %v3468
      %v3622 = vunpack.c.l.b16 %v3469
      %v3623 = vunpack.c.h.b16 %v3469
      %v3624 = vunpack.c.l.b16 %v3470
      %v3625 = vunpack.c.h.b16 %v3470
      %v3626 = vunpack.c.l.b16 %v3471
      %v3627 = vunpack.c.h.b16 %v3471
      %v3628 = vunpack.c.l.b16 %v3472
      %v3629 = vunpack.c.h.b16 %v3472
      %v3630 = vunpack.c.l.b16 %v3473
      %v3631 = vunpack.c.h.b16 %v3473
      %v3632 = vunpack.c.l.b16 %v3474
      %v3633 = vunpack.c.h.b16 %v3474
      %v3634 = vunpack.c.l.b16 %v3475
      %v3635 = vunpack.c.h.b16 %v3475
      %v3636 = vunpack.c.l.b16 %v3476
      %v3637 = vunpack.c.h.b16 %v3476
      %v3638 = vunpack.c.l.b16 %v3477
      %v3639 = vunpack.c.h.b16 %v3477
      %v3640 = vunpack.c.l.b16 %v3478
      %v3641 = vunpack.c.h.b16 %v3478
      %v3642 = vunpack.c.l.b16 %v3479
      %v3643 = vunpack.c.h.b16 %v3479
      %v3644 = vunpack.c.l.b16 %v3480
      %v3645 = vunpack.c.h.b16 %v3480
      %v3646 = vunpack.c.l.b16 %v3481
      %v3647 = vunpack.c.h.b16 %v3481
      %v3648 = vunpack.c.l.b16 %v3482
      %v3649 = vunpack.c.h.b16 %v3482
      %v3650 = vunpack.c.l.b16 %v3483
      %v3651 = vunpack.c.h.b16 %v3483
      %v3652 = vunpack.c.l.b16 %v3484
      %v3653 = vunpack.c.h.b16 %v3484
      %v3654 = vunpack.c.l.b16 %v3485
      %v3655 = vunpack.c.h.b16 %v3485
      %v3656 = vunpack.c.l.b16 %v3486
      %v3657 = vunpack.c.h.b16 %v3486
      %v3658 = vunpack.c.l.b16 %v3487
      %v3659 = vunpack.c.h.b16 %v3487
      %v3660 = vunpack.c.l.b16 %v3488
      %v3661 = vunpack.c.h.b16 %v3488
      %v3662 = vunpack.c.l.b16 %v3489
      %v3663 = vunpack.c.h.b16 %v3489
      %v3664 = vunpack.c.l.b16 %v3490
      %v3665 = vunpack.c.h.b16 %v3490
      %v3666 = vunpack.c.l.b16 %v3491
      %v3667 = vunpack.c.h.b16 %v3491
      %v3668 = vunpack.c.l.b16 %v3492
      %v3669 = vunpack.c.h.b16 %v3492
      %v3670 = vunpack.c.l.b16 %v3493
      %v3671 = vunpack.c.h.b16 %v3493
      %v3672 = vunpack.c.l.b16 %v3494
      %v3673 = vunpack.c.h.b16 %v3494
      %v3674 = vunpack.c.l.b16 %v3495
      %v3675 = vunpack.c.h.b16 %v3495
      %v3676 = vunpack.c.l.b16 %v3496
      %v3677 = vunpack.c.h.b16 %v3496
      %v3678 = vunpack.c.l.b16 %v3497
      %v3679 = vunpack.c.h.b16 %v3497
      %v3680 = vunpack.c.l.b16 %v3498
      %v3681 = vunpack.c.h.b16 %v3498
      %v3682 = vunpack.c.l.b16 %v3499
      %v3683 = vunpack.c.h.b16 %v3499
      %v3684 = vunpack.c.l.b16 %v3500
      %v3685 = vunpack.c.h.b16 %v3500
      %v3686 = vunpack.c.l.b16 %v3501
      %v3687 = vunpack.c.h.b16 %v3501
      %v3688 = vunpack.c.l.b16 %v3502
      %v3689 = vunpack.c.h.b16 %v3502
      %v3690 = vunpack.c.l.b16 %v3503
      %v3691 = vunpack.c.h.b16 %v3503
      %v3692 = vunpack.c.l.b16 %v3504
      %v3693 = vunpack.c.h.b16 %v3504
      %v3694 = vunpack.c.l.b16 %v3505
      %v3695 = vunpack.c.h.b16 %v3505
      %v3696 = vunpack.c.l.b16 %v3506
      %v3697 = vunpack.c.h.b16 %v3506
      %v3698 = vunpack.c.l.b16 %v3507
      %v3699 = vunpack.c.h.b16 %v3507
      %v3700 = vunpack.c.l.b16 %v3508
      %v3701 = vunpack.c.h.b16 %v3508
      %v3702 = vunpack.c.l.b16 %v3509
      %v3703 = vunpack.c.h.b16 %v3509
      %v3704 = vunpack.c.l.b16 %v3510
      %v3705 = vunpack.c.h.b16 %v3510
      %v3706 = vunpack.c.l.b16 %v3511
      %v3707 = vunpack.c.h.b16 %v3511
      %v3708 = vunpack.c.l.b16 %v3512
      %v3709 = vunpack.c.h.b16 %v3512
      %v3710 = vunpack.c.l.b16 %v3513
      %v3711 = vunpack.c.h.b16 %v3513
      %v3712 = vunpack.c.l.b16 %v3514
      %v3713 = vunpack.c.h.b16 %v3514
      %v3714 = vunpack.c.l.b16 %v3515
      %v3715 = vunpack.c.h.b16 %v3515
      %v3716 = vpack.c.b16 %v3590, %v3588
      %v3717 = vpack.c.b16 %v3591, %v3589
      %v3718 = vpack.c.b16 %v3594, %v3592
      %v3719 = vpack.c.b16 %v3595, %v3593
      %v3720 = vpack.c.b16 %v3598, %v3596
      %v3721 = vpack.c.b16 %v3599, %v3597
      %v3722 = vpack.c.b16 %v3602, %v3600
      %v3723 = vpack.c.b16 %v3603, %v3601
      %v3724 = vpack.c.b16 %v3606, %v3604
      %v3725 = vpack.c.b16 %v3607, %v3605
      %v3726 = vpack.c.b16 %v3610, %v3608
      %v3727 = vpack.c.b16 %v3611, %v3609
      %v3728 = vpack.c.b16 %v3614, %v3612
      %v3729 = vpack.c.b16 %v3615, %v3613
      %v3730 = vpack.c.b16 %v3618, %v3616
      %v3731 = vpack.c.b16 %v3619, %v3617
      %v3732 = vpack.c.b16 %v3622, %v3620
      %v3733 = vpack.c.b16 %v3623, %v3621
      %v3734 = vpack.c.b16 %v3626, %v3624
      %v3735 = vpack.c.b16 %v3627, %v3625
      %v3736 = vpack.c.b16 %v3630, %v3628
      %v3737 = vpack.c.b16 %v3631, %v3629
      %v3738 = vpack.c.b16 %v3634, %v3632
      %v3739 = vpack.c.b16 %v3635, %v3633
      %v3740 = vpack.c.b16 %v3638, %v3636
      %v3741 = vpack.c.b16 %v3639, %v3637
      %v3742 = vpack.c.b16 %v3642, %v3640
      %v3743 = vpack.c.b16 %v3643, %v3641
      %v3744 = vpack.c.b16 %v3646, %v3644
      %v3745 = vpack.c.b16 %v3647, %v3645
      %v3746 = vpack.c.b16 %v3650, %v3648
      %v3747 = vpack.c.b16 %v3651, %v3649
      %v3748 = vpack.c.b16 %v3654, %v3652
      %v3749 = vpack.c.b16 %v3655, %v3653
      %v3750 = vpack.c.b16 %v3658, %v3656
      %v3751 = vpack.c.b16 %v3659, %v3657
      %v3752 = vpack.c.b16 %v3662, %v3660
      %v3753 = vpack.c.b16 %v3663, %v3661
      %v3754 = vpack.c.b16 %v3666, %v3664
      %v3755 = vpack.c.b16 %v3667, %v3665
      %v3756 = vpack.c.b16 %v3670, %v3668
      %v3757 = vpack.c.b16 %v3671, %v3669
      %v3758 = vpack.c.b16 %v3674, %v3672
      %v3759 = vpack.c.b16 %v3675, %v3673
      %v3760 = vpack.c.b16 %v3678, %v3676
      %v3761 = vpack.c.b16 %v3679, %v3677
      %v3762 = vpack.c.b16 %v3682, %v3680
      %v3763 = vpack.c.b16 %v3683, %v3681
      %v3764 = vpack.c.b16 %v3686, %v3684
      %v3765 = vpack.c.b16 %v3687, %v3685
      %v3766 = vpack.c.b16 %v3690, %v3688
      %v3767 = vpack.c.b16 %v3691, %v3689
      %v3768 = vpack.c.b16 %v3694, %v3692
      %v3769 = vpack.c.b16 %v3695, %v3693
      %v3770 = vpack.c.b16 %v3698, %v3696
      %v3771 = vpack.c.b16 %v3699, %v3697
      %v3772 = vpack.c.b16 %v3702, %v3700
      %v3773 = vpack.c.b16 %v3703, %v3701
      %v3774 = vpack.c.b16 %v3706, %v3704
      %v3775 = vpack.c.b16 %v3707, %v3705
      %v3776 = vpack.c.b16 %v3710, %v3708
      %v3777 = vpack.c.b16 %v3711, %v3709
      %v3778 = vpack.c.b16 %v3714, %v3712
      %v3779 = vpack.c.b16 %v3715, %v3713
      %3844 = vmatprep.subr.bf16.mxu0 %v3717
      %3845 = vmatpush1.bf16.msra.mxu0 %v3716
      %3846 = vmatprep.subr.bf16.mxu0 %v3719
      %3847 = vmatpush1.bf16.msra.mxu0 %v3718
      %3848 = vmatprep.subr.bf16.mxu0 %v3721
      %3849 = vmatpush1.bf16.msra.mxu0 %v3720
      %3850 = vmatprep.subr.bf16.mxu0 %v3723
      %3851 = vmatpush1.bf16.msra.mxu0 %v3722
      %3852 = vmatprep.subr.bf16.mxu0 %v3725
      %3853 = vmatpush1.bf16.msra.mxu0 %v3724
      %3854 = vmatprep.subr.bf16.mxu0 %v3727
      %3855 = vmatpush1.bf16.msra.mxu0 %v3726
      %3856 = vmatprep.subr.bf16.mxu0 %v3729
      %3857 = vmatpush1.bf16.msra.mxu0 %v3728
      %3858 = vmatprep.subr.bf16.mxu0 %v3731
      %3859 = vmatpush1.bf16.msra.mxu0 %v3730
      %3860 = vmatprep.subr.bf16.mxu0 %v3733
      %3861 = vmatpush1.bf16.msra.mxu0 %v3732
      %3862 = vmatprep.subr.bf16.mxu0 %v3735
      %3863 = vmatpush1.bf16.msra.mxu0 %v3734
      %3864 = vmatprep.subr.bf16.mxu0 %v3737
      %3865 = vmatpush1.bf16.msra.mxu0 %v3736
      %3866 = vmatprep.subr.bf16.mxu0 %v3739
      %3867 = vmatpush1.bf16.msra.mxu0 %v3738
      %3868 = vmatprep.subr.bf16.mxu0 %v3741
      %3869 = vmatpush1.bf16.msra.mxu0 %v3740
      %3870 = vmatprep.subr.bf16.mxu0 %v3743
      %3871 = vmatpush1.bf16.msra.mxu0 %v3742
      %3872 = vmatprep.subr.bf16.mxu0 %v3745
      %3873 = vmatpush1.bf16.msra.mxu0 %v3744
      %3874 = vmatprep.subr.bf16.mxu0 %v3747
      %3875 = vmatpush1.bf16.msra.mxu0 %v3746
      %3876 = vmatprep.mubr.bf16.mxu0 %v3413
      %3877 = vmatmul.mubr.bf16.gmra.mrb[0].mxu0 %v3412
      %v3878 = vpop.f32.mrb[0].mxu0
      %v3879 = vadd.f32 %v3519, %v3878
      %v3880 = vpop.f32.mrb[0].mxu0
      %v3881 = vadd.f32 %v3523, %v3880
      %v3882 = vpop.f32.mrb[0].mxu0
      %v3883 = vadd.f32 %v3519, %v3882
      %v3884 = vpop.f32.mrb[0].mxu0
      %v3885 = vadd.f32 %v3523, %v3884
      %3886 = vmatprep.mubr.bf16.mxu0 %v3417
      %3887 = vmatmul.mubr.bf16.gmra.mrb[0].mxu0 %v3416
      %v3888 = vpop.f32.mrb[0].mxu0
      %v3889 = vadd.f32 %v3519, %v3888
      %v3890 = vpop.f32.mrb[0].mxu0
      %v3891 = vadd.f32 %v3523, %v3890
      %v3892 = vpop.f32.mrb[0].mxu0
      %v3893 = vadd.f32 %v3519, %v3892
      %v3894 = vpop.f32.mrb[0].mxu0
      %v3895 = vadd.f32 %v3523, %v3894
      %3896 = vmatprep.mubr.bf16.mxu0 %v3421
      %3897 = vmatmul.mubr.bf16.gmra.mrb[0].mxu0 %v3420
      %v3898 = vpop.f32.mrb[0].mxu0
      %v3899 = vadd.f32 %v3519, %v3898
      %v3900 = vpop.f32.mrb[0].mxu0
      %v3901 = vadd.f32 %v3523, %v3900
      %v3902 = vpop.f32.mrb[0].mxu0
      %v3903 = vadd.f32 %v3519, %v3902
      %v3904 = vpop.f32.mrb[0].mxu0
      %v3905 = vadd.f32 %v3523, %v3904
      %3906 = vmatprep.mubr.bf16.mxu0 %v3425
      %3907 = vmatmul.mubr.bf16.gmra.mrb[0].mxu0 %v3424
      %v3908 = vpop.f32.mrb[0].mxu0
      %v3909 = vadd.f32 %v3519, %v3908
      %v3910 = vpop.f32.mrb[0].mxu0
      %v3911 = vadd.f32 %v3523, %v3910
      %v3912 = vpop.f32.mrb[0].mxu0
      %v3913 = vadd.f32 %v3519, %v3912
      %v3914 = vpop.f32.mrb[0].mxu0
      %v3915 = vadd.f32 %v3523, %v3914
      %3916 = vmatprep.mubr.bf16.mxu0 %v3429
      %3917 = vmatmul.mubr.bf16.gmra.mrb[0].mxu0 %v3428
      %v3918 = vpop.f32.mrb[0].mxu0
      %v3919 = vadd.f32 %v3519, %v3918
      %v3920 = vpop.f32.mrb[0].mxu0
      %v3921 = vadd.f32 %v3523, %v3920
      %v3922 = vpop.f32.mrb[0].mxu0
      %v3923 = vadd.f32 %v3519, %v3922
      %v3924 = vpop.f32.mrb[0].mxu0
      %v3925 = vadd.f32 %v3523, %v3924
      %3926 = vmatprep.mubr.bf16.mxu0 %v3433
      %3927 = vmatmul.mubr.bf16.gmra.mrb[0].mxu0 %v3432
      %v3928 = vpop.f32.mrb[0].mxu0
      %v3929 = vadd.f32 %v3519, %v3928
      %v3930 = vpop.f32.mrb[0].mxu0
      %v3931 = vadd.f32 %v3523, %v3930
      %v3932 = vpop.f32.mrb[0].mxu0
      %v3933 = vadd.f32 %v3519, %v3932
      %v3934 = vpop.f32.mrb[0].mxu0
      %v3935 = vadd.f32 %v3523, %v3934
      %3936 = vmatprep.mubr.bf16.mxu0 %v3437
      %3937 = vmatmul.mubr.bf16.gmra.mrb[0].mxu0 %v3436
      %v3938 = vpop.f32.mrb[0].mxu0
      %v3939 = vadd.f32 %v3519, %v3938
      %v3940 = vpop.f32.mrb[0].mxu0
      %v3941 = vadd.f32 %v3523, %v3940
      %v3942 = vpop.f32.mrb[0].mxu0
      %v3943 = vadd.f32 %v3519, %v3942
      %v3944 = vpop.f32.mrb[0].mxu0
      %v3945 = vadd.f32 %v3523, %v3944
      %3946 = vmatprep.mubr.bf16.mxu0 %v3441
      %3947 = vmatmul.mubr.bf16.gmra.mrb[0].mxu0 %v3440
      %v3948 = vpop.f32.mrb[0].mxu0
      %v3949 = vadd.f32 %v3519, %v3948
      %v3950 = vpop.f32.mrb[0].mxu0
      %v3951 = vadd.f32 %v3523, %v3950
      %v3952 = vpop.f32.mrb[0].mxu0
      %v3953 = vadd.f32 %v3519, %v3952
      %v3954 = vpop.f32.mrb[0].mxu0
      %v3955 = vadd.f32 %v3523, %v3954
      %3956 = vmatprep.mubr.bf16.mxu0 %v3445
      %3957 = vmatmul.mubr.bf16.gmra.mrb[0].mxu0 %v3444
      %v3958 = vpop.f32.mrb[0].mxu0
      %v3959 = vadd.f32 %v3519, %v3958
      %v3960 = vpop.f32.mrb[0].mxu0
      %v3961 = vadd.f32 %v3523, %v3960
      %v3962 = vpop.f32.mrb[0].mxu0
      %v3963 = vadd.f32 %v3519, %v3962
      %v3964 = vpop.f32.mrb[0].mxu0
      %v3965 = vadd.f32 %v3523, %v3964
      %3966 = vmatprep.mubr.bf16.mxu0 %v3449
      %3967 = vmatmul.mubr.bf16.gmra.mrb[0].mxu0 %v3448
      %v3968 = vpop.f32.mrb[0].mxu0
      %v3969 = vadd.f32 %v3519, %v3968
      %v3970 = vpop.f32.mrb[0].mxu0
      %v3971 = vadd.f32 %v3523, %v3970
      %v3972 = vpop.f32.mrb[0].mxu0
      %v3973 = vadd.f32 %v3519, %v3972
      %v3974 = vpop.f32.mrb[0].mxu0
      %v3975 = vadd.f32 %v3523, %v3974
      %3976 = vdwg.mxu0
      %3977 = vmatprep.subr.bf16.mxu0 %v3749
      %3978 = vmatpush1.bf16.msra.mxu0 %v3748
      %3979 = vmatprep.subr.bf16.mxu0 %v3751
      %3980 = vmatpush1.bf16.msra.mxu0 %v3750
      %3981 = vmatprep.subr.bf16.mxu0 %v3753
      %3982 = vmatpush1.bf16.msra.mxu0 %v3752
      %3983 = vmatprep.subr.bf16.mxu0 %v3755
      %3984 = vmatpush1.bf16.msra.mxu0 %v3754
      %3985 = vmatprep.subr.bf16.mxu0 %v3757
      %3986 = vmatpush1.bf16.msra.mxu0 %v3756
      %3987 = vmatprep.subr.bf16.mxu0 %v3759
      %3988 = vmatpush1.bf16.msra.mxu0 %v3758
      %3989 = vmatprep.subr.bf16.mxu0 %v3761
      %3990 = vmatpush1.bf16.msra.mxu0 %v3760
      %3991 = vmatprep.subr.bf16.mxu0 %v3763
      %3992 = vmatpush1.bf16.msra.mxu0 %v3762
      %3993 = vmatprep.subr.bf16.mxu0 %v3765
      %3994 = vmatpush1.bf16.msra.mxu0 %v3764
      %3995 = vmatprep.subr.bf16.mxu0 %v3767
      %3996 = vmatpush1.bf16.msra.mxu0 %v3766
      %3997 = vmatprep.subr.bf16.mxu0 %v3769
      %3998 = vmatpush1.bf16.msra.mxu0 %v3768
      %3999 = vmatprep.subr.bf16.mxu0 %v3771
      %4000 = vmatpush1.bf16.msra.mxu0 %v3770
      %4001 = vmatprep.subr.bf16.mxu0 %v3773
      %4002 = vmatpush1.bf16.msra.mxu0 %v3772
      %4003 = vmatprep.subr.bf16.mxu0 %v3775
      %4004 = vmatpush1.bf16.msra.mxu0 %v3774
      %4005 = vmatprep.subr.bf16.mxu0 %v3777
      %4006 = vmatpush1.bf16.msra.mxu0 %v3776
      %4007 = vmatprep.subr.bf16.mxu0 %v3779
      %4008 = vmatpush1.bf16.msra.mxu0 %v3778
      %4009 = vmatprep.mubr.bf16.mxu0 %v3415
      %4010 = vmatmul.mubr.bf16.gmra.mrb[0].mxu0 %v3414
      %v4011 = vpop.f32.mrb[0].mxu0
      %v4012 = vadd.f32 %v3879, %v4011
      %v4013 = vpop.f32.mrb[0].mxu0
      %v4014 = vadd.f32 %v3881, %v4013
      %v4015 = vpop.f32.mrb[0].mxu0
      %v4016 = vadd.f32 %v3883, %v4015
      %v4017 = vpop.f32.mrb[0].mxu0
      %v4018 = vadd.f32 %v3885, %v4017
      %4019 = vmatprep.mubr.bf16.mxu0 %v3419
      %4020 = vmatmul.mubr.bf16.gmra.mrb[0].mxu0 %v3418
      %v4021 = vpop.f32.mrb[0].mxu0
      %v4022 = vadd.f32 %v3889, %v4021
      %v4023 = vpop.f32.mrb[0].mxu0
      %v4024 = vadd.f32 %v3891, %v4023
      %v4025 = vpop.f32.mrb[0].mxu0
      %v4026 = vadd.f32 %v3893, %v4025
      %v4027 = vpop.f32.mrb[0].mxu0
      %v4028 = vadd.f32 %v3895, %v4027
      %4029 = vmatprep.mubr.bf16.mxu0 %v3423
      %4030 = vmatmul.mubr.bf16.gmra.mrb[0].mxu0 %v3422
      %v4031 = vpop.f32.mrb[0].mxu0
      %v4032 = vadd.f32 %v3899, %v4031
      %v4033 = vpop.f32.mrb[0].mxu0
      %v4034 = vadd.f32 %v3901, %v4033
      %v4035 = vpop.f32.mrb[0].mxu0
      %v4036 = vadd.f32 %v3903, %v4035
      %v4037 = vpop.f32.mrb[0].mxu0
      %v4038 = vadd.f32 %v3905, %v4037
      %4039 = vmatprep.mubr.bf16.mxu0 %v3427
      %4040 = vmatmul.mubr.bf16.gmra.mrb[0].mxu0 %v3426
      %v4041 = vpop.f32.mrb[0].mxu0
      %v4042 = vadd.f32 %v3909, %v4041
      %v4043 = vpop.f32.mrb[0].mxu0
      %v4044 = vadd.f32 %v3911, %v4043
      %v4045 = vpop.f32.mrb[0].mxu0
      %v4046 = vadd.f32 %v3913, %v4045
      %v4047 = vpop.f32.mrb[0].mxu0
      %v4048 = vadd.f32 %v3915, %v4047
      %4049 = vmatprep.mubr.bf16.mxu0 %v3431
      %4050 = vmatmul.mubr.bf16.gmra.mrb[0].mxu0 %v3430
      %v4051 = vpop.f32.mrb[0].mxu0
      %v4052 = vadd.f32 %v3919, %v4051
      %v4053 = vpop.f32.mrb[0].mxu0
      %v4054 = vadd.f32 %v3921, %v4053
      %v4055 = vpop.f32.mrb[0].mxu0
      %v4056 = vadd.f32 %v3923, %v4055
      %v4057 = vpop.f32.mrb[0].mxu0
      %v4058 = vadd.f32 %v3925, %v4057
      %4059 = vmatprep.mubr.bf16.mxu0 %v3435
      %4060 = vmatmul.mubr.bf16.gmra.mrb[0].mxu0 %v3434
      %v4061 = vpop.f32.mrb[0].mxu0
      %v4062 = vadd.f32 %v3929, %v4061
      %v4063 = vpop.f32.mrb[0].mxu0
      %v4064 = vadd.f32 %v3931, %v4063
      %v4065 = vpop.f32.mrb[0].mxu0
      %v4066 = vadd.f32 %v3933, %v4065
      %v4067 = vpop.f32.mrb[0].mxu0
      %v4068 = vadd.f32 %v3935, %v4067
      %4069 = vmatprep.mubr.bf16.mxu0 %v3439
      %4070 = vmatmul.mubr.bf16.gmra.mrb[0].mxu0 %v3438
      %v4071 = vpop.f32.mrb[0].mxu0
      %v4072 = vadd.f32 %v3939, %v4071
      %v4073 = vpop.f32.mrb[0].mxu0
      %v4074 = vadd.f32 %v3941, %v4073
      %v4075 = vpop.f32.mrb[0].mxu0
      %v4076 = vadd.f32 %v3943, %v4075
      %v4077 = vpop.f32.mrb[0].mxu0
      %v4078 = vadd.f32 %v3945, %v4077
      %4079 = vmatprep.mubr.bf16.mxu0 %v3443
      %4080 = vmatmul.mubr.bf16.gmra.mrb[0].mxu0 %v3442
      %v4081 = vpop.f32.mrb[0].mxu0
      %v4082 = vadd.f32 %v3949, %v4081
      %v4083 = vpop.f32.mrb[0].mxu0
      %v4084 = vadd.f32 %v3951, %v4083
      %v4085 = vpop.f32.mrb[0].mxu0
      %v4086 = vadd.f32 %v3953, %v4085
      %v4087 = vpop.f32.mrb[0].mxu0
      %v4088 = vadd.f32 %v3955, %v4087
      %4089 = vmatprep.mubr.bf16.mxu0 %v3447
      %4090 = vmatmul.mubr.bf16.gmra.mrb[0].mxu0 %v3446
      %v4091 = vpop.f32.mrb[0].mxu0
      %v4092 = vadd.f32 %v3959, %v4091
      %v4093 = vpop.f32.mrb[0].mxu0
      %v4094 = vadd.f32 %v3961, %v4093
      %v4095 = vpop.f32.mrb[0].mxu0
      %v4096 = vadd.f32 %v3963, %v4095
      %v4097 = vpop.f32.mrb[0].mxu0
      %v4098 = vadd.f32 %v3965, %v4097
      %4099 = vmatprep.mubr.bf16.mxu0 %v3451
      %4100 = vmatmul.mubr.bf16.gmra.mrb[0].mxu0 %v3450
      %v4101 = vpop.f32.mrb[0].mxu0
      %v4102 = vadd.f32 %v3969, %v4101
      %v4103 = vpop.f32.mrb[0].mxu0
      %v4104 = vadd.f32 %v3971, %v4103
      %v4105 = vpop.f32.mrb[0].mxu0
      %v4106 = vadd.f32 %v3973, %v4105
      %v4107 = vpop.f32.mrb[0].mxu0
      %v4108 = vadd.f32 %v3975, %v4107
      %4109 = vdwg.mxu0
      %v4110 = vmax.f32 %v4012, 0.0
      %v4111 = vmax.f32 %v4014, 0.0
      %v4112 = vmax.f32 %v4016, 0.0
      %v4113 = vmax.f32 %v4018, 0.0
      %v4114 = vmax.f32 %v4022, 0.0
      %v4115 = vmax.f32 %v4024, 0.0
      %v4116 = vmax.f32 %v4026, 0.0
      %v4117 = vmax.f32 %v4028, 0.0
      %v4118 = vmax.f32 %v4032, 0.0
      %v4119 = vmax.f32 %v4034, 0.0
      %v4120 = vmax.f32 %v4036, 0.0
      %v4121 = vmax.f32 %v4038, 0.0
      %v4122 = vmax.f32 %v4042, 0.0
      %v4123 = vmax.f32 %v4044, 0.0
      %v4124 = vmax.f32 %v4046, 0.0
      %v4125 = vmax.f32 %v4048, 0.0
      %v4126 = vmax.f32 %v4052, 0.0
      %v4127 = vmax.f32 %v4054, 0.0
      %v4128 = vmax.f32 %v4056, 0.0
      %v4129 = vmax.f32 %v4058, 0.0
      %v4130 = vmax.f32 %v4062, 0.0
      %v4131 = vmax.f32 %v4064, 0.0
      %v4132 = vmax.f32 %v4066, 0.0
      %v4133 = vmax.f32 %v4068, 0.0
      %v4134 = vmax.f32 %v4072, 0.0
      %v4135 = vmax.f32 %v4074, 0.0
      %v4136 = vmax.f32 %v4076, 0.0
      %v4137 = vmax.f32 %v4078, 0.0
      %v4138 = vmax.f32 %v4082, 0.0
      %v4139 = vmax.f32 %v4084, 0.0
      %v4140 = vmax.f32 %v4086, 0.0
      %v4141 = vmax.f32 %v4088, 0.0
      %v4142 = vmax.f32 %v4092, 0.0
      %v4143 = vmax.f32 %v4094, 0.0
      %v4144 = vmax.f32 %v4096, 0.0
      %v4145 = vmax.f32 %v4098, 0.0
      %v4146 = vmax.f32 %v4102, 0.0
      %v4147 = vmax.f32 %v4104, 0.0
      %v4148 = vmax.f32 %v4106, 0.0
      %v4149 = vmax.f32 %v4108, 0.0
      %v4150 = vpack.c.bf16 %v4112, %v4110
      %v4151 = vpack.c.bf16 %v4113, %v4111
      %v4152 = vpack.c.bf16 %v4116, %v4114
      %v4153 = vpack.c.bf16 %v4117, %v4115
      %v4154 = vpack.c.bf16 %v4120, %v4118
      %v4155 = vpack.c.bf16 %v4121, %v4119
      %v4156 = vpack.c.bf16 %v4124, %v4122
      %v4157 = vpack.c.bf16 %v4125, %v4123
      %v4158 = vpack.c.bf16 %v4128, %v4126
      %v4159 = vpack.c.bf16 %v4129, %v4127
      %v4160 = vpack.c.bf16 %v4132, %v4130
      %v4161 = vpack.c.bf16 %v4133, %v4131
      %v4162 = vpack.c.bf16 %v4136, %v4134
      %v4163 = vpack.c.bf16 %v4137, %v4135
      %v4164 = vpack.c.bf16 %v4140, %v4138
      %v4165 = vpack.c.bf16 %v4141, %v4139
      %v4166 = vpack.c.bf16 %v4144, %v4142
      %v4167 = vpack.c.bf16 %v4145, %v4143
      %v4168 = vpack.c.bf16 %v4148, %v4146
      %v4169 = vpack.c.bf16 %v4149, %v4147
      %v4170 = vld [vmem:[%s3] sm:$0xf]
      %v4171 = vld [vmem:[%s3 + $0x4] sm:$0xf]
      %v4172 = vld [vmem:[%s3 + $0x8] sm:$0xf]
      %v4173 = vld [vmem:[%s3 + $0xc] sm:$0xf]
      %v4174 = vld [vmem:[%s3 + $0x10] sm:$0xf]
      %v4175 = vld [vmem:[%s3 + $0x14] sm:$0xf]
      %v4176 = vld [vmem:[%s3 + $0x18] sm:$0xf]
      %v4177 = vld [vmem:[%s3 + $0x1c] sm:$0xf]
      %v4178 = vld [vmem:[%s3 + $0x20] sm:$0xf]
      %v4179 = vld [vmem:[%s3 + $0x24] sm:$0xf]
      %v4180 = vld [vmem:[%s3 + $0x28] sm:$0xf]
      %v4181 = vld [vmem:[%s3 + $0x2c] sm:$0xf]
      %v4182 = vld [vmem:[%s3 + $0x30] sm:$0xf]
      %v4183 = vld [vmem:[%s3 + $0x34] sm:$0xf]
      %v4184 = vld [vmem:[%s3 + $0x38] sm:$0xf]
      %v4185 = vld [vmem:[%s3 + $0x3c] sm:$0xf]
      %v4186 = vld [vmem:[%s3 + $0x40] sm:$0xf]
      %v4187 = vld [vmem:[%s3 + $0x44] sm:$0xf]
      %v4188 = vld [vmem:[%s3 + $0x48] sm:$0xf]
      %v4189 = vld [vmem:[%s3 + $0x4c] sm:$0xf]
      %v4190 = vld [vmem:[%s3 + $0x50] sm:$0xf]
      %v4191 = vld [vmem:[%s3 + $0x54] sm:$0xf]
      %v4192 = vld [vmem:[%s3 + $0x58] sm:$0xf]
      %v4193 = vld [vmem:[%s3 + $0x5c] sm:$0xf]
      %v4194 = vld [vmem:[%s3 + $0x60] sm:$0xf]
      %v4195 = vld [vmem:[%s3 + $0x64] sm:$0xf]
      %v4196 = vld [vmem:[%s3 + $0x68] sm:$0xf]
      %v4197 = vld [vmem:[%s3 + $0x6c] sm:$0xf]
      %v4198 = vld [vmem:[%s3 + $0x70] sm:$0xf]
      %v4199 = vld [vmem:[%s3 + $0x74] sm:$0xf]
      %v4200 = vld [vmem:[%s3 + $0x78] sm:$0xf]
      %v4201 = vld [vmem:[%s3 + $0x7c] sm:$0xf]
      %v4202 = vlaneseq
      %v4203 = vshrl.u32 %v4202, 7
      %v4204 = vsub.s32 2, %v4203
      %v4205 = vrot.slane %v232, %v4204
      %v4238 = vunpack.c.l.b16 %v4170
      %v4239 = vunpack.c.l.b16 %v4171
      %v4240 = vunpack.c.l.b16 %v4172
      %v4241 = vunpack.c.l.b16 %v4173
      %v4242 = vunpack.c.l.b16 %v4174
      %v4243 = vunpack.c.l.b16 %v4175
      %v4244 = vunpack.c.l.b16 %v4176
      %v4245 = vunpack.c.l.b16 %v4177
      %v4246 = vunpack.c.l.b16 %v4178
      %v4247 = vunpack.c.l.b16 %v4179
      %v4248 = vunpack.c.l.b16 %v4180
      %v4249 = vunpack.c.l.b16 %v4181
      %v4250 = vunpack.c.l.b16 %v4182
      %v4251 = vunpack.c.l.b16 %v4183
      %v4252 = vunpack.c.l.b16 %v4184
      %v4253 = vunpack.c.l.b16 %v4185
      %v4254 = vunpack.c.l.b16 %v4186
      %v4255 = vunpack.c.l.b16 %v4187
      %v4256 = vunpack.c.l.b16 %v4188
      %v4257 = vunpack.c.l.b16 %v4189
      %v4258 = vunpack.c.l.b16 %v4190
      %v4259 = vunpack.c.l.b16 %v4191
      %v4260 = vunpack.c.l.b16 %v4192
      %v4261 = vunpack.c.l.b16 %v4193
      %v4262 = vunpack.c.l.b16 %v4194
      %v4263 = vunpack.c.l.b16 %v4195
      %v4264 = vunpack.c.l.b16 %v4196
      %v4265 = vunpack.c.l.b16 %v4197
      %v4266 = vunpack.c.l.b16 %v4198
      %v4267 = vunpack.c.l.b16 %v4199
      %v4268 = vunpack.c.l.b16 %v4200
      %v4269 = vunpack.c.l.b16 %v4201
      %v4270 = vpack.c.b16 %v4239, %v4238
      %v4271 = vpack.c.b16 %v4241, %v4240
      %v4272 = vpack.c.b16 %v4243, %v4242
      %v4273 = vpack.c.b16 %v4245, %v4244
      %v4274 = vpack.c.b16 %v4247, %v4246
      %v4275 = vpack.c.b16 %v4249, %v4248
      %v4276 = vpack.c.b16 %v4251, %v4250
      %v4277 = vpack.c.b16 %v4253, %v4252
      %v4278 = vpack.c.b16 %v4255, %v4254
      %v4279 = vpack.c.b16 %v4257, %v4256
      %v4280 = vpack.c.b16 %v4259, %v4258
      %v4281 = vpack.c.b16 %v4261, %v4260
      %v4282 = vpack.c.b16 %v4263, %v4262
      %v4283 = vpack.c.b16 %v4265, %v4264
      %v4284 = vpack.c.b16 %v4267, %v4266
      %v4285 = vpack.c.b16 %v4269, %v4268
      %4302 = vmatprep.subr.bf16.mxu0 0
      %4303 = vmatpush1.bf16.msra.mxu0 %v4270
      %4304 = vmatprep.subr.bf16.mxu0 0
      %4305 = vmatpush1.bf16.msra.mxu0 %v4271
      %4306 = vmatprep.subr.bf16.mxu0 0
      %4307 = vmatpush1.bf16.msra.mxu0 %v4272
      %4308 = vmatprep.subr.bf16.mxu0 0
      %4309 = vmatpush1.bf16.msra.mxu0 %v4273
      %4310 = vmatprep.subr.bf16.mxu0 0
      %4311 = vmatpush1.bf16.msra.mxu0 %v4274
      %4312 = vmatprep.subr.bf16.mxu0 0
      %4313 = vmatpush1.bf16.msra.mxu0 %v4275
      %4314 = vmatprep.subr.bf16.mxu0 0
      %4315 = vmatpush1.bf16.msra.mxu0 %v4276
      %4316 = vmatprep.subr.bf16.mxu0 0
      %4317 = vmatpush1.bf16.msra.mxu0 %v4277
      %4318 = vmatprep.subr.bf16.mxu0 0
      %4319 = vmatpush1.bf16.msra.mxu0 %v4278
      %4320 = vmatprep.subr.bf16.mxu0 0
      %4321 = vmatpush1.bf16.msra.mxu0 %v4279
      %4322 = vmatprep.subr.bf16.mxu0 0
      %4323 = vmatpush1.bf16.msra.mxu0 %v4280
      %4324 = vmatprep.subr.bf16.mxu0 0
      %4325 = vmatpush1.bf16.msra.mxu0 %v4281
      %4326 = vmatprep.subr.bf16.mxu0 0
      %4327 = vmatpush1.bf16.msra.mxu0 %v4282
      %4328 = vmatprep.subr.bf16.mxu0 0
      %4329 = vmatpush1.bf16.msra.mxu0 %v4283
      %4330 = vmatprep.subr.bf16.mxu0 0
      %4331 = vmatpush1.bf16.msra.mxu0 %v4284
      %4332 = vmatprep.subr.bf16.mxu0 0
      %4333 = vmatpush1.bf16.msra.mxu0 %v4285
      %4334 = vmatprep.mubr.bf16.mxu0 %v4151
      %4335 = vmatmul.mubr.bf16.gmra.mrb[0].mxu0 %v4150
      %v4336 = vpop.f32.mrb[0].mxu0
      %v4337 = vadd.f32 %v4205, %v4336
      %v4338 = vpop.f32.mrb[0].mxu0
      %v4339 = vpop.f32.mrb[0].mxu0
      %v4340 = vadd.f32 %v4205, %v4339
      %v4341 = vpop.f32.mrb[0].mxu0
      %4342 = vmatprep.mubr.bf16.mxu0 %v4153
      %4343 = vmatmul.mubr.bf16.gmra.mrb[0].mxu0 %v4152
      %v4344 = vpop.f32.mrb[0].mxu0
      %v4345 = vadd.f32 %v4205, %v4344
      %v4346 = vpop.f32.mrb[0].mxu0
      %v4347 = vpop.f32.mrb[0].mxu0
      %v4348 = vadd.f32 %v4205, %v4347
      %v4349 = vpop.f32.mrb[0].mxu0
      %4350 = vmatprep.mubr.bf16.mxu0 %v4155
      %4351 = vmatmul.mubr.bf16.gmra.mrb[0].mxu0 %v4154
      %v4352 = vpop.f32.mrb[0].mxu0
      %v4353 = vadd.f32 %v4205, %v4352
      %v4354 = vpop.f32.mrb[0].mxu0
      %v4355 = vpop.f32.mrb[0].mxu0
      %v4356 = vadd.f32 %v4205, %v4355
      %v4357 = vpop.f32.mrb[0].mxu0
      %4358 = vmatprep.mubr.bf16.mxu0 %v4157
      %4359 = vmatmul.mubr.bf16.gmra.mrb[0].mxu0 %v4156
      %v4360 = vpop.f32.mrb[0].mxu0
      %v4361 = vadd.f32 %v4205, %v4360
      %v4362 = vpop.f32.mrb[0].mxu0
      %v4363 = vpop.f32.mrb[0].mxu0
      %v4364 = vadd.f32 %v4205, %v4363
      %v4365 = vpop.f32.mrb[0].mxu0
      %4366 = vmatprep.mubr.bf16.mxu0 %v4159
      %4367 = vmatmul.mubr.bf16.gmra.mrb[0].mxu0 %v4158
      %v4368 = vpop.f32.mrb[0].mxu0
      %v4369 = vadd.f32 %v4205, %v4368
      %v4370 = vpop.f32.mrb[0].mxu0
      %v4371 = vpop.f32.mrb[0].mxu0
      %v4372 = vadd.f32 %v4205, %v4371
      %v4373 = vpop.f32.mrb[0].mxu0
      %4374 = vmatprep.mubr.bf16.mxu0 %v4161
      %4375 = vmatmul.mubr.bf16.gmra.mrb[0].mxu0 %v4160
      %v4376 = vpop.f32.mrb[0].mxu0
      %v4377 = vadd.f32 %v4205, %v4376
      %v4378 = vpop.f32.mrb[0].mxu0
      %v4379 = vpop.f32.mrb[0].mxu0
      %v4380 = vadd.f32 %v4205, %v4379
      %v4381 = vpop.f32.mrb[0].mxu0
      %4382 = vmatprep.mubr.bf16.mxu0 %v4163
      %4383 = vmatmul.mubr.bf16.gmra.mrb[0].mxu0 %v4162
      %v4384 = vpop.f32.mrb[0].mxu0
      %v4385 = vadd.f32 %v4205, %v4384
      %v4386 = vpop.f32.mrb[0].mxu0
      %v4387 = vpop.f32.mrb[0].mxu0
      %v4388 = vadd.f32 %v4205, %v4387
      %v4389 = vpop.f32.mrb[0].mxu0
      %4390 = vmatprep.mubr.bf16.mxu0 %v4165
      %4391 = vmatmul.mubr.bf16.gmra.mrb[0].mxu0 %v4164
      %v4392 = vpop.f32.mrb[0].mxu0
      %v4393 = vadd.f32 %v4205, %v4392
      %v4394 = vpop.f32.mrb[0].mxu0
      %v4395 = vpop.f32.mrb[0].mxu0
      %v4396 = vadd.f32 %v4205, %v4395
      %v4397 = vpop.f32.mrb[0].mxu0
      %4398 = vmatprep.mubr.bf16.mxu0 %v4167
      %4399 = vmatmul.mubr.bf16.gmra.mrb[0].mxu0 %v4166
      %v4400 = vpop.f32.mrb[0].mxu0
      %v4401 = vadd.f32 %v4205, %v4400
      %v4402 = vpop.f32.mrb[0].mxu0
      %v4403 = vpop.f32.mrb[0].mxu0
      %v4404 = vadd.f32 %v4205, %v4403
      %v4405 = vpop.f32.mrb[0].mxu0
      %4406 = vmatprep.mubr.bf16.mxu0 %v4169
      %4407 = vmatmul.mubr.bf16.gmra.mrb[0].mxu0 %v4168
      %v4408 = vpop.f32.mrb[0].mxu0
      %v4409 = vadd.f32 %v4205, %v4408
      %v4410 = vpop.f32.mrb[0].mxu0
      %v4411 = vpop.f32.mrb[0].mxu0
      %v4412 = vadd.f32 %v4205, %v4411
      %v4413 = vpop.f32.mrb[0].mxu0
      %4414 = vdwg.mxu0
      %v4415 = vmax.f32 %v4337, 0.0
      %v4416 = vmax.f32 %v4340, 0.0
      %v4417 = vmax.f32 %v4345, 0.0
      %v4418 = vmax.f32 %v4348, 0.0
      %v4419 = vmax.f32 %v4353, 0.0
      %v4420 = vmax.f32 %v4356, 0.0
      %v4421 = vmax.f32 %v4361, 0.0
      %v4422 = vmax.f32 %v4364, 0.0
      %v4423 = vmax.f32 %v4369, 0.0
      %v4424 = vmax.f32 %v4372, 0.0
      %v4425 = vmax.f32 %v4377, 0.0
      %v4426 = vmax.f32 %v4380, 0.0
      %v4427 = vmax.f32 %v4385, 0.0
      %v4428 = vmax.f32 %v4388, 0.0
      %v4429 = vmax.f32 %v4393, 0.0
      %v4430 = vmax.f32 %v4396, 0.0
      %v4431 = vmax.f32 %v4401, 0.0
      %v4432 = vmax.f32 %v4404, 0.0
      %v4433 = vmax.f32 %v4409, 0.0
      %v4434 = vmax.f32 %v4412, 0.0
      %v4435 = vlaneseq
      %v4436 = vshrl.u32 %v4435, 7
      %v4437 = vsub.s32 3, %v4436
      %v4438 = vrot.slane %v232, %v4437
      %v4439 = vmul.f32 %v4415, %v4438
      %v4440 = vmul.f32 %v4416, %v4438
      %v4441 = vmul.f32 %v4417, %v4438
      %v4442 = vmul.f32 %v4418, %v4438
      %v4443 = vmul.f32 %v4419, %v4438
      %v4444 = vmul.f32 %v4420, %v4438
      %v4445 = vmul.f32 %v4421, %v4438
      %v4446 = vmul.f32 %v4422, %v4438
      %v4447 = vmul.f32 %v4423, %v4438
      %v4448 = vmul.f32 %v4424, %v4438
      %v4449 = vmul.f32 %v4425, %v4438
      %v4450 = vmul.f32 %v4426, %v4438
      %v4451 = vmul.f32 %v4427, %v4438
      %v4452 = vmul.f32 %v4428, %v4438
      %v4453 = vmul.f32 %v4429, %v4438
      %v4454 = vmul.f32 %v4430, %v4438
      %v4455 = vmul.f32 %v4431, %v4438
      %v4456 = vmul.f32 %v4432, %v4438
      %v4457 = vmul.f32 %v4433, %v4438
      %v4458 = vmul.f32 %v4434, %v4438
      %4459 = vadd.xlane.f32.xlu0 %v4439
      %v4460 = vpop.xlane.xlu0 %4459
      %4461 = vadd.xlane.f32.xlu0 %v4440
      %v4462 = vpop.xlane.xlu0 %4461
      %4463 = vadd.xlane.f32.xlu0 %v4441
      %v4464 = vpop.xlane.xlu0 %4463
      %4465 = vadd.xlane.f32.xlu0 %v4442
      %v4466 = vpop.xlane.xlu0 %4465
      %4467 = vadd.xlane.f32.xlu0 %v4443
      %v4468 = vpop.xlane.xlu0 %4467
      %4469 = vadd.xlane.f32.xlu0 %v4444
      %v4470 = vpop.xlane.xlu0 %4469
      %4471 = vadd.xlane.f32.xlu0 %v4445
      %v4472 = vpop.xlane.xlu0 %4471
      %4473 = vadd.xlane.f32.xlu0 %v4446
      %v4474 = vpop.xlane.xlu0 %4473
      %4475 = vadd.xlane.f32.xlu0 %v4447
      %v4476 = vpop.xlane.xlu0 %4475
      %4477 = vadd.xlane.f32.xlu0 %v4448
      %v4478 = vpop.xlane.xlu0 %4477
      %4479 = vadd.xlane.f32.xlu0 %v4449
      %v4480 = vpop.xlane.xlu0 %4479
      %4481 = vadd.xlane.f32.xlu0 %v4450
      %v4482 = vpop.xlane.xlu0 %4481
      %4483 = vadd.xlane.f32.xlu0 %v4451
      %v4484 = vpop.xlane.xlu0 %4483
      %4485 = vadd.xlane.f32.xlu0 %v4452
      %v4486 = vpop.xlane.xlu0 %4485
      %4487 = vadd.xlane.f32.xlu0 %v4453
      %v4488 = vpop.xlane.xlu0 %4487
      %4489 = vadd.xlane.f32.xlu0 %v4454
      %v4490 = vpop.xlane.xlu0 %4489
      %4491 = vadd.xlane.f32.xlu0 %v4455
      %v4492 = vpop.xlane.xlu0 %4491
      %4493 = vadd.xlane.f32.xlu0 %v4456
      %v4494 = vpop.xlane.xlu0 %4493
      %4495 = vadd.xlane.f32.xlu0 %v4457
      %v4496 = vpop.xlane.xlu0 %4495
      %4497 = vadd.xlane.f32.xlu0 %v4458
      %v4498 = vpop.xlane.xlu0 %4497
      %v4499 = vlaneseq
      %v4500 = vshrl.u32 %v4499, 7
      %v4501 = vsub.s32 4, %v4500
      %v4502 = vrot.slane %v232, %v4501
      %v4503 = vadd.f32 %v4460, %v4502
      %v4504 = vadd.f32 %v4462, %v4502
      %v4505 = vadd.f32 %v4464, %v4502
      %v4506 = vadd.f32 %v4466, %v4502
      %v4507 = vadd.f32 %v4468, %v4502
      %v4508 = vadd.f32 %v4470, %v4502
      %v4509 = vadd.f32 %v4472, %v4502
      %v4510 = vadd.f32 %v4474, %v4502
      %v4511 = vadd.f32 %v4476, %v4502
      %v4512 = vadd.f32 %v4478, %v4502
      %v4513 = vadd.f32 %v4480, %v4502
      %v4514 = vadd.f32 %v4482, %v4502
      %v4515 = vadd.f32 %v4484, %v4502
      %v4516 = vadd.f32 %v4486, %v4502
      %v4517 = vadd.f32 %v4488, %v4502
      %v4518 = vadd.f32 %v4490, %v4502
      %v4519 = vadd.f32 %v4492, %v4502
      %v4520 = vadd.f32 %v4494, %v4502
      %v4521 = vadd.f32 %v4496, %v4502
      %v4522 = vadd.f32 %v4498, %v4502
      %vm4523 = vcmask 7168
      %4524 = vst.msk [vmem:[%s229] sm:$0xff] %vm4523, %v4503
      %4525 = vst.msk [vmem:[%s229 + $0x8] sm:$0xff] %vm4523, %v4504
      %4526 = vst.msk [vmem:[%s229 + $0x10] sm:$0xff] %vm4523, %v4505
      %4527 = vst.msk [vmem:[%s229 + $0x18] sm:$0xff] %vm4523, %v4506
      %4528 = vst.msk [vmem:[%s229 + $0x20] sm:$0xff] %vm4523, %v4507
      %4529 = vst.msk [vmem:[%s229 + $0x28] sm:$0xff] %vm4523, %v4508
      %4530 = vst.msk [vmem:[%s229 + $0x30] sm:$0xff] %vm4523, %v4509
      %4531 = vst.msk [vmem:[%s229 + $0x38] sm:$0xff] %vm4523, %v4510
      %4532 = vst.msk [vmem:[%s229 + $0x40] sm:$0xff] %vm4523, %v4511
      %4533 = vst.msk [vmem:[%s229 + $0x48] sm:$0xff] %vm4523, %v4512
      %4534 = vst.msk [vmem:[%s229 + $0x50] sm:$0xff] %vm4523, %v4513
      %4535 = vst.msk [vmem:[%s229 + $0x58] sm:$0xff] %vm4523, %v4514
      %4536 = vst.msk [vmem:[%s229 + $0x60] sm:$0xff] %vm4523, %v4515
      %4537 = vst.msk [vmem:[%s229 + $0x68] sm:$0xff] %vm4523, %v4516
      %4538 = vst.msk [vmem:[%s229 + $0x70] sm:$0xff] %vm4523, %v4517
      %4539 = vst.msk [vmem:[%s229 + $0x78] sm:$0xff] %vm4523, %v4518
      %4540 = vst.msk [vmem:[%s229 + $0x80] sm:$0xff] %vm4523, %v4519
      %4541 = vst.msk [vmem:[%s229 + $0x88] sm:$0xff] %vm4523, %v4520
      %4542 = vst.msk [vmem:[%s229 + $0x90] sm:$0xff] %vm4523, %v4521
      %4543 = vst.msk [vmem:[%s229 + $0x98] sm:$0xff] %vm4523, %v4522
      %s4544 = smul.u32 20, %s16
      %p4545 = scmp.lt.s32.totalorder %s4544, 39
      %s4546 = scalar_select %p4545, %s4544, 39
      %s4547 = smul.addr %s4546, 8
      %s4548 = scalar_lea.vmem %s5, %s4547
      // Predicated region
      $region41: #{net_forward.1} parent=39 // pred_check
        %p4549 = pneg %p144
      $region42: #{net_forward.1} parent=39 // pred_check_branch
        %4551 = sbr.rel (%p4549) target = $region44
      $region43: #{net_forward.1} parent=39 // pred_region
        %s4552 = smul.u32 20, %s16
      $region44: #{net_forward.1} parent=39 // pred_fallthru
        _
    $region40: #{net_forward.1} parent=5 // pred_fallthru
      _
    %p4553 = scmp.le.s32.totalorder 2, %s11
    // Predicated region
    $region45: #{net_forward.1} parent=5 // pred_check
      %p4554 = pneg %p4553
    $region46: #{net_forward.1} parent=5 // pred_check_branch
      %4556 = sbr.rel (%p4554) target = $region48
    $region47: #{net_forward.1} parent=5 // pred_region
      %s4557 = ssub.s32 %s11, 2
      // Predicated region
      $region49: #{net_forward.1} parent=47 // pred_check
        %p4558 = pneg %p150
      $region50: #{net_forward.1} parent=47 // pred_check_branch
        %4560 = sbr.rel (%p4558) target = $region52
      $region51: #{net_forward.1} parent=47 // pred_region
        %s4561 = smul.u32 20, %s17
        %p4562 = scmp.lt.s32.totalorder %s4561, 39
        %s4563 = scalar_select %p4562, %s4561, 39
        %s4564 = smul.addr %s4563, 8
        %s4565 = scalar_lea.vmem %s5, %s4564
      $region52: #{net_forward.1} parent=47 // pred_fallthru
        _
    $region48: #{net_forward.1} parent=5 // pred_fallthru
      _
  $region6: #{net_forward.1} parent=0 // loop_footer
    %s15 = sadd.s32 1, %s11
  $region7: #{net_forward.1} parent=0 // loop_footer_branch
    %10 = sbr.rel target = $region3
  $region8: #{net_forward.1} parent=0 // loop_exit
    _

</llo_original>
